<compile_context>
chip_gen: v7x
topology: tpu7x:2x2x1
jax: 0.10.0
libtpu: 0.0.40
codegen_flags: <defaults>
</compile_context>

<pallas_src>
import jax
import jax.numpy as jnp
from jax import lax
from jax.experimental import pallas as pl
from jax.experimental.pallas import tpu as pltpu

BN_EPS = 1e-5
LANE = 128


# ---------------------------------------------------------------------------
# Helpers
# ---------------------------------------------------------------------------
def _round_up(x, m):
    return (x + m - 1) // m * m


def _pick_rb(H, W, target_m=128):
    """Largest divisor of H with RB*W <= target_m (bounds the matmul M tile)."""
    best = 1
    for rb in range(1, H + 1):
        if H % rb == 0 and rb * W <= max(target_m, W):
            best = rb
    return best


# ---------------------------------------------------------------------------
# Pallas kernel
# ---------------------------------------------------------------------------
def basic_block_kernel(x_ref, w1_ref, b1_ref, w2_ref, b2_ref, o_ref, mid_ref):
    """Fused BasicBlock for one image (grid iterates over batch).

    x_ref:   (H+2, W, C) bf16, row-padded (rows 0 / H+1 are zero), channel-padded
             to C = multiple of 128 (lane-dense).
    w*_ref:  (3, 3*C, C) bf16 conv weights, row index = kw*C + ci, BN scale folded.
    b*_ref:  (1, C) f32 folded BatchNorm bias.
    o_ref:   (H, W, C) bf16 output block.
    mid_ref: (H+2, W, C) bf16 scratch: row-padded conv1 output (stays in VMEM).
    """
    Hp2, W, C = x_ref.shape
    H = Hp2 - 2
    RB = _pick_rb(H, W)          # rows per M tile (M = RB*W)
    n_rb = H // RB

    # Hoisted: read the folded-BN biases once per invocation, not per row block.
    bias1 = b1_ref[...]
    bias2 = b2_ref[...]

    # Zero the conv2 halo rows of the intermediate activation.
    zrow = jnp.zeros((1, W, C), mid_ref.dtype)
    mid_ref[0:1] = zrow
    mid_ref[H + 1:H + 2] = zrow

    def conv3x3(src_ref, w_ref, h0):
        """3x3 conv (stride 1, pad 1) of output rows [h0, h0+RB) against a
        row-padded (H+2, W, C) source ref.  Returns f32 (RB*W, C)."""
        acc = jnp.zeros((RB * W, C), jnp.float32)
        for kh in range(3):                          # keep the 3 row taps unrolled
            rows = src_ref[pl.ds(h0 + kh, RB)]       # (RB, W, C), major-dim slice
            z = jnp.zeros((RB, 1, C), rows.dtype)
            left = jnp.concatenate([z, rows[:, :W - 1, :]], axis=1)   # col w-1
            right = jnp.concatenate([rows[:, 1:, :], z], axis=1)      # col w+1
            # im2col along channels: K = 3*C fills the MXU contraction depth.
            patch = jnp.concatenate([left, rows, right], axis=-1)     # (RB, W, 3C)
            acc = acc + jnp.dot(patch.reshape(RB * W, 3 * C), w_ref[kh],
                                preferred_element_type=jnp.float32)
        return acc

    # Phase 1: conv1 (BN1 scale pre-folded) + bias + ReLU -> mid (VMEM, bf16).
    @pl.loop(0, n_rb)
    def _(rb):
        h0 = pl.multiple_of(rb * RB, RB)
        y = jnp.maximum(conv3x3(x_ref, w1_ref, h0) + bias1, 0.0)
        mid_ref[pl.ds(1 + h0, RB)] = y.reshape(RB, W, C).astype(mid_ref.dtype)

    # Phase 2: conv2 (BN2 scale pre-folded) + bias + identity + ReLU -> output.
    @pl.loop(0, n_rb)
    def _(rb):
        h0 = pl.multiple_of(rb * RB, RB)
        acc = conv3x3(mid_ref, w2_ref, h0) + bias2
        ident = x_ref[pl.ds(1 + h0, RB)].reshape(RB * W, C).astype(jnp.float32)
        y = jnp.maximum(acc + ident, 0.0)
        o_ref[pl.ds(h0, RB)] = y.reshape(RB, W, C).astype(o_ref.dtype)


# ---------------------------------------------------------------------------
# Wrapper
# ---------------------------------------------------------------------------
def _fold_bn_into_conv(w_oihw, gamma, beta, mean, var, C):
    """OIHW conv weight + BN stats -> (3, 3C, C) bf16 weight with the BN scale
    folded into output channels, plus a (1, C) f32 bias."""
    s = gamma / jnp.sqrt(var + BN_EPS)
    b = beta - mean * s
    w = jnp.transpose(w_oihw, (2, 3, 1, 0)) * s[None, None, None, :]   # HWIO * s_co
    kh, kw, ci, co = w.shape
    w = jnp.pad(w, ((0, 0), (0, 0), (0, C - ci), (0, C - co)))
    w = w.reshape(kh, kw * C, C).astype(jnp.bfloat16)                  # row = kw*C + ci
    b = jnp.pad(b, (0, C - co)).reshape(1, C).astype(jnp.float32)
    return w, b


def _vmem_limit_bytes(H, W, C):
    bf16 = 2
    x_blk = (H + 2) * W * C * bf16
    o_blk = H * W * C * bf16
    wts = 2 * (3 * 3 * C * C * bf16 + C * 4)
    mid = (H + 2) * W * C * bf16
    need = 2 * (x_blk + o_blk + wts) + mid          # double-buffered blocks + scratch
    return int(min(48 * 1024 * 1024, max(8 * 1024 * 1024, 2 * need)))


@jax.jit
def basic_block_forward(x_nchw, p):
    """BasicBlock.forward (stride=1, downsample=None, eval-mode BatchNorm)."""
    N, Cin, H, W = x_nchw.shape
    C = _round_up(Cin, LANE)

    # NCHW -> NHWC; one pad adds the 1-row conv halo AND the channel padding.
    x = jnp.transpose(x_nchw, (0, 2, 3, 1))
    x = jnp.pad(x, ((0, 0), (1, 1), (0, 0), (0, C - Cin))).astype(jnp.bfloat16)

    w1, b1 = _fold_bn_into_conv(p["w1_oihw"], p["gamma1"], p["beta1"],
                                p["mean1"], p["var1"], C)
    w2, b2 = _fold_bn_into_conv(p["w2_oihw"], p["gamma2"], p["beta2"],
                                p["mean2"], p["var2"], C)

    rep3 = lambda n: (0, 0, 0)
    rep2 = lambda n: (0, 0)

    out = pl.pallas_call(
        basic_block_kernel,
        out_shape=jax.ShapeDtypeStruct((N, H, W, C), jnp.bfloat16),
        grid_spec=pltpu.PrefetchScalarGridSpec(
            num_scalar_prefetch=0,
            grid=(N,),
            in_specs=[
                pl.BlockSpec((None, H + 2, W, C), lambda n: (n, 0, 0, 0)),  # x (padded)
                # TODO(synk): pipeline_mode=pl.Buffered(1) on the constant-index
                # weight/bias specs for large-C blocks (VMEM headroom on v7x).
                pl.BlockSpec((3, 3 * C, C), rep3),                          # w1
                pl.BlockSpec((1, C), rep2),                                 # b1
                pl.BlockSpec((3, 3 * C, C), rep3),                          # w2
                pl.BlockSpec((1, C), rep2),                                 # b2
            ],
            out_specs=pl.BlockSpec((None, H, W, C), lambda n: (n, 0, 0, 0)),
            scratch_shapes=[
                pltpu.VMEM((H + 2, W, C), jnp.bfloat16),   # row-padded conv1 output
            ],
        ),
        compiler_params=pltpu.CompilerParams(
            dimension_semantics=("parallel",),
            vmem_limit_bytes=_vmem_limit_bytes(H, W, C),
        ),
    )(x, w1, b1, w2, b2)

    out = out[..., :Cin].astype(jnp.float32)   # drop channel padding
    return jnp.transpose(out, (0, 3, 1, 2))    # NHWC -> NCHW


# ---------------------------------------------------------------------------
# Pure-JAX f32 reference (for correctness check)
# ---------------------------------------------------------------------------
def reference_forward(x_nchw, p):
    def conv(x, w_oihw):
        return lax.conv_general_dilated(
            x, w_oihw, window_strides=(1, 1), padding=((1, 1), (1, 1)),
            dimension_numbers=("NCHW", "OIHW", "NCHW"))

    def bn(x, gamma, beta, mean, var):
        s = gamma / jnp.sqrt(var + BN_EPS)
        b = beta - mean * s
        return x * s[None, :, None, None] + b[None, :, None, None]

    out = jnp.maximum(bn(conv(x_nchw, p["w1_oihw"]),
                         p["gamma1"], p["beta1"], p["mean1"], p["var1"]), 0.0)
    out = bn(conv(out, p["w2_oihw"]),
             p["gamma2"], p["beta2"], p["mean2"], p["var2"]) + x_nchw
    return jnp.maximum(out, 0.0)


# ---------------------------------------------------------------------------
# Deterministic parameter init + demo
# ---------------------------------------------------------------------------
def init_params(key, inplanes, planes):
    ks = jax.random.split(key, 10)
    return {
        "w1_oihw": jax.random.normal(ks[0], (planes, inplanes, 3, 3), jnp.float32) * 0.1,
        "w2_oihw": jax.random.normal(ks[1], (planes, planes, 3, 3), jnp.float32) * 0.1,
        "gamma1": jax.random.uniform(ks[2], (planes,), jnp.float32, 0.5, 1.5),
        "beta1": jax.random.normal(ks[3], (planes,), jnp.float32) * 0.1,
        "mean1": jax.random.normal(ks[4], (planes,), jnp.float32) * 0.1,
        "var1": jax.random.uniform(ks[5], (planes,), jnp.float32, 0.5, 1.5),
        "gamma2": jax.random.uniform(ks[6], (planes,), jnp.float32, 0.5, 1.5),
        "beta2": jax.random.normal(ks[7], (planes,), jnp.float32) * 0.1,
        "mean2": jax.random.normal(ks[8], (planes,), jnp.float32) * 0.1,
        "var2": jax.random.uniform(ks[9], (planes,), jnp.float32, 0.5, 1.5),
    }


if __name__ == "__main__":
    key = jax.random.PRNGKey(0)
    k_x, k_p = jax.random.split(key)

    N, Cin, H, W = 2, 4, 16, 16          # inplanes = planes = 4, stride = 1
    x = jax.random.normal(k_x, (N, Cin, H, W), jnp.float32)
    params = init_params(k_p, Cin, Cin)

    out = jax.block_until_ready(basic_block_forward(x, params))
    ref = reference_forward(x, params)

    assert out.shape == (N, Cin, H, W), out.shape
    max_err = float(jnp.max(jnp.abs(out - ref)))
    # bf16 activations/weights (BN scale folded) with f32 accumulation.
    assert jnp.allclose(out, ref, atol=1e-1, rtol=1e-1), f"max abs err {max_err}"

    print("KERNEL_OK")
</pallas_src>

<mosaic_0001>
module attributes {stable_mosaic.version = 11 : i64} {
  func.func @basic_block_kernel(%arg0: i32, %arg1: memref<1x18x16x128xbf16, #tpu.memory_space<vmem>>, %arg2: memref<3x384x128xbf16, #tpu.memory_space<vmem>>, %arg3: memref<1x128xf32, #tpu.memory_space<vmem>>, %arg4: memref<3x384x128xbf16, #tpu.memory_space<vmem>>, %arg5: memref<1x128xf32, #tpu.memory_space<vmem>>, %arg6: memref<1x16x16x128xbf16, #tpu.memory_space<vmem>>, %arg7: memref<18x16x128xbf16, #tpu.memory_space<vmem>>) attributes {dimension_semantics = [#tpu.dimension_semantics<parallel>], iteration_bounds = array<i64: 2>, scalar_prefetch = 0 : i64, scratch_operands = 1 : i64, tpu.core_type = #tpu.core_type<tc>, window_params = [{transform_indices = @transform_0, window_bounds = array<i64: 1, 18, 16, 128>}, {pipeline_mode = #tpu.pipeline_mode<synchronous>, transform_indices = @transform_1, window_bounds = array<i64: 3, 384, 128>}, {pipeline_mode = #tpu.pipeline_mode<synchronous>, transform_indices = @transform_2, window_bounds = array<i64: 1, 128>}, {pipeline_mode = #tpu.pipeline_mode<synchronous>, transform_indices = @transform_3, window_bounds = array<i64: 3, 384, 128>}, {pipeline_mode = #tpu.pipeline_mode<synchronous>, transform_indices = @transform_4, window_bounds = array<i64: 1, 128>}, {transform_indices = @transform_5, window_bounds = array<i64: 1, 16, 16, 128>}]} {
    %c0 = arith.constant 0 : index
    %c0_0 = arith.constant 0 : index
    %0 = vector.load %arg3[%c0, %c0_0] : memref<1x128xf32, #tpu.memory_space<vmem>>, vector<1x128xf32>
    %c0_1 = arith.constant 0 : index
    %c0_2 = arith.constant 0 : index
    %1 = vector.load %arg5[%c0_1, %c0_2] : memref<1x128xf32, #tpu.memory_space<vmem>>, vector<1x128xf32>
    %cst = arith.constant 0.000000e+00 : bf16
    %2 = vector.broadcast %cst : bf16 to vector<1x16x128xbf16>
    %c0_3 = arith.constant 0 : index
    %c0_4 = arith.constant 0 : index
    %c0_5 = arith.constant 0 : index
    %3 = vector.load %arg7[%c0_3, %c0_4, %c0_5] : memref<18x16x128xbf16, #tpu.memory_space<vmem>>, vector<1x16x128xbf16>
    tpu.vector_store %arg7[%c0_3, %c0_4, %c0_5], %2 {strides = array<i32>} : memref<18x16x128xbf16, #tpu.memory_space<vmem>>, vector<1x16x128xbf16>,
    %c17 = arith.constant 17 : index
    %c0_6 = arith.constant 0 : index
    %c0_7 = arith.constant 0 : index
    %4 = vector.load %arg7[%c17, %c0_6, %c0_7] : memref<18x16x128xbf16, #tpu.memory_space<vmem>>, vector<1x16x128xbf16>
    tpu.vector_store %arg7[%c17, %c0_6, %c0_7], %2 {strides = array<i32>} : memref<18x16x128xbf16, #tpu.memory_space<vmem>>, vector<1x16x128xbf16>,
    %c0_i32 = arith.constant 0 : i32
    %c2_i32 = arith.constant 2 : i32
    %5 = arith.addi %c0_i32, %c2_i32 : i32
    %c1_i32 = arith.constant 1 : i32
    scf.for %arg8 = %c0_i32 to %5 step %c1_i32  : i32 {
      %c1_i32_13 = arith.constant 1 : i32
      %7 = arith.muli %arg8, %c1_i32_13 : i32
      %c0_i32_14 = arith.constant 0 : i32
      %8 = arith.addi %c0_i32_14, %7 : i32
      %c8_i32 = arith.constant 8 : i32
      %9 = arith.muli %8, %c8_i32 : i32
      %10 = tpu.assume_multiple %9, 8 : i32
      %cst_15 = arith.constant 0.000000e+00 : f32
      %11 = vector.broadcast %cst_15 : f32 to vector<128x128xf32>
      %c0_i32_16 = arith.constant 0 : i32
      %12 = arith.addi %10, %c0_i32_16 : i32
      %c0_17 = arith.constant 0 : index
      %13 = arith.index_cast %12 : i32 to index
      %c0_18 = arith.constant 0 : index
      %c0_19 = arith.constant 0 : index
      %14 = vector.load %arg1[%c0_17, %13, %c0_18, %c0_19] : memref<1x18x16x128xbf16, #tpu.memory_space<vmem>>, vector<1x8x16x128xbf16>
      %15 = vector.shape_cast %14 : vector<1x8x16x128xbf16> to vector<8x16x128xbf16>
      %cst_20 = arith.constant 0.000000e+00 : bf16
      %16 = vector.broadcast %cst_20 : bf16 to vector<8x1x128xbf16>
      %17 = vector.extract_strided_slice %15 {offsets = [0, 0, 0], sizes = [8, 15, 128], strides = [1, 1, 1]} : vector<8x16x128xbf16> to vector<8x15x128xbf16>
      %18 = tpu.concatenate %16, %17 in 1 : vector<8x1x128xbf16>, vector<8x15x128xbf16> -> vector<8x16x128xbf16>
      %19 = vector.extract_strided_slice %15 {offsets = [0, 1, 0], sizes = [8, 15, 128], strides = [1, 1, 1]} : vector<8x16x128xbf16> to vector<8x15x128xbf16>
      %20 = tpu.concatenate %19, %16 in 1 : vector<8x15x128xbf16>, vector<8x1x128xbf16> -> vector<8x16x128xbf16>
      %21 = tpu.concatenate %18, %15, %20 in 2 : vector<8x16x128xbf16>, vector<8x16x128xbf16>, vector<8x16x128xbf16> -> vector<8x16x384xbf16>
      %22 = vector.shape_cast %21 : vector<8x16x384xbf16> to vector<128x384xbf16>
      %c0_21 = arith.constant 0 : index
      %c0_22 = arith.constant 0 : index
      %c0_23 = arith.constant 0 : index
      %23 = vector.load %arg2[%c0_21, %c0_22, %c0_23] : memref<3x384x128xbf16, #tpu.memory_space<vmem>>, vector<1x384x128xbf16>
      %24 = vector.shape_cast %23 : vector<1x384x128xbf16> to vector<384x128xbf16>
      %cst_24 = arith.constant dense<0.000000e+00> : vector<128x128xf32>
      %25 = tpu.matmul %22, %24, %cst_24 {dimension_numbers = #tpu.dot_dimension_numbers<[1], [0], [0], [1], [0, 0, 1, 1], [], []>} : vector<128x384xbf16>, vector<384x128xbf16>, vector<128x128xf32> -> vector<128x128xf32>
      %26 = arith.addf %11, %25 : vector<128x128xf32>
      %c1_i32_25 = arith.constant 1 : i32
      %27 = arith.addi %10, %c1_i32_25 : i32
      %c0_26 = arith.constant 0 : index
      %28 = arith.index_cast %27 : i32 to index
      %c0_27 = arith.constant 0 : index
      %c0_28 = arith.constant 0 : index
      %29 = vector.load %arg1[%c0_26, %28, %c0_27, %c0_28] : memref<1x18x16x128xbf16, #tpu.memory_space<vmem>>, vector<1x8x16x128xbf16>
      %30 = vector.shape_cast %29 : vector<1x8x16x128xbf16> to vector<8x16x128xbf16>
      %cst_29 = arith.constant 0.000000e+00 : bf16
      %31 = vector.broadcast %cst_29 : bf16 to vector<8x1x128xbf16>
      %32 = vector.extract_strided_slice %30 {offsets = [0, 0, 0], sizes = [8, 15, 128], strides = [1, 1, 1]} : vector<8x16x128xbf16> to vector<8x15x128xbf16>
      %33 = tpu.concatenate %31, %32 in 1 : vector<8x1x128xbf16>, vector<8x15x128xbf16> -> vector<8x16x128xbf16>
      %34 = vector.extract_strided_slice %30 {offsets = [0, 1, 0], sizes = [8, 15, 128], strides = [1, 1, 1]} : vector<8x16x128xbf16> to vector<8x15x128xbf16>
      %35 = tpu.concatenate %34, %31 in 1 : vector<8x15x128xbf16>, vector<8x1x128xbf16> -> vector<8x16x128xbf16>
      %36 = tpu.concatenate %33, %30, %35 in 2 : vector<8x16x128xbf16>, vector<8x16x128xbf16>, vector<8x16x128xbf16> -> vector<8x16x384xbf16>
      %37 = vector.shape_cast %36 : vector<8x16x384xbf16> to vector<128x384xbf16>
      %c1 = arith.constant 1 : index
      %c0_30 = arith.constant 0 : index
      %c0_31 = arith.constant 0 : index
      %38 = vector.load %arg2[%c1, %c0_30, %c0_31] : memref<3x384x128xbf16, #tpu.memory_space<vmem>>, vector<1x384x128xbf16>
      %39 = vector.shape_cast %38 : vector<1x384x128xbf16> to vector<384x128xbf16>
      %cst_32 = arith.constant dense<0.000000e+00> : vector<128x128xf32>
      %40 = tpu.matmul %37, %39, %cst_32 {dimension_numbers = #tpu.dot_dimension_numbers<[1], [0], [0], [1], [0, 0, 1, 1], [], []>} : vector<128x384xbf16>, vector<384x128xbf16>, vector<128x128xf32> -> vector<128x128xf32>
      %41 = arith.addf %26, %40 : vector<128x128xf32>
      %c2_i32_33 = arith.constant 2 : i32
      %42 = arith.addi %10, %c2_i32_33 : i32
      %c0_34 = arith.constant 0 : index
      %43 = arith.index_cast %42 : i32 to index
      %c0_35 = arith.constant 0 : index
      %c0_36 = arith.constant 0 : index
      %44 = vector.load %arg1[%c0_34, %43, %c0_35, %c0_36] : memref<1x18x16x128xbf16, #tpu.memory_space<vmem>>, vector<1x8x16x128xbf16>
      %45 = vector.shape_cast %44 : vector<1x8x16x128xbf16> to vector<8x16x128xbf16>
      %cst_37 = arith.constant 0.000000e+00 : bf16
      %46 = vector.broadcast %cst_37 : bf16 to vector<8x1x128xbf16>
      %47 = vector.extract_strided_slice %45 {offsets = [0, 0, 0], sizes = [8, 15, 128], strides = [1, 1, 1]} : vector<8x16x128xbf16> to vector<8x15x128xbf16>
      %48 = tpu.concatenate %46, %47 in 1 : vector<8x1x128xbf16>, vector<8x15x128xbf16> -> vector<8x16x128xbf16>
      %49 = vector.extract_strided_slice %45 {offsets = [0, 1, 0], sizes = [8, 15, 128], strides = [1, 1, 1]} : vector<8x16x128xbf16> to vector<8x15x128xbf16>
      %50 = tpu.concatenate %49, %46 in 1 : vector<8x15x128xbf16>, vector<8x1x128xbf16> -> vector<8x16x128xbf16>
      %51 = tpu.concatenate %48, %45, %50 in 2 : vector<8x16x128xbf16>, vector<8x16x128xbf16>, vector<8x16x128xbf16> -> vector<8x16x384xbf16>
      %52 = vector.shape_cast %51 : vector<8x16x384xbf16> to vector<128x384xbf16>
      %c2 = arith.constant 2 : index
      %c0_38 = arith.constant 0 : index
      %c0_39 = arith.constant 0 : index
      %53 = vector.load %arg2[%c2, %c0_38, %c0_39] : memref<3x384x128xbf16, #tpu.memory_space<vmem>>, vector<1x384x128xbf16>
      %54 = vector.shape_cast %53 : vector<1x384x128xbf16> to vector<384x128xbf16>
      %cst_40 = arith.constant dense<0.000000e+00> : vector<128x128xf32>
      %55 = tpu.matmul %52, %54, %cst_40 {dimension_numbers = #tpu.dot_dimension_numbers<[1], [0], [0], [1], [0, 0, 1, 1], [], []>} : vector<128x384xbf16>, vector<384x128xbf16>, vector<128x128xf32> -> vector<128x128xf32>
      %56 = arith.addf %41, %55 : vector<128x128xf32>
      %57 = vector.broadcast %0 : vector<1x128xf32> to vector<128x128xf32>
      %58 = arith.addf %56, %57 : vector<128x128xf32>
      %cst_41 = arith.constant 0.000000e+00 : f32
      %59 = vector.broadcast %cst_41 : f32 to vector<128x128xf32>
      %60 = arith.maximumf %58, %59 : vector<128x128xf32>
      %61 = vector.shape_cast %60 : vector<128x128xf32> to vector<8x16x128xf32>
      %62 = arith.truncf %61 : vector<8x16x128xf32> to vector<8x16x128xbf16>
      %c1_i32_42 = arith.constant 1 : i32
      %63 = arith.addi %c1_i32_42, %10 : i32
      %64 = arith.index_cast %63 : i32 to index
      %c0_43 = arith.constant 0 : index
      %c0_44 = arith.constant 0 : index
      %65 = vector.load %arg7[%64, %c0_43, %c0_44] : memref<18x16x128xbf16, #tpu.memory_space<vmem>>, vector<8x16x128xbf16>
      tpu.vector_store %arg7[%64, %c0_43, %c0_44], %62 {strides = array<i32>} : memref<18x16x128xbf16, #tpu.memory_space<vmem>>, vector<8x16x128xbf16>,
    }
    %c2_i32_8 = arith.constant 2 : i32
    %c0_i32_9 = arith.constant 0 : i32
    %c2_i32_10 = arith.constant 2 : i32
    %6 = arith.addi %c0_i32_9, %c2_i32_10 : i32
    %c1_i32_11 = arith.constant 1 : i32
    scf.for %arg8 = %c0_i32_9 to %6 step %c1_i32_11  : i32 {
      %c1_i32_13 = arith.constant 1 : i32
      %7 = arith.muli %arg8, %c1_i32_13 : i32
      %c0_i32_14 = arith.constant 0 : i32
      %8 = arith.addi %c0_i32_14, %7 : i32
      %c8_i32 = arith.constant 8 : i32
      %9 = arith.muli %8, %c8_i32 : i32
      %10 = tpu.assume_multiple %9, 8 : i32
      %cst_15 = arith.constant 0.000000e+00 : f32
      %11 = vector.broadcast %cst_15 : f32 to vector<128x128xf32>
      %c0_i32_16 = arith.constant 0 : i32
      %12 = arith.addi %10, %c0_i32_16 : i32
      %13 = arith.index_cast %12 : i32 to index
      %c0_17 = arith.constant 0 : index
      %c0_18 = arith.constant 0 : index
      %14 = vector.load %arg7[%13, %c0_17, %c0_18] : memref<18x16x128xbf16, #tpu.memory_space<vmem>>, vector<8x16x128xbf16>
      %cst_19 = arith.constant 0.000000e+00 : bf16
      %15 = vector.broadcast %cst_19 : bf16 to vector<8x1x128xbf16>
      %16 = vector.extract_strided_slice %14 {offsets = [0, 0, 0], sizes = [8, 15, 128], strides = [1, 1, 1]} : vector<8x16x128xbf16> to vector<8x15x128xbf16>
      %17 = tpu.concatenate %15, %16 in 1 : vector<8x1x128xbf16>, vector<8x15x128xbf16> -> vector<8x16x128xbf16>
      %18 = vector.extract_strided_slice %14 {offsets = [0, 1, 0], sizes = [8, 15, 128], strides = [1, 1, 1]} : vector<8x16x128xbf16> to vector<8x15x128xbf16>
      %19 = tpu.concatenate %18, %15 in 1 : vector<8x15x128xbf16>, vector<8x1x128xbf16> -> vector<8x16x128xbf16>
      %20 = tpu.concatenate %17, %14, %19 in 2 : vector<8x16x128xbf16>, vector<8x16x128xbf16>, vector<8x16x128xbf16> -> vector<8x16x384xbf16>
      %21 = vector.shape_cast %20 : vector<8x16x384xbf16> to vector<128x384xbf16>
      %c0_20 = arith.constant 0 : index
      %c0_21 = arith.constant 0 : index
      %c0_22 = arith.constant 0 : index
      %22 = vector.load %arg4[%c0_20, %c0_21, %c0_22] : memref<3x384x128xbf16, #tpu.memory_space<vmem>>, vector<1x384x128xbf16>
      %23 = vector.shape_cast %22 : vector<1x384x128xbf16> to vector<384x128xbf16>
      %cst_23 = arith.constant dense<0.000000e+00> : vector<128x128xf32>
      %24 = tpu.matmul %21, %23, %cst_23 {dimension_numbers = #tpu.dot_dimension_numbers<[1], [0], [0], [1], [0, 0, 1, 1], [], []>} : vector<128x384xbf16>, vector<384x128xbf16>, vector<128x128xf32> -> vector<128x128xf32>
      %25 = arith.addf %11, %24 : vector<128x128xf32>
      %c1_i32_24 = arith.constant 1 : i32
      %26 = arith.addi %10, %c1_i32_24 : i32
      %27 = arith.index_cast %26 : i32 to index
      %c0_25 = arith.constant 0 : index
      %c0_26 = arith.constant 0 : index
      %28 = vector.load %arg7[%27, %c0_25, %c0_26] : memref<18x16x128xbf16, #tpu.memory_space<vmem>>, vector<8x16x128xbf16>
      %cst_27 = arith.constant 0.000000e+00 : bf16
      %29 = vector.broadcast %cst_27 : bf16 to vector<8x1x128xbf16>
      %30 = vector.extract_strided_slice %28 {offsets = [0, 0, 0], sizes = [8, 15, 128], strides = [1, 1, 1]} : vector<8x16x128xbf16> to vector<8x15x128xbf16>
      %31 = tpu.concatenate %29, %30 in 1 : vector<8x1x128xbf16>, vector<8x15x128xbf16> -> vector<8x16x128xbf16>
      %32 = vector.extract_strided_slice %28 {offsets = [0, 1, 0], sizes = [8, 15, 128], strides = [1, 1, 1]} : vector<8x16x128xbf16> to vector<8x15x128xbf16>
      %33 = tpu.concatenate %32, %29 in 1 : vector<8x15x128xbf16>, vector<8x1x128xbf16> -> vector<8x16x128xbf16>
      %34 = tpu.concatenate %31, %28, %33 in 2 : vector<8x16x128xbf16>, vector<8x16x128xbf16>, vector<8x16x128xbf16> -> vector<8x16x384xbf16>
      %35 = vector.shape_cast %34 : vector<8x16x384xbf16> to vector<128x384xbf16>
      %c1 = arith.constant 1 : index
      %c0_28 = arith.constant 0 : index
      %c0_29 = arith.constant 0 : index
      %36 = vector.load %arg4[%c1, %c0_28, %c0_29] : memref<3x384x128xbf16, #tpu.memory_space<vmem>>, vector<1x384x128xbf16>
      %37 = vector.shape_cast %36 : vector<1x384x128xbf16> to vector<384x128xbf16>
      %cst_30 = arith.constant dense<0.000000e+00> : vector<128x128xf32>
      %38 = tpu.matmul %35, %37, %cst_30 {dimension_numbers = #tpu.dot_dimension_numbers<[1], [0], [0], [1], [0, 0, 1, 1], [], []>} : vector<128x384xbf16>, vector<384x128xbf16>, vector<128x128xf32> -> vector<128x128xf32>
      %39 = arith.addf %25, %38 : vector<128x128xf32>
      %c2_i32_31 = arith.constant 2 : i32
      %40 = arith.addi %10, %c2_i32_31 : i32
      %41 = arith.index_cast %40 : i32 to index
      %c0_32 = arith.constant 0 : index
      %c0_33 = arith.constant 0 : index
      %42 = vector.load %arg7[%41, %c0_32, %c0_33] : memref<18x16x128xbf16, #tpu.memory_space<vmem>>, vector<8x16x128xbf16>
      %cst_34 = arith.constant 0.000000e+00 : bf16
      %43 = vector.broadcast %cst_34 : bf16 to vector<8x1x128xbf16>
      %44 = vector.extract_strided_slice %42 {offsets = [0, 0, 0], sizes = [8, 15, 128], strides = [1, 1, 1]} : vector<8x16x128xbf16> to vector<8x15x128xbf16>
      %45 = tpu.concatenate %43, %44 in 1 : vector<8x1x128xbf16>, vector<8x15x128xbf16> -> vector<8x16x128xbf16>
      %46 = vector.extract_strided_slice %42 {offsets = [0, 1, 0], sizes = [8, 15, 128], strides = [1, 1, 1]} : vector<8x16x128xbf16> to vector<8x15x128xbf16>
      %47 = tpu.concatenate %46, %43 in 1 : vector<8x15x128xbf16>, vector<8x1x128xbf16> -> vector<8x16x128xbf16>
      %48 = tpu.concatenate %45, %42, %47 in 2 : vector<8x16x128xbf16>, vector<8x16x128xbf16>, vector<8x16x128xbf16> -> vector<8x16x384xbf16>
      %49 = vector.shape_cast %48 : vector<8x16x384xbf16> to vector<128x384xbf16>
      %c2 = arith.constant 2 : index
      %c0_35 = arith.constant 0 : index
      %c0_36 = arith.constant 0 : index
      %50 = vector.load %arg4[%c2, %c0_35, %c0_36] : memref<3x384x128xbf16, #tpu.memory_space<vmem>>, vector<1x384x128xbf16>
      %51 = vector.shape_cast %50 : vector<1x384x128xbf16> to vector<384x128xbf16>
      %cst_37 = arith.constant dense<0.000000e+00> : vector<128x128xf32>
      %52 = tpu.matmul %49, %51, %cst_37 {dimension_numbers = #tpu.dot_dimension_numbers<[1], [0], [0], [1], [0, 0, 1, 1], [], []>} : vector<128x384xbf16>, vector<384x128xbf16>, vector<128x128xf32> -> vector<128x128xf32>
      %53 = arith.addf %39, %52 : vector<128x128xf32>
      %54 = vector.broadcast %1 : vector<1x128xf32> to vector<128x128xf32>
      %55 = arith.addf %53, %54 : vector<128x128xf32>
      %c1_i32_38 = arith.constant 1 : i32
      %56 = arith.addi %c1_i32_38, %10 : i32
      %c0_39 = arith.constant 0 : index
      %57 = arith.index_cast %56 : i32 to index
      %c0_40 = arith.constant 0 : index
      %c0_41 = arith.constant 0 : index
      %58 = vector.load %arg1[%c0_39, %57, %c0_40, %c0_41] : memref<1x18x16x128xbf16, #tpu.memory_space<vmem>>, vector<1x8x16x128xbf16>
      %59 = vector.shape_cast %58 : vector<1x8x16x128xbf16> to vector<8x16x128xbf16>
      %60 = vector.shape_cast %59 : vector<8x16x128xbf16> to vector<128x128xbf16>
      %61 = arith.extf %60 : vector<128x128xbf16> to vector<128x128xf32>
      %62 = arith.addf %55, %61 : vector<128x128xf32>
      %cst_42 = arith.constant 0.000000e+00 : f32
      %63 = vector.broadcast %cst_42 : f32 to vector<128x128xf32>
      %64 = arith.maximumf %62, %63 : vector<128x128xf32>
      %65 = vector.shape_cast %64 : vector<128x128xf32> to vector<8x16x128xf32>
      %66 = arith.truncf %65 : vector<8x16x128xf32> to vector<8x16x128xbf16>
      %c0_43 = arith.constant 0 : index
      %67 = arith.index_cast %10 : i32 to index
      %c0_44 = arith.constant 0 : index
      %c0_45 = arith.constant 0 : index
      %68 = vector.load %arg6[%c0_43, %67, %c0_44, %c0_45] : memref<1x16x16x128xbf16, #tpu.memory_space<vmem>>, vector<1x8x16x128xbf16>
      %69 = vector.shape_cast %68 : vector<1x8x16x128xbf16> to vector<8x16x128xbf16>
      %70 = vector.shape_cast %66 : vector<8x16x128xbf16> to vector<1x8x16x128xbf16>
      tpu.vector_store %arg6[%c0_43, %67, %c0_44, %c0_45], %70 {strides = array<i32>} : memref<1x16x16x128xbf16, #tpu.memory_space<vmem>>, vector<1x8x16x128xbf16>,
    }
    %c2_i32_12 = arith.constant 2 : i32
    return
  }
  func.func @transform_0(%arg0: i32) -> (i32, i32, i32, i32) {
    %c0_i32 = arith.constant 0 : i32
    %c0_i32_0 = arith.constant 0 : i32
    %c0_i32_1 = arith.constant 0 : i32
    %c0_i32_2 = arith.constant 0 : i32
    return %arg0, %c0_i32, %c0_i32_0, %c0_i32_1 : i32, i32, i32, i32
  }
  func.func @transform_1(%arg0: i32) -> (i32, i32, i32) {
    %c0_i32 = arith.constant 0 : i32
    %c0_i32_0 = arith.constant 0 : i32
    %c0_i32_1 = arith.constant 0 : i32
    %c0_i32_2 = arith.constant 0 : i32
    return %c0_i32, %c0_i32_0, %c0_i32_1 : i32, i32, i32
  }
  func.func @transform_2(%arg0: i32) -> (i32, i32) {
    %c0_i32 = arith.constant 0 : i32
    %c0_i32_0 = arith.constant 0 : i32
    %c0_i32_1 = arith.constant 0 : i32
    return %c0_i32, %c0_i32_0 : i32, i32
  }
  func.func @transform_3(%arg0: i32) -> (i32, i32, i32) {
    %c0_i32 = arith.constant 0 : i32
    %c0_i32_0 = arith.constant 0 : i32
    %c0_i32_1 = arith.constant 0 : i32
    %c0_i32_2 = arith.constant 0 : i32
    return %c0_i32, %c0_i32_0, %c0_i32_1 : i32, i32, i32
  }
  func.func @transform_4(%arg0: i32) -> (i32, i32) {
    %c0_i32 = arith.constant 0 : i32
    %c0_i32_0 = arith.constant 0 : i32
    %c0_i32_1 = arith.constant 0 : i32
    return %c0_i32, %c0_i32_0 : i32, i32
  }
  func.func @transform_5(%arg0: i32) -> (i32, i32, i32, i32) {
    %c0_i32 = arith.constant 0 : i32
    %c0_i32_0 = arith.constant 0 : i32
    %c0_i32_1 = arith.constant 0 : i32
    %c0_i32_2 = arith.constant 0 : i32
    return %arg0, %c0_i32, %c0_i32_0, %c0_i32_1 : i32, i32, i32, i32
  }
}

</mosaic_0001>

<llo_original>
// kernel: basic_block_forward.1
$region0: #{basic_block_forward.1}
  #allocation0 [shape = 'u32[]', space=smem, size = 0x4, offset = 0x4, fixed_abs, tag = 'smem constant byte address 0x4 - core index']
  #allocation1 [shape = 'u32[144,128]{1,0:T(1,128)}', space=vmem, size = 0x12000, scoped, tag = 'internal scratch']
  #allocation2 [shape = 'bf16[18,16,128]{2,1,0:T(16,128)(2,1)}', space=vmem, size = 0x12000, scoped, tag = 'scratch operand']
  %s0 = inlined_call_operand.vmem [shape: bf16[2,18,16,128], index: 0, kind: input, shape index: {}]
  %s1 = inlined_call_operand.vmem [shape: bf16[3,384,128], index: 1, kind: input, shape index: {}]
  %s2 = inlined_call_operand.vmem [shape: f32[1,128], index: 2, kind: input, shape index: {}]
  %s3 = inlined_call_operand.vmem [shape: bf16[3,384,128], index: 3, kind: input, shape index: {}]
  %s4 = inlined_call_operand.vmem [shape: f32[1,128], index: 4, kind: input, shape index: {}]
  %s5 = inlined_call_operand.vmem [shape: bf16[2,16,16,128], index: 5, kind: output, shape index: {}]
  %s6 = sld [smem:[#allocation0]]
  $region67: #{basic_block_forward.1} parent=0
    _
  %s8 = ssub.s32 1, %s6
  %s9 = scalar_select 0, %s8, %s6
  loop: start=0, step=1, limit=4
  $region2: #{basic_block_forward.1} parent=0 // loop_pre_header
    _
  $region3: #{basic_block_forward.1} parent=0 // loop_header
    %s11 = sphi 0, %s15
    %p12 = scmp.ge.s32.totalorder %s11, 4
    %s21 = sphi 0, %s23
    %s24 = sphi 0, %s21
    %s25 = sphi 0, %s24
    %s41 = sphi 0, %s25
    %s45 = sphi 0, %s45
    %s47 = sphi 0, %s45
    %s48 = sphi 0, %s47
    %s62 = sphi 0, %s48
    %s66 = sphi 0, %s66
    %s68 = sphi 0, %s66
    %s69 = sphi 0, %s68
    %s83 = sphi 0, %s69
    %s87 = sphi 0, %s87
    %s89 = sphi 0, %s87
    %s90 = sphi 0, %s89
    %s104 = sphi 0, %s90
    %s108 = sphi 0, %s108
    %s110 = sphi 0, %s108
    %s111 = sphi 0, %s110
    %s125 = sphi 0, %s111
    %s131 = sphi 0, %s133
    %s134 = sphi 0, %s131
    %s135 = sphi 0, %s134
    %s151 = sphi 0, %s135
  $region4: #{basic_block_forward.1} parent=0 // loop_header_branch
    %14 = sbr.rel (%p12) target = $region8
  $region5: #{basic_block_forward.1} parent=0 // loop_body
    %s16 = ssub.s32 %s11, 1
    %s17 = ssub.s32 %s11, 2
    %s18 = sadd.s32 %s11, 1
    %s19 = ssub.s32 %s11, %s18
    %p20 = scmp.eq.s32.totalorder %s19, 0
    %s22 = sadd.s32 %s21, 1
    %s23 = scalar_select %p20, %s21, %s22
    %p26 = pneg %p20
    %p27 = scmp.eq.s32.totalorder %s11, 1
    %p28 = por %p26, %p27
    %p29 = scmp.ne.s32.totalorder %s21, %s24
    %p30 = scmp.eq.s32.totalorder %s11, 0
    %p31 = por %p29, %p30
    %p32 = scmp.ne.s32.totalorder %s21, %s24
    %p33 = scmp.eq.s32.totalorder %s16, 1
    %p34 = por %p32, %p33
    %p35 = scmp.ne.s32.totalorder %s24, %s25
    %p36 = scmp.eq.s32.totalorder %s16, 0
    %p37 = por %p35, %p36
    %p38 = scmp.ne.s32.totalorder %s24, %s25
    %p39 = scmp.eq.s32.totalorder %s17, 1
    %p40 = por %p38, %p39
    %p42 = scmp.ne.s32.totalorder %s25, %s41
    %p43 = scmp.eq.s32.totalorder %s17, 0
    %p44 = por %p42, %p43
    %s46 = sadd.s32 %s45, 1
    %p49 = scmp.eq.s32.totalorder %s11, 1
    %p50 = scmp.ne.s32.totalorder %s45, %s47
    %p51 = scmp.eq.s32.totalorder %s11, 0
    %p52 = por %p50, %p51
    %p53 = scmp.ne.s32.totalorder %s45, %s47
    %p54 = scmp.eq.s32.totalorder %s16, 1
    %p55 = por %p53, %p54
    %p56 = scmp.ne.s32.totalorder %s47, %s48
    %p57 = scmp.eq.s32.totalorder %s16, 0
    %p58 = por %p56, %p57
    %p59 = scmp.ne.s32.totalorder %s47, %s48
    %p60 = scmp.eq.s32.totalorder %s17, 1
    %p61 = por %p59, %p60
    %p63 = scmp.ne.s32.totalorder %s48, %s62
    %p64 = scmp.eq.s32.totalorder %s17, 0
    %p65 = por %p63, %p64
    %s67 = sadd.s32 %s66, 1
    %p70 = scmp.eq.s32.totalorder %s11, 1
    %p71 = scmp.ne.s32.totalorder %s66, %s68
    %p72 = scmp.eq.s32.totalorder %s11, 0
    %p73 = por %p71, %p72
    %p74 = scmp.ne.s32.totalorder %s66, %s68
    %p75 = scmp.eq.s32.totalorder %s16, 1
    %p76 = por %p74, %p75
    %p77 = scmp.ne.s32.totalorder %s68, %s69
    %p78 = scmp.eq.s32.totalorder %s16, 0
    %p79 = por %p77, %p78
    %p80 = scmp.ne.s32.totalorder %s68, %s69
    %p81 = scmp.eq.s32.totalorder %s17, 1
    %p82 = por %p80, %p81
    %p84 = scmp.ne.s32.totalorder %s69, %s83
    %p85 = scmp.eq.s32.totalorder %s17, 0
    %p86 = por %p84, %p85
    %s88 = sadd.s32 %s87, 1
    %p91 = scmp.eq.s32.totalorder %s11, 1
    %p92 = scmp.ne.s32.totalorder %s87, %s89
    %p93 = scmp.eq.s32.totalorder %s11, 0
    %p94 = por %p92, %p93
    %p95 = scmp.ne.s32.totalorder %s87, %s89
    %p96 = scmp.eq.s32.totalorder %s16, 1
    %p97 = por %p95, %p96
    %p98 = scmp.ne.s32.totalorder %s89, %s90
    %p99 = scmp.eq.s32.totalorder %s16, 0
    %p100 = por %p98, %p99
    %p101 = scmp.ne.s32.totalorder %s89, %s90
    %p102 = scmp.eq.s32.totalorder %s17, 1
    %p103 = por %p101, %p102
    %p105 = scmp.ne.s32.totalorder %s90, %s104
    %p106 = scmp.eq.s32.totalorder %s17, 0
    %p107 = por %p105, %p106
    %s109 = sadd.s32 %s108, 1
    %p112 = scmp.eq.s32.totalorder %s11, 1
    %p113 = scmp.ne.s32.totalorder %s108, %s110
    %p114 = scmp.eq.s32.totalorder %s11, 0
    %p115 = por %p113, %p114
    %p116 = scmp.ne.s32.totalorder %s108, %s110
    %p117 = scmp.eq.s32.totalorder %s16, 1
    %p118 = por %p116, %p117
    %p119 = scmp.ne.s32.totalorder %s110, %s111
    %p120 = scmp.eq.s32.totalorder %s16, 0
    %p121 = por %p119, %p120
    %p122 = scmp.ne.s32.totalorder %s110, %s111
    %p123 = scmp.eq.s32.totalorder %s17, 1
    %p124 = por %p122, %p123
    %p126 = scmp.ne.s32.totalorder %s111, %s125
    %p127 = scmp.eq.s32.totalorder %s17, 0
    %p128 = por %p126, %p127
    %s129 = ssub.s32 %s11, %s18
    %p130 = scmp.eq.s32.totalorder %s129, 0
    %s132 = sadd.s32 %s131, 1
    %s133 = scalar_select %p130, %s131, %s132
    %p136 = pneg %p130
    %p137 = scmp.eq.s32.totalorder %s11, 1
    %p138 = por %p136, %p137
    %p139 = scmp.ne.s32.totalorder %s131, %s134
    %p140 = scmp.eq.s32.totalorder %s11, 0
    %p141 = por %p139, %p140
    %p142 = scmp.ne.s32.totalorder %s131, %s134
    %p143 = scmp.eq.s32.totalorder %s16, 1
    %p144 = por %p142, %p143
    %p145 = scmp.ne.s32.totalorder %s134, %s135
    %p146 = scmp.eq.s32.totalorder %s16, 0
    %p147 = por %p145, %p146
    %p148 = scmp.ne.s32.totalorder %s134, %s135
    %p149 = scmp.eq.s32.totalorder %s17, 1
    %p150 = por %p148, %p149
    %p152 = scmp.ne.s32.totalorder %s135, %s151
    %p153 = scmp.eq.s32.totalorder %s17, 0
    %p154 = por %p152, %p153
    %p155 = scmp.le.s32.totalorder 1, %s11
    %p156 = scmp.lt.s32.totalorder %s11, 3
    %p157 = pnand %p155, %p156
    %p158 = pneg %p157
    // Predicated region
    $region9: #{basic_block_forward.1} parent=5 // pred_check
      _
    $region10: #{basic_block_forward.1} parent=5 // pred_check_branch
      %160 = sbr.rel (%p157) target = $region12
    $region11: #{basic_block_forward.1} parent=5 // pred_region
      %s161 = ssub.s32 %s11, 1
      // Predicated region
      $region13: #{basic_block_forward.1} parent=11 // pred_check
        %p162 = pneg %p58
      $region14: #{basic_block_forward.1} parent=11 // pred_check_branch
        %164 = sbr.rel (%p162) target = $region16
      $region15: #{basic_block_forward.1} parent=11 // pred_region
        _
      $region16: #{basic_block_forward.1} parent=11 // pred_fallthru
        _
      // Predicated region
      $region17: #{basic_block_forward.1} parent=11 // pred_check
        %p165 = pneg %p79
      $region18: #{basic_block_forward.1} parent=11 // pred_check_branch
        %167 = sbr.rel (%p165) target = $region20
      $region19: #{basic_block_forward.1} parent=11 // pred_region
        _
      $region20: #{basic_block_forward.1} parent=11 // pred_fallthru
        _
      // Predicated region
      $region21: #{basic_block_forward.1} parent=11 // pred_check
        %p168 = pneg %p100
      $region22: #{basic_block_forward.1} parent=11 // pred_check_branch
        %170 = sbr.rel (%p168) target = $region24
      $region23: #{basic_block_forward.1} parent=11 // pred_region
        _
      $region24: #{basic_block_forward.1} parent=11 // pred_fallthru
        _
      // Predicated region
      $region25: #{basic_block_forward.1} parent=11 // pred_check
        %p171 = pneg %p121
      $region26: #{basic_block_forward.1} parent=11 // pred_check_branch
        %173 = sbr.rel (%p171) target = $region28
      $region27: #{basic_block_forward.1} parent=11 // pred_region
        _
      $region28: #{basic_block_forward.1} parent=11 // pred_fallthru
        _
    $region12: #{basic_block_forward.1} parent=5 // pred_fallthru
      _
    %p174 = scmp.lt.s32.totalorder %s11, 2
    // Predicated region
    $region29: #{basic_block_forward.1} parent=5 // pred_check
      %p175 = pneg %p174
    $region30: #{basic_block_forward.1} parent=5 // pred_check_branch
      %177 = sbr.rel (%p175) target = $region32
    $region31: #{basic_block_forward.1} parent=5 // pred_region
      // Predicated region
      $region33: #{basic_block_forward.1} parent=31 // pred_check
        %p178 = pneg %p31
      $region34: #{basic_block_forward.1} parent=31 // pred_check_branch
        %180 = sbr.rel (%p178) target = $region36
      $region35: #{basic_block_forward.1} parent=31 // pred_region
        %p181 = scmp.lt.s32.totalorder %s11, 1
        %s182 = scalar_select %p181, %s11, 1
        %s183 = smul.addr %s182, 36
        %s184 = smul.addr %s183, 4
        %s185 = scalar_lea.vmem %s0, %s184
      $region36: #{basic_block_forward.1} parent=31 // pred_fallthru
        _
    $region32: #{basic_block_forward.1} parent=5 // pred_fallthru
      _
    %p186 = scmp.le.s32.totalorder 1, %s11
    %p187 = scmp.lt.s32.totalorder %s11, 3
    %p188 = pnand %p186, %p187
    %p189 = pneg %p188
    // Predicated region
    $region37: #{basic_block_forward.1} parent=5 // pred_check
      _
    $region38: #{basic_block_forward.1} parent=5 // pred_check_branch
      %191 = sbr.rel (%p188) target = $region40
    $region39: #{basic_block_forward.1} parent=5 // pred_region
      %s192 = ssub.s32 %s11, 1
      %p193 = scmp.lt.s32.totalorder %s16, 1
      %s194 = scalar_select %p193, %s16, 1
      %s195 = smul.addr %s194, 36
      %s196 = smul.addr %s195, 4
      %s197 = scalar_lea.vmem %s0, %s196
      %p198 = pneg %p37
      %p199 = pneg %p34
      %p200 = pneg %p58
      %p201 = pneg %p55
      %p202 = pneg %p79
      %p203 = pneg %p76
      %p204 = pneg %p100
      %p205 = pneg %p97
      %p206 = pneg %p121
      %p207 = pneg %p118
      %p208 = pneg %p147
      %p209 = pneg %p144
      %p210 = scmp.lt.s32.totalorder %s16, 1
      %s211 = scalar_select %p210, %s16, 1
      %s212 = smul.addr %s211, 32
      %s213 = smul.addr %s212, 4
      %s214 = scalar_lea.vmem %s5, %s213
      %p215 = scmp.lt.s32.totalorder %s16, 1
      %s216 = scalar_select %p215, %s16, 1
      %s217 = smul.addr %s216, 36
      %s218 = smul.addr %s217, 4
      %s219 = scalar_lea.vmem %s0, %s218
      %p220 = scmp.lt.s32.totalorder %s16, 1
      %s221 = scalar_select %p220, %s16, 1
      %s222 = smul.addr %s221, 32
      %s223 = smul.addr %s222, 4
      %s224 = scalar_lea.vmem %s5, %s223
      %v226 = vld [vmem:[%s2] sm:$0x1]
      %v227 = vld [vmem:[%s4] sm:$0x1]
      %228 = vst [vmem:[#allocation2] sm:$0xff] 0
      %s229 = scalar_lea.vmem [#allocation2], 136
      %230 = vst [vmem:[%s229] sm:$0xff] 0
      loop: start=0, step=1, limit=2
      $region41: #{basic_block_forward.1} parent=39 // loop_pre_header
        _
      $region42: #{basic_block_forward.1} parent=39 // loop_header
        %s232 = sphi 0, %s236
        %p233 = scmp.ge.s32.totalorder %s232, 2
      $region43: #{basic_block_forward.1} parent=39 // loop_header_branch
        %235 = sbr.rel (%p233) target = $region47
      $region44: #{basic_block_forward.1} parent=39 // loop_body
        %s237 = smul.u32 %s232, 8
        %s238 = smul.u32 %s237, 2
        %s239 = smul.addr %s238, 4
        %s240 = scalar_lea.vmem %s219, %s239
        %v241 = vld [vmem:[%s240] sm:$0xf]
        %v242 = vld [vmem:[%s240 + $0x4] sm:$0xf]
        %v243 = vld [vmem:[%s240 + $0x8] sm:$0xf]
        %v244 = vld [vmem:[%s240 + $0xc] sm:$0xf]
        %v245 = vld [vmem:[%s240 + $0x10] sm:$0xf]
        %v246 = vld [vmem:[%s240 + $0x14] sm:$0xf]
        %v247 = vld [vmem:[%s240 + $0x18] sm:$0xf]
        %v248 = vld [vmem:[%s240 + $0x1c] sm:$0xf]
        %v249 = vld [vmem:[%s240 + $0x20] sm:$0xf]
        %v250 = vld [vmem:[%s240 + $0x24] sm:$0xf]
        %v251 = vld [vmem:[%s240 + $0x28] sm:$0xf]
        %v252 = vld [vmem:[%s240 + $0x2c] sm:$0xf]
        %v253 = vld [vmem:[%s240 + $0x30] sm:$0xf]
        %v254 = vld [vmem:[%s240 + $0x34] sm:$0xf]
        %v255 = vld [vmem:[%s240 + $0x38] sm:$0xf]
        %v256 = vld [vmem:[%s240 + $0x3c] sm:$0xf]
        %v273 = vunpack.c.l.b16 %v241
        %v274 = vunpack.c.l.b16 %v242
        %v275 = vunpack.c.l.b16 %v243
        %v276 = vunpack.c.l.b16 %v244
        %v277 = vunpack.c.l.b16 %v245
        %v278 = vunpack.c.l.b16 %v246
        %v279 = vunpack.c.l.b16 %v247
        %v280 = vunpack.c.l.b16 %v248
        %v281 = vunpack.c.l.b16 %v249
        %v282 = vunpack.c.l.b16 %v250
        %v283 = vunpack.c.l.b16 %v251
        %v284 = vunpack.c.l.b16 %v252
        %v285 = vunpack.c.l.b16 %v253
        %v286 = vunpack.c.l.b16 %v254
        %v287 = vunpack.c.l.b16 %v255
        %v288 = vunpack.c.l.b16 %v256
        %v289 = vpack.c.b16 %v274, %v273
        %v290 = vpack.c.b16 %v276, %v275
        %v291 = vpack.c.b16 %v278, %v277
        %v292 = vpack.c.b16 %v280, %v279
        %v293 = vpack.c.b16 %v282, %v281
        %v294 = vpack.c.b16 %v284, %v283
        %v295 = vpack.c.b16 %v286, %v285
        %v296 = vpack.c.b16 %v288, %v287
        %v298 = vshrl.u32 %v289, 16
        %v300 = vrot.slane %v298, 7
        %v301 = vshll.u32 %v289, 16
        %v303 = vor.u32 %v300, %v301
        %v305 = vshrl.u32 %v290, 16
        %v307 = vrot.slane %v305, 7
        %v308 = vshll.u32 %v290, 16
        %v310 = vor.u32 %v307, %v308
        %v312 = vshrl.u32 %v291, 16
        %v314 = vrot.slane %v312, 7
        %v315 = vshll.u32 %v291, 16
        %v317 = vor.u32 %v314, %v315
        %v319 = vshrl.u32 %v292, 16
        %v321 = vrot.slane %v319, 7
        %v322 = vshll.u32 %v292, 16
        %v324 = vor.u32 %v321, %v322
        %v326 = vshrl.u32 %v293, 16
        %v328 = vrot.slane %v326, 7
        %v329 = vshll.u32 %v293, 16
        %v331 = vor.u32 %v328, %v329
        %v333 = vshrl.u32 %v294, 16
        %v335 = vrot.slane %v333, 7
        %v336 = vshll.u32 %v294, 16
        %v338 = vor.u32 %v335, %v336
        %v340 = vshrl.u32 %v295, 16
        %v342 = vrot.slane %v340, 7
        %v343 = vshll.u32 %v295, 16
        %v345 = vor.u32 %v342, %v343
        %v347 = vshrl.u32 %v296, 16
        %v349 = vrot.slane %v347, 7
        %v350 = vshll.u32 %v296, 16
        %v352 = vor.u32 %v349, %v350
        %vm361 = vcmask 1040384
        %vm362 = vsmask.f32 256
        %vm363 = vmand %vm361, %vm362
        %v364 = vsel %vm363, 0, %v303
        %v365 = vsel %vm363, 0, %v310
        %v366 = vsel %vm363, 0, %v317
        %v367 = vsel %vm363, 0, %v324
        %v368 = vsel %vm363, 0, %v331
        %v369 = vsel %vm363, 0, %v338
        %v370 = vsel %vm363, 0, %v345
        %v371 = vsel %vm363, 0, %v352
        %v372 = vrot.slane %v301, 1
        %v373 = vor.u32 %v298, %v372
        %v374 = vrot.slane %v308, 1
        %v375 = vor.u32 %v305, %v374
        %v376 = vrot.slane %v315, 1
        %v377 = vor.u32 %v312, %v376
        %v378 = vrot.slane %v322, 1
        %v379 = vor.u32 %v319, %v378
        %v380 = vrot.slane %v329, 1
        %v381 = vor.u32 %v326, %v380
        %v382 = vrot.slane %v336, 1
        %v383 = vor.u32 %v333, %v382
        %v384 = vrot.slane %v343, 1
        %v385 = vor.u32 %v340, %v384
        %v386 = vrot.slane %v350, 1
        %v387 = vor.u32 %v347, %v386
        %vm396 = vcmask 1047552
        %vm397 = vsmask.f32 7424
        %vm398 = vmand %vm396, %vm397
        %v399 = vsel %vm398, %v373, 0
        %v400 = vsel %vm398, %v375, 0
        %v401 = vsel %vm398, %v377, 0
        %v402 = vsel %vm398, %v379, 0
        %v403 = vsel %vm398, %v381, 0
        %v404 = vsel %vm398, %v383, 0
        %v405 = vsel %vm398, %v385, 0
        %v406 = vsel %vm398, %v387, 0
        %v415 = vld [vmem:[%s1] sm:$0xf]
        %v416 = vld [vmem:[%s1 + $0x4] sm:$0xf]
        %v417 = vld [vmem:[%s1 + $0x8] sm:$0xf]
        %v418 = vld [vmem:[%s1 + $0xc] sm:$0xf]
        %v419 = vld [vmem:[%s1 + $0x10] sm:$0xf]
        %v420 = vld [vmem:[%s1 + $0x14] sm:$0xf]
        %v421 = vld [vmem:[%s1 + $0x18] sm:$0xf]
        %v422 = vld [vmem:[%s1 + $0x1c] sm:$0xf]
        %v423 = vld [vmem:[%s1 + $0x20] sm:$0xf]
        %v424 = vld [vmem:[%s1 + $0x24] sm:$0xf]
        %v425 = vld [vmem:[%s1 + $0x28] sm:$0xf]
        %v426 = vld [vmem:[%s1 + $0x2c] sm:$0xf]
        %v427 = vld [vmem:[%s1 + $0x30] sm:$0xf]
        %v428 = vld [vmem:[%s1 + $0x34] sm:$0xf]
        %v429 = vld [vmem:[%s1 + $0x38] sm:$0xf]
        %v430 = vld [vmem:[%s1 + $0x3c] sm:$0xf]
        %v431 = vld [vmem:[%s1 + $0x40] sm:$0xf]
        %v432 = vld [vmem:[%s1 + $0x44] sm:$0xf]
        %v433 = vld [vmem:[%s1 + $0x48] sm:$0xf]
        %v434 = vld [vmem:[%s1 + $0x4c] sm:$0xf]
        %v435 = vld [vmem:[%s1 + $0x50] sm:$0xf]
        %v436 = vld [vmem:[%s1 + $0x54] sm:$0xf]
        %v437 = vld [vmem:[%s1 + $0x58] sm:$0xf]
        %v438 = vld [vmem:[%s1 + $0x5c] sm:$0xf]
        %v439 = vld [vmem:[%s1 + $0x60] sm:$0xf]
        %v440 = vld [vmem:[%s1 + $0x64] sm:$0xf]
        %v441 = vld [vmem:[%s1 + $0x68] sm:$0xf]
        %v442 = vld [vmem:[%s1 + $0x6c] sm:$0xf]
        %v443 = vld [vmem:[%s1 + $0x70] sm:$0xf]
        %v444 = vld [vmem:[%s1 + $0x74] sm:$0xf]
        %v445 = vld [vmem:[%s1 + $0x78] sm:$0xf]
        %v446 = vld [vmem:[%s1 + $0x7c] sm:$0xf]
        %v447 = vld [vmem:[%s1 + $0x80] sm:$0xf]
        %v448 = vld [vmem:[%s1 + $0x84] sm:$0xf]
        %v449 = vld [vmem:[%s1 + $0x88] sm:$0xf]
        %v450 = vld [vmem:[%s1 + $0x8c] sm:$0xf]
        %v451 = vld [vmem:[%s1 + $0x90] sm:$0xf]
        %v452 = vld [vmem:[%s1 + $0x94] sm:$0xf]
        %v453 = vld [vmem:[%s1 + $0x98] sm:$0xf]
        %v454 = vld [vmem:[%s1 + $0x9c] sm:$0xf]
        %v455 = vld [vmem:[%s1 + $0xa0] sm:$0xf]
        %v456 = vld [vmem:[%s1 + $0xa4] sm:$0xf]
        %v457 = vld [vmem:[%s1 + $0xa8] sm:$0xf]
        %v458 = vld [vmem:[%s1 + $0xac] sm:$0xf]
        %v459 = vld [vmem:[%s1 + $0xb0] sm:$0xf]
        %v460 = vld [vmem:[%s1 + $0xb4] sm:$0xf]
        %v461 = vld [vmem:[%s1 + $0xb8] sm:$0xf]
        %v462 = vld [vmem:[%s1 + $0xbc] sm:$0xf]
        %s463 = sadd.s32 %s237, 1
        %s464 = smul.u32 %s463, 2
        %s465 = smul.addr %s464, 4
        %s466 = scalar_lea.vmem %s219, %s465
        %v467 = vld [vmem:[%s466] sm:$0xf]
        %v468 = vld [vmem:[%s466 + $0x4] sm:$0xf]
        %v469 = vld [vmem:[%s466 + $0x8] sm:$0xf]
        %v470 = vld [vmem:[%s466 + $0xc] sm:$0xf]
        %v471 = vld [vmem:[%s466 + $0x10] sm:$0xf]
        %v472 = vld [vmem:[%s466 + $0x14] sm:$0xf]
        %v473 = vld [vmem:[%s466 + $0x18] sm:$0xf]
        %v474 = vld [vmem:[%s466 + $0x1c] sm:$0xf]
        %v475 = vld [vmem:[%s466 + $0x20] sm:$0xf]
        %v476 = vld [vmem:[%s466 + $0x24] sm:$0xf]
        %v477 = vld [vmem:[%s466 + $0x28] sm:$0xf]
        %v478 = vld [vmem:[%s466 + $0x2c] sm:$0xf]
        %v479 = vld [vmem:[%s466 + $0x30] sm:$0xf]
        %v480 = vld [vmem:[%s466 + $0x34] sm:$0xf]
        %v481 = vld [vmem:[%s466 + $0x38] sm:$0xf]
        %v482 = vld [vmem:[%s466 + $0x3c] sm:$0xf]
        %v499 = vunpack.c.l.b16 %v467
        %v500 = vunpack.c.l.b16 %v468
        %v501 = vunpack.c.l.b16 %v469
        %v502 = vunpack.c.l.b16 %v470
        %v503 = vunpack.c.l.b16 %v471
        %v504 = vunpack.c.l.b16 %v472
        %v505 = vunpack.c.l.b16 %v473
        %v506 = vunpack.c.l.b16 %v474
        %v507 = vunpack.c.l.b16 %v475
        %v508 = vunpack.c.l.b16 %v476
        %v509 = vunpack.c.l.b16 %v477
        %v510 = vunpack.c.l.b16 %v478
        %v511 = vunpack.c.l.b16 %v479
        %v512 = vunpack.c.l.b16 %v480
        %v513 = vunpack.c.l.b16 %v481
        %v514 = vunpack.c.l.b16 %v482
        %v515 = vpack.c.b16 %v500, %v499
        %v516 = vpack.c.b16 %v502, %v501
        %v517 = vpack.c.b16 %v504, %v503
        %v518 = vpack.c.b16 %v506, %v505
        %v519 = vpack.c.b16 %v508, %v507
        %v520 = vpack.c.b16 %v510, %v509
        %v521 = vpack.c.b16 %v512, %v511
        %v522 = vpack.c.b16 %v514, %v513
        %v524 = vshrl.u32 %v515, 16
        %v526 = vrot.slane %v524, 7
        %v527 = vshll.u32 %v515, 16
        %v529 = vor.u32 %v526, %v527
        %v531 = vshrl.u32 %v516, 16
        %v533 = vrot.slane %v531, 7
        %v534 = vshll.u32 %v516, 16
        %v536 = vor.u32 %v533, %v534
        %v538 = vshrl.u32 %v517, 16
        %v540 = vrot.slane %v538, 7
        %v541 = vshll.u32 %v517, 16
        %v543 = vor.u32 %v540, %v541
        %v545 = vshrl.u32 %v518, 16
        %v547 = vrot.slane %v545, 7
        %v548 = vshll.u32 %v518, 16
        %v550 = vor.u32 %v547, %v548
        %v552 = vshrl.u32 %v519, 16
        %v554 = vrot.slane %v552, 7
        %v555 = vshll.u32 %v519, 16
        %v557 = vor.u32 %v554, %v555
        %v559 = vshrl.u32 %v520, 16
        %v561 = vrot.slane %v559, 7
        %v562 = vshll.u32 %v520, 16
        %v564 = vor.u32 %v561, %v562
        %v566 = vshrl.u32 %v521, 16
        %v568 = vrot.slane %v566, 7
        %v569 = vshll.u32 %v521, 16
        %v571 = vor.u32 %v568, %v569
        %v573 = vshrl.u32 %v522, 16
        %v575 = vrot.slane %v573, 7
        %v576 = vshll.u32 %v522, 16
        %v578 = vor.u32 %v575, %v576
        %v587 = vsel %vm363, 0, %v529
        %v588 = vsel %vm363, 0, %v536
        %v589 = vsel %vm363, 0, %v543
        %v590 = vsel %vm363, 0, %v550
        %v591 = vsel %vm363, 0, %v557
        %v592 = vsel %vm363, 0, %v564
        %v593 = vsel %vm363, 0, %v571
        %v594 = vsel %vm363, 0, %v578
        %v595 = vrot.slane %v527, 1
        %v596 = vor.u32 %v524, %v595
        %v597 = vrot.slane %v534, 1
        %v598 = vor.u32 %v531, %v597
        %v599 = vrot.slane %v541, 1
        %v600 = vor.u32 %v538, %v599
        %v601 = vrot.slane %v548, 1
        %v602 = vor.u32 %v545, %v601
        %v603 = vrot.slane %v555, 1
        %v604 = vor.u32 %v552, %v603
        %v605 = vrot.slane %v562, 1
        %v606 = vor.u32 %v559, %v605
        %v607 = vrot.slane %v569, 1
        %v608 = vor.u32 %v566, %v607
        %v609 = vrot.slane %v576, 1
        %v610 = vor.u32 %v573, %v609
        %v619 = vsel %vm398, %v596, 0
        %v620 = vsel %vm398, %v598, 0
        %v621 = vsel %vm398, %v600, 0
        %v622 = vsel %vm398, %v602, 0
        %v623 = vsel %vm398, %v604, 0
        %v624 = vsel %vm398, %v606, 0
        %v625 = vsel %vm398, %v608, 0
        %v626 = vsel %vm398, %v610, 0
        %s635 = scalar_lea.vmem %s1, 192
        %v636 = vld [vmem:[%s635] sm:$0xf]
        %v637 = vld [vmem:[%s635 + $0x4] sm:$0xf]
        %v638 = vld [vmem:[%s635 + $0x8] sm:$0xf]
        %v639 = vld [vmem:[%s635 + $0xc] sm:$0xf]
        %v640 = vld [vmem:[%s635 + $0x10] sm:$0xf]
        %v641 = vld [vmem:[%s635 + $0x14] sm:$0xf]
        %v642 = vld [vmem:[%s635 + $0x18] sm:$0xf]
        %v643 = vld [vmem:[%s635 + $0x1c] sm:$0xf]
        %v644 = vld [vmem:[%s635 + $0x20] sm:$0xf]
        %v645 = vld [vmem:[%s635 + $0x24] sm:$0xf]
        %v646 = vld [vmem:[%s635 + $0x28] sm:$0xf]
        %v647 = vld [vmem:[%s635 + $0x2c] sm:$0xf]
        %v648 = vld [vmem:[%s635 + $0x30] sm:$0xf]
        %v649 = vld [vmem:[%s635 + $0x34] sm:$0xf]
        %v650 = vld [vmem:[%s635 + $0x38] sm:$0xf]
        %v651 = vld [vmem:[%s635 + $0x3c] sm:$0xf]
        %v652 = vld [vmem:[%s635 + $0x40] sm:$0xf]
        %v653 = vld [vmem:[%s635 + $0x44] sm:$0xf]
        %v654 = vld [vmem:[%s635 + $0x48] sm:$0xf]
        %v655 = vld [vmem:[%s635 + $0x4c] sm:$0xf]
        %v656 = vld [vmem:[%s635 + $0x50] sm:$0xf]
        %v657 = vld [vmem:[%s635 + $0x54] sm:$0xf]
        %v658 = vld [vmem:[%s635 + $0x58] sm:$0xf]
        %v659 = vld [vmem:[%s635 + $0x5c] sm:$0xf]
        %v660 = vld [vmem:[%s635 + $0x60] sm:$0xf]
        %v661 = vld [vmem:[%s635 + $0x64] sm:$0xf]
        %v662 = vld [vmem:[%s635 + $0x68] sm:$0xf]
        %v663 = vld [vmem:[%s635 + $0x6c] sm:$0xf]
        %v664 = vld [vmem:[%s635 + $0x70] sm:$0xf]
        %v665 = vld [vmem:[%s635 + $0x74] sm:$0xf]
        %v666 = vld [vmem:[%s635 + $0x78] sm:$0xf]
        %v667 = vld [vmem:[%s635 + $0x7c] sm:$0xf]
        %v668 = vld [vmem:[%s635 + $0x80] sm:$0xf]
        %v669 = vld [vmem:[%s635 + $0x84] sm:$0xf]
        %v670 = vld [vmem:[%s635 + $0x88] sm:$0xf]
        %v671 = vld [vmem:[%s635 + $0x8c] sm:$0xf]
        %v672 = vld [vmem:[%s635 + $0x90] sm:$0xf]
        %v673 = vld [vmem:[%s635 + $0x94] sm:$0xf]
        %v674 = vld [vmem:[%s635 + $0x98] sm:$0xf]
        %v675 = vld [vmem:[%s635 + $0x9c] sm:$0xf]
        %v676 = vld [vmem:[%s635 + $0xa0] sm:$0xf]
        %v677 = vld [vmem:[%s635 + $0xa4] sm:$0xf]
        %v678 = vld [vmem:[%s635 + $0xa8] sm:$0xf]
        %v679 = vld [vmem:[%s635 + $0xac] sm:$0xf]
        %v680 = vld [vmem:[%s635 + $0xb0] sm:$0xf]
        %v681 = vld [vmem:[%s635 + $0xb4] sm:$0xf]
        %v682 = vld [vmem:[%s635 + $0xb8] sm:$0xf]
        %v683 = vld [vmem:[%s635 + $0xbc] sm:$0xf]
        %v732 = vunpack.c.l.b16 %v636
        %v733 = vunpack.c.l.b16 %v637
        %v734 = vunpack.c.l.b16 %v638
        %v735 = vunpack.c.l.b16 %v639
        %v736 = vunpack.c.l.b16 %v640
        %v737 = vunpack.c.l.b16 %v641
        %v738 = vunpack.c.l.b16 %v642
        %v739 = vunpack.c.l.b16 %v643
        %v740 = vunpack.c.l.b16 %v644
        %v741 = vunpack.c.l.b16 %v645
        %v742 = vunpack.c.l.b16 %v646
        %v743 = vunpack.c.l.b16 %v647
        %v744 = vunpack.c.l.b16 %v648
        %v745 = vunpack.c.l.b16 %v649
        %v746 = vunpack.c.l.b16 %v650
        %v747 = vunpack.c.l.b16 %v651
        %v748 = vunpack.c.l.b16 %v652
        %v749 = vunpack.c.l.b16 %v653
        %v750 = vunpack.c.l.b16 %v654
        %v751 = vunpack.c.l.b16 %v655
        %v752 = vunpack.c.l.b16 %v656
        %v753 = vunpack.c.l.b16 %v657
        %v754 = vunpack.c.l.b16 %v658
        %v755 = vunpack.c.l.b16 %v659
        %v756 = vunpack.c.l.b16 %v660
        %v757 = vunpack.c.l.b16 %v661
        %v758 = vunpack.c.l.b16 %v662
        %v759 = vunpack.c.l.b16 %v663
        %v760 = vunpack.c.l.b16 %v664
        %v761 = vunpack.c.l.b16 %v665
        %v762 = vunpack.c.l.b16 %v666
        %v763 = vunpack.c.l.b16 %v667
        %v764 = vunpack.c.l.b16 %v668
        %v765 = vunpack.c.l.b16 %v669
        %v766 = vunpack.c.l.b16 %v670
        %v767 = vunpack.c.l.b16 %v671
        %v768 = vunpack.c.l.b16 %v672
        %v769 = vunpack.c.l.b16 %v673
        %v770 = vunpack.c.l.b16 %v674
        %v771 = vunpack.c.l.b16 %v675
        %v772 = vunpack.c.l.b16 %v676
        %v773 = vunpack.c.l.b16 %v677
        %v774 = vunpack.c.l.b16 %v678
        %v775 = vunpack.c.l.b16 %v679
        %v776 = vunpack.c.l.b16 %v680
        %v777 = vunpack.c.l.b16 %v681
        %v778 = vunpack.c.l.b16 %v682
        %v779 = vunpack.c.l.b16 %v683
        %v780 = vpack.c.b16 %v733, %v732
        %v781 = vpack.c.b16 %v735, %v734
        %v782 = vpack.c.b16 %v737, %v736
        %v783 = vpack.c.b16 %v739, %v738
        %v784 = vpack.c.b16 %v741, %v740
        %v785 = vpack.c.b16 %v743, %v742
        %v786 = vpack.c.b16 %v745, %v744
        %v787 = vpack.c.b16 %v747, %v746
        %v788 = vpack.c.b16 %v749, %v748
        %v789 = vpack.c.b16 %v751, %v750
        %v790 = vpack.c.b16 %v753, %v752
        %v791 = vpack.c.b16 %v755, %v754
        %v792 = vpack.c.b16 %v757, %v756
        %v793 = vpack.c.b16 %v759, %v758
        %v794 = vpack.c.b16 %v761, %v760
        %v795 = vpack.c.b16 %v763, %v762
        %v796 = vpack.c.b16 %v765, %v764
        %v797 = vpack.c.b16 %v767, %v766
        %v798 = vpack.c.b16 %v769, %v768
        %v799 = vpack.c.b16 %v771, %v770
        %v800 = vpack.c.b16 %v773, %v772
        %v801 = vpack.c.b16 %v775, %v774
        %v802 = vpack.c.b16 %v777, %v776
        %v803 = vpack.c.b16 %v779, %v778
        %828 = vmatprep.subr.bf16.mxu0 0
        %829 = vmatpush1.bf16.msra.mxu0 %v780
        %830 = vmatprep.subr.bf16.mxu0 0
        %831 = vmatpush1.bf16.msra.mxu0 %v781
        %832 = vmatprep.subr.bf16.mxu0 0
        %833 = vmatpush1.bf16.msra.mxu0 %v782
        %834 = vmatprep.subr.bf16.mxu0 0
        %835 = vmatpush1.bf16.msra.mxu0 %v783
        %836 = vmatprep.subr.bf16.mxu0 0
        %837 = vmatpush1.bf16.msra.mxu0 %v784
        %838 = vmatprep.subr.bf16.mxu0 0
        %839 = vmatpush1.bf16.msra.mxu0 %v785
        %840 = vmatprep.subr.bf16.mxu0 0
        %841 = vmatpush1.bf16.msra.mxu0 %v786
        %842 = vmatprep.subr.bf16.mxu0 0
        %843 = vmatpush1.bf16.msra.mxu0 %v787
        %844 = vmatprep.subr.bf16.mxu0 0
        %845 = vmatpush1.bf16.msra.mxu0 %v788
        %846 = vmatprep.subr.bf16.mxu0 0
        %847 = vmatpush1.bf16.msra.mxu0 %v789
        %848 = vmatprep.subr.bf16.mxu0 0
        %849 = vmatpush1.bf16.msra.mxu0 %v790
        %850 = vmatprep.subr.bf16.mxu0 0
        %851 = vmatpush1.bf16.msra.mxu0 %v791
        %852 = vmatprep.subr.bf16.mxu0 0
        %853 = vmatpush1.bf16.msra.mxu0 %v792
        %854 = vmatprep.subr.bf16.mxu0 0
        %855 = vmatpush1.bf16.msra.mxu0 %v793
        %856 = vmatprep.subr.bf16.mxu0 0
        %857 = vmatpush1.bf16.msra.mxu0 %v794
        %858 = vmatprep.subr.bf16.mxu0 0
        %859 = vmatpush1.bf16.msra.mxu0 %v795
        %860 = vmatprep.mubr.bf16.mxu0 %v515
        %861 = vmatmul.mubr.bf16.gmra.mrb[0].mxu0 %v587
        %v862 = vpop.f32.mrb[0].mxu0
        %v863 = vadd.f32 0.0, %v862
        %v864 = vpop.f32.mrb[0].mxu0
        %v865 = vpop.f32.mrb[0].mxu0
        %v866 = vadd.f32 0.0, %v865
        %v867 = vpop.f32.mrb[0].mxu0
        %868 = vmatprep.mubr.bf16.mxu0 %v516
        %869 = vmatmul.mubr.bf16.gmra.mrb[0].mxu0 %v588
        %v870 = vpop.f32.mrb[0].mxu0
        %v871 = vadd.f32 0.0, %v870
        %v872 = vpop.f32.mrb[0].mxu0
        %v873 = vpop.f32.mrb[0].mxu0
        %v874 = vadd.f32 0.0, %v873
        %v875 = vpop.f32.mrb[0].mxu0
        %876 = vmatprep.mubr.bf16.mxu0 %v517
        %877 = vmatmul.mubr.bf16.gmra.mrb[0].mxu0 %v589
        %v878 = vpop.f32.mrb[0].mxu0
        %v879 = vadd.f32 0.0, %v878
        %v880 = vpop.f32.mrb[0].mxu0
        %v881 = vpop.f32.mrb[0].mxu0
        %v882 = vadd.f32 0.0, %v881
        %v883 = vpop.f32.mrb[0].mxu0
        %884 = vmatprep.mubr.bf16.mxu0 %v518
        %885 = vmatmul.mubr.bf16.gmra.mrb[0].mxu0 %v590
        %v886 = vpop.f32.mrb[0].mxu0
        %v887 = vadd.f32 0.0, %v886
        %v888 = vpop.f32.mrb[0].mxu0
        %v889 = vpop.f32.mrb[0].mxu0
        %v890 = vadd.f32 0.0, %v889
        %v891 = vpop.f32.mrb[0].mxu0
        %892 = vmatprep.mubr.bf16.mxu0 %v519
        %893 = vmatmul.mubr.bf16.gmra.mrb[0].mxu0 %v591
        %v894 = vpop.f32.mrb[0].mxu0
        %v895 = vadd.f32 0.0, %v894
        %v896 = vpop.f32.mrb[0].mxu0
        %v897 = vpop.f32.mrb[0].mxu0
        %v898 = vadd.f32 0.0, %v897
        %v899 = vpop.f32.mrb[0].mxu0
        %900 = vmatprep.mubr.bf16.mxu0 %v520
        %901 = vmatmul.mubr.bf16.gmra.mrb[0].mxu0 %v592
        %v902 = vpop.f32.mrb[0].mxu0
        %v903 = vadd.f32 0.0, %v902
        %v904 = vpop.f32.mrb[0].mxu0
        %v905 = vpop.f32.mrb[0].mxu0
        %v906 = vadd.f32 0.0, %v905
        %v907 = vpop.f32.mrb[0].mxu0
        %908 = vmatprep.mubr.bf16.mxu0 %v521
        %909 = vmatmul.mubr.bf16.gmra.mrb[0].mxu0 %v593
        %v910 = vpop.f32.mrb[0].mxu0
        %v911 = vadd.f32 0.0, %v910
        %v912 = vpop.f32.mrb[0].mxu0
        %v913 = vpop.f32.mrb[0].mxu0
        %v914 = vadd.f32 0.0, %v913
        %v915 = vpop.f32.mrb[0].mxu0
        %916 = vmatprep.mubr.bf16.mxu0 %v522
        %917 = vmatmul.mubr.bf16.gmra.mrb[0].mxu0 %v594
        %v918 = vpop.f32.mrb[0].mxu0
        %v919 = vadd.f32 0.0, %v918
        %v920 = vpop.f32.mrb[0].mxu0
        %v921 = vpop.f32.mrb[0].mxu0
        %v922 = vadd.f32 0.0, %v921
        %v923 = vpop.f32.mrb[0].mxu0
        %924 = vdwg.mxu0
        %925 = vmatprep.subr.bf16.mxu0 0
        %926 = vmatpush1.bf16.msra.mxu0 %v796
        %927 = vmatprep.subr.bf16.mxu0 0
        %928 = vmatpush1.bf16.msra.mxu0 %v797
        %929 = vmatprep.subr.bf16.mxu0 0
        %930 = vmatpush1.bf16.msra.mxu0 %v798
        %931 = vmatprep.subr.bf16.mxu0 0
        %932 = vmatpush1.bf16.msra.mxu0 %v799
        %933 = vmatprep.subr.bf16.mxu0 0
        %934 = vmatpush1.bf16.msra.mxu0 %v800
        %935 = vmatprep.subr.bf16.mxu0 0
        %936 = vmatpush1.bf16.msra.mxu0 %v801
        %937 = vmatprep.subr.bf16.mxu0 0
        %938 = vmatpush1.bf16.msra.mxu0 %v802
        %939 = vmatprep.subr.bf16.mxu0 0
        %940 = vmatpush1.bf16.msra.mxu0 %v803
        %941 = vmatprep.subr.bf16.mxu0 0
        %942 = vmatpush1.bf16.msra.mxu0 0
        %943 = vmatprep.subr.bf16.mxu0 0
        %944 = vmatpush1.bf16.msra.mxu0 0
        %945 = vmatprep.subr.bf16.mxu0 0
        %946 = vmatpush1.bf16.msra.mxu0 0
        %947 = vmatprep.subr.bf16.mxu0 0
        %948 = vmatpush1.bf16.msra.mxu0 0
        %949 = vmatprep.subr.bf16.mxu0 0
        %950 = vmatpush1.bf16.msra.mxu0 0
        %951 = vmatprep.subr.bf16.mxu0 0
        %952 = vmatpush1.bf16.msra.mxu0 0
        %953 = vmatprep.subr.bf16.mxu0 0
        %954 = vmatpush1.bf16.msra.mxu0 0
        %955 = vmatprep.subr.bf16.mxu0 0
        %956 = vmatpush1.bf16.msra.mxu0 0
        %957 = vmatprep.mubr.bf16.mxu0 0
        %958 = vmatmul.mubr.bf16.gmra.mrb[0].mxu0 %v619
        %v959 = vpop.f32.mrb[0].mxu0
        %v960 = vadd.f32 %v863, %v959
        %v961 = vpop.f32.mrb[0].mxu0
        %v962 = vpop.f32.mrb[0].mxu0
        %v963 = vadd.f32 %v866, %v962
        %v964 = vpop.f32.mrb[0].mxu0
        %965 = vmatprep.mubr.bf16.mxu0 0
        %966 = vmatmul.mubr.bf16.gmra.mrb[0].mxu0 %v620
        %v967 = vpop.f32.mrb[0].mxu0
        %v968 = vadd.f32 %v871, %v967
        %v969 = vpop.f32.mrb[0].mxu0
        %v970 = vpop.f32.mrb[0].mxu0
        %v971 = vadd.f32 %v874, %v970
        %v972 = vpop.f32.mrb[0].mxu0
        %973 = vmatprep.mubr.bf16.mxu0 0
        %974 = vmatmul.mubr.bf16.gmra.mrb[0].mxu0 %v621
        %v975 = vpop.f32.mrb[0].mxu0
        %v976 = vadd.f32 %v879, %v975
        %v977 = vpop.f32.mrb[0].mxu0
        %v978 = vpop.f32.mrb[0].mxu0
        %v979 = vadd.f32 %v882, %v978
        %v980 = vpop.f32.mrb[0].mxu0
        %981 = vmatprep.mubr.bf16.mxu0 0
        %982 = vmatmul.mubr.bf16.gmra.mrb[0].mxu0 %v622
        %v983 = vpop.f32.mrb[0].mxu0
        %v984 = vadd.f32 %v887, %v983
        %v985 = vpop.f32.mrb[0].mxu0
        %v986 = vpop.f32.mrb[0].mxu0
        %v987 = vadd.f32 %v890, %v986
        %v988 = vpop.f32.mrb[0].mxu0
        %989 = vmatprep.mubr.bf16.mxu0 0
        %990 = vmatmul.mubr.bf16.gmra.mrb[0].mxu0 %v623
        %v991 = vpop.f32.mrb[0].mxu0
        %v992 = vadd.f32 %v895, %v991
        %v993 = vpop.f32.mrb[0].mxu0
        %v994 = vpop.f32.mrb[0].mxu0
        %v995 = vadd.f32 %v898, %v994
        %v996 = vpop.f32.mrb[0].mxu0
        %997 = vmatprep.mubr.bf16.mxu0 0
        %998 = vmatmul.mubr.bf16.gmra.mrb[0].mxu0 %v624
        %v999 = vpop.f32.mrb[0].mxu0
        %v1000 = vadd.f32 %v903, %v999
        %v1001 = vpop.f32.mrb[0].mxu0
        %v1002 = vpop.f32.mrb[0].mxu0
        %v1003 = vadd.f32 %v906, %v1002
        %v1004 = vpop.f32.mrb[0].mxu0
        %1005 = vmatprep.mubr.bf16.mxu0 0
        %1006 = vmatmul.mubr.bf16.gmra.mrb[0].mxu0 %v625
        %v1007 = vpop.f32.mrb[0].mxu0
        %v1008 = vadd.f32 %v911, %v1007
        %v1009 = vpop.f32.mrb[0].mxu0
        %v1010 = vpop.f32.mrb[0].mxu0
        %v1011 = vadd.f32 %v914, %v1010
        %v1012 = vpop.f32.mrb[0].mxu0
        %1013 = vmatprep.mubr.bf16.mxu0 0
        %1014 = vmatmul.mubr.bf16.gmra.mrb[0].mxu0 %v626
        %v1015 = vpop.f32.mrb[0].mxu0
        %v1016 = vadd.f32 %v919, %v1015
        %v1017 = vpop.f32.mrb[0].mxu0
        %v1018 = vpop.f32.mrb[0].mxu0
        %v1019 = vadd.f32 %v922, %v1018
        %v1020 = vpop.f32.mrb[0].mxu0
        %1021 = vdwg.mxu0
        %v1070 = vunpack.c.l.b16 %v415
        %v1071 = vunpack.c.l.b16 %v416
        %v1072 = vunpack.c.l.b16 %v417
        %v1073 = vunpack.c.l.b16 %v418
        %v1074 = vunpack.c.l.b16 %v419
        %v1075 = vunpack.c.l.b16 %v420
        %v1076 = vunpack.c.l.b16 %v421
        %v1077 = vunpack.c.l.b16 %v422
        %v1078 = vunpack.c.l.b16 %v423
        %v1079 = vunpack.c.l.b16 %v424
        %v1080 = vunpack.c.l.b16 %v425
        %v1081 = vunpack.c.l.b16 %v426
        %v1082 = vunpack.c.l.b16 %v427
        %v1083 = vunpack.c.l.b16 %v428
        %v1084 = vunpack.c.l.b16 %v429
        %v1085 = vunpack.c.l.b16 %v430
        %v1086 = vunpack.c.l.b16 %v431
        %v1087 = vunpack.c.l.b16 %v432
        %v1088 = vunpack.c.l.b16 %v433
        %v1089 = vunpack.c.l.b16 %v434
        %v1090 = vunpack.c.l.b16 %v435
        %v1091 = vunpack.c.l.b16 %v436
        %v1092 = vunpack.c.l.b16 %v437
        %v1093 = vunpack.c.l.b16 %v438
        %v1094 = vunpack.c.l.b16 %v439
        %v1095 = vunpack.c.l.b16 %v440
        %v1096 = vunpack.c.l.b16 %v441
        %v1097 = vunpack.c.l.b16 %v442
        %v1098 = vunpack.c.l.b16 %v443
        %v1099 = vunpack.c.l.b16 %v444
        %v1100 = vunpack.c.l.b16 %v445
        %v1101 = vunpack.c.l.b16 %v446
        %v1102 = vunpack.c.l.b16 %v447
        %v1103 = vunpack.c.l.b16 %v448
        %v1104 = vunpack.c.l.b16 %v449
        %v1105 = vunpack.c.l.b16 %v450
        %v1106 = vunpack.c.l.b16 %v451
        %v1107 = vunpack.c.l.b16 %v452
        %v1108 = vunpack.c.l.b16 %v453
        %v1109 = vunpack.c.l.b16 %v454
        %v1110 = vunpack.c.l.b16 %v455
        %v1111 = vunpack.c.l.b16 %v456
        %v1112 = vunpack.c.l.b16 %v457
        %v1113 = vunpack.c.l.b16 %v458
        %v1114 = vunpack.c.l.b16 %v459
        %v1115 = vunpack.c.l.b16 %v460
        %v1116 = vunpack.c.l.b16 %v461
        %v1117 = vunpack.c.l.b16 %v462
        %v1118 = vpack.c.b16 %v1071, %v1070
        %v1119 = vpack.c.b16 %v1073, %v1072
        %v1120 = vpack.c.b16 %v1075, %v1074
        %v1121 = vpack.c.b16 %v1077, %v1076
        %v1122 = vpack.c.b16 %v1079, %v1078
        %v1123 = vpack.c.b16 %v1081, %v1080
        %v1124 = vpack.c.b16 %v1083, %v1082
        %v1125 = vpack.c.b16 %v1085, %v1084
        %v1126 = vpack.c.b16 %v1087, %v1086
        %v1127 = vpack.c.b16 %v1089, %v1088
        %v1128 = vpack.c.b16 %v1091, %v1090
        %v1129 = vpack.c.b16 %v1093, %v1092
        %v1130 = vpack.c.b16 %v1095, %v1094
        %v1131 = vpack.c.b16 %v1097, %v1096
        %v1132 = vpack.c.b16 %v1099, %v1098
        %v1133 = vpack.c.b16 %v1101, %v1100
        %v1134 = vpack.c.b16 %v1103, %v1102
        %v1135 = vpack.c.b16 %v1105, %v1104
        %v1136 = vpack.c.b16 %v1107, %v1106
        %v1137 = vpack.c.b16 %v1109, %v1108
        %v1138 = vpack.c.b16 %v1111, %v1110
        %v1139 = vpack.c.b16 %v1113, %v1112
        %v1140 = vpack.c.b16 %v1115, %v1114
        %v1141 = vpack.c.b16 %v1117, %v1116
        %1166 = vmatprep.subr.bf16.mxu0 0
        %1167 = vmatpush1.bf16.msra.mxu0 %v1118
        %1168 = vmatprep.subr.bf16.mxu0 0
        %1169 = vmatpush1.bf16.msra.mxu0 %v1119
        %1170 = vmatprep.subr.bf16.mxu0 0
        %1171 = vmatpush1.bf16.msra.mxu0 %v1120
        %1172 = vmatprep.subr.bf16.mxu0 0
        %1173 = vmatpush1.bf16.msra.mxu0 %v1121
        %1174 = vmatprep.subr.bf16.mxu0 0
        %1175 = vmatpush1.bf16.msra.mxu0 %v1122
        %1176 = vmatprep.subr.bf16.mxu0 0
        %1177 = vmatpush1.bf16.msra.mxu0 %v1123
        %1178 = vmatprep.subr.bf16.mxu0 0
        %1179 = vmatpush1.bf16.msra.mxu0 %v1124
        %1180 = vmatprep.subr.bf16.mxu0 0
        %1181 = vmatpush1.bf16.msra.mxu0 %v1125
        %1182 = vmatprep.subr.bf16.mxu0 0
        %1183 = vmatpush1.bf16.msra.mxu0 %v1126
        %1184 = vmatprep.subr.bf16.mxu0 0
        %1185 = vmatpush1.bf16.msra.mxu0 %v1127
        %1186 = vmatprep.subr.bf16.mxu0 0
        %1187 = vmatpush1.bf16.msra.mxu0 %v1128
        %1188 = vmatprep.subr.bf16.mxu0 0
        %1189 = vmatpush1.bf16.msra.mxu0 %v1129
        %1190 = vmatprep.subr.bf16.mxu0 0
        %1191 = vmatpush1.bf16.msra.mxu0 %v1130
        %1192 = vmatprep.subr.bf16.mxu0 0
        %1193 = vmatpush1.bf16.msra.mxu0 %v1131
        %1194 = vmatprep.subr.bf16.mxu0 0
        %1195 = vmatpush1.bf16.msra.mxu0 %v1132
        %1196 = vmatprep.subr.bf16.mxu0 0
        %1197 = vmatpush1.bf16.msra.mxu0 %v1133
        %1198 = vmatprep.mubr.bf16.mxu0 %v289
        %1199 = vmatmul.mubr.bf16.gmra.mrb[0].mxu0 %v364
        %v1200 = vpop.f32.mrb[0].mxu0
        %v1201 = vadd.f32 %v960, %v1200
        %v1202 = vpop.f32.mrb[0].mxu0
        %v1203 = vpop.f32.mrb[0].mxu0
        %v1204 = vadd.f32 %v963, %v1203
        %v1205 = vpop.f32.mrb[0].mxu0
        %1206 = vmatprep.mubr.bf16.mxu0 %v290
        %1207 = vmatmul.mubr.bf16.gmra.mrb[0].mxu0 %v365
        %v1208 = vpop.f32.mrb[0].mxu0
        %v1209 = vadd.f32 %v968, %v1208
        %v1210 = vpop.f32.mrb[0].mxu0
        %v1211 = vpop.f32.mrb[0].mxu0
        %v1212 = vadd.f32 %v971, %v1211
        %v1213 = vpop.f32.mrb[0].mxu0
        %1214 = vmatprep.mubr.bf16.mxu0 %v291
        %1215 = vmatmul.mubr.bf16.gmra.mrb[0].mxu0 %v366
        %v1216 = vpop.f32.mrb[0].mxu0
        %v1217 = vadd.f32 %v976, %v1216
        %v1218 = vpop.f32.mrb[0].mxu0
        %v1219 = vpop.f32.mrb[0].mxu0
        %v1220 = vadd.f32 %v979, %v1219
        %v1221 = vpop.f32.mrb[0].mxu0
        %1222 = vmatprep.mubr.bf16.mxu0 %v292
        %1223 = vmatmul.mubr.bf16.gmra.mrb[0].mxu0 %v367
        %v1224 = vpop.f32.mrb[0].mxu0
        %v1225 = vadd.f32 %v984, %v1224
        %v1226 = vpop.f32.mrb[0].mxu0
        %v1227 = vpop.f32.mrb[0].mxu0
        %v1228 = vadd.f32 %v987, %v1227
        %v1229 = vpop.f32.mrb[0].mxu0
        %1230 = vmatprep.mubr.bf16.mxu0 %v293
        %1231 = vmatmul.mubr.bf16.gmra.mrb[0].mxu0 %v368
        %v1232 = vpop.f32.mrb[0].mxu0
        %v1233 = vadd.f32 %v992, %v1232
        %v1234 = vpop.f32.mrb[0].mxu0
        %v1235 = vpop.f32.mrb[0].mxu0
        %v1236 = vadd.f32 %v995, %v1235
        %v1237 = vpop.f32.mrb[0].mxu0
        %1238 = vmatprep.mubr.bf16.mxu0 %v294
        %1239 = vmatmul.mubr.bf16.gmra.mrb[0].mxu0 %v369
        %v1240 = vpop.f32.mrb[0].mxu0
        %v1241 = vadd.f32 %v1000, %v1240
        %v1242 = vpop.f32.mrb[0].mxu0
        %v1243 = vpop.f32.mrb[0].mxu0
        %v1244 = vadd.f32 %v1003, %v1243
        %v1245 = vpop.f32.mrb[0].mxu0
        %1246 = vmatprep.mubr.bf16.mxu0 %v295
        %1247 = vmatmul.mubr.bf16.gmra.mrb[0].mxu0 %v370
        %v1248 = vpop.f32.mrb[0].mxu0
        %v1249 = vadd.f32 %v1008, %v1248
        %v1250 = vpop.f32.mrb[0].mxu0
        %v1251 = vpop.f32.mrb[0].mxu0
        %v1252 = vadd.f32 %v1011, %v1251
        %v1253 = vpop.f32.mrb[0].mxu0
        %1254 = vmatprep.mubr.bf16.mxu0 %v296
        %1255 = vmatmul.mubr.bf16.gmra.mrb[0].mxu0 %v371
        %v1256 = vpop.f32.mrb[0].mxu0
        %v1257 = vadd.f32 %v1016, %v1256
        %v1258 = vpop.f32.mrb[0].mxu0
        %v1259 = vpop.f32.mrb[0].mxu0
        %v1260 = vadd.f32 %v1019, %v1259
        %v1261 = vpop.f32.mrb[0].mxu0
        %1262 = vdwg.mxu0
        %1263 = vmatprep.subr.bf16.mxu0 0
        %1264 = vmatpush1.bf16.msra.mxu0 %v1134
        %1265 = vmatprep.subr.bf16.mxu0 0
        %1266 = vmatpush1.bf16.msra.mxu0 %v1135
        %1267 = vmatprep.subr.bf16.mxu0 0
        %1268 = vmatpush1.bf16.msra.mxu0 %v1136
        %1269 = vmatprep.subr.bf16.mxu0 0
        %1270 = vmatpush1.bf16.msra.mxu0 %v1137
        %1271 = vmatprep.subr.bf16.mxu0 0
        %1272 = vmatpush1.bf16.msra.mxu0 %v1138
        %1273 = vmatprep.subr.bf16.mxu0 0
        %1274 = vmatpush1.bf16.msra.mxu0 %v1139
        %1275 = vmatprep.subr.bf16.mxu0 0
        %1276 = vmatpush1.bf16.msra.mxu0 %v1140
        %1277 = vmatprep.subr.bf16.mxu0 0
        %1278 = vmatpush1.bf16.msra.mxu0 %v1141
        %1279 = vmatprep.subr.bf16.mxu0 0
        %1280 = vmatpush1.bf16.msra.mxu0 0
        %1281 = vmatprep.subr.bf16.mxu0 0
        %1282 = vmatpush1.bf16.msra.mxu0 0
        %1283 = vmatprep.subr.bf16.mxu0 0
        %1284 = vmatpush1.bf16.msra.mxu0 0
        %1285 = vmatprep.subr.bf16.mxu0 0
        %1286 = vmatpush1.bf16.msra.mxu0 0
        %1287 = vmatprep.subr.bf16.mxu0 0
        %1288 = vmatpush1.bf16.msra.mxu0 0
        %1289 = vmatprep.subr.bf16.mxu0 0
        %1290 = vmatpush1.bf16.msra.mxu0 0
        %1291 = vmatprep.subr.bf16.mxu0 0
        %1292 = vmatpush1.bf16.msra.mxu0 0
        %1293 = vmatprep.subr.bf16.mxu0 0
        %1294 = vmatpush1.bf16.msra.mxu0 0
        %1295 = vmatprep.mubr.bf16.mxu0 0
        %1296 = vmatmul.mubr.bf16.gmra.mrb[0].mxu0 %v399
        %v1297 = vpop.f32.mrb[0].mxu0
        %v1298 = vadd.f32 %v1201, %v1297
        %v1299 = vpop.f32.mrb[0].mxu0
        %v1300 = vpop.f32.mrb[0].mxu0
        %v1301 = vadd.f32 %v1204, %v1300
        %v1302 = vpop.f32.mrb[0].mxu0
        %1303 = vmatprep.mubr.bf16.mxu0 0
        %1304 = vmatmul.mubr.bf16.gmra.mrb[0].mxu0 %v400
        %v1305 = vpop.f32.mrb[0].mxu0
        %v1306 = vadd.f32 %v1209, %v1305
        %v1307 = vpop.f32.mrb[0].mxu0
        %v1308 = vpop.f32.mrb[0].mxu0
        %v1309 = vadd.f32 %v1212, %v1308
        %v1310 = vpop.f32.mrb[0].mxu0
        %1311 = vmatprep.mubr.bf16.mxu0 0
        %1312 = vmatmul.mubr.bf16.gmra.mrb[0].mxu0 %v401
        %v1313 = vpop.f32.mrb[0].mxu0
        %v1314 = vadd.f32 %v1217, %v1313
        %v1315 = vpop.f32.mrb[0].mxu0
        %v1316 = vpop.f32.mrb[0].mxu0
        %v1317 = vadd.f32 %v1220, %v1316
        %v1318 = vpop.f32.mrb[0].mxu0
        %1319 = vmatprep.mubr.bf16.mxu0 0
        %1320 = vmatmul.mubr.bf16.gmra.mrb[0].mxu0 %v402
        %v1321 = vpop.f32.mrb[0].mxu0
        %v1322 = vadd.f32 %v1225, %v1321
        %v1323 = vpop.f32.mrb[0].mxu0
        %v1324 = vpop.f32.mrb[0].mxu0
        %v1325 = vadd.f32 %v1228, %v1324
        %v1326 = vpop.f32.mrb[0].mxu0
        %1327 = vmatprep.mubr.bf16.mxu0 0
        %1328 = vmatmul.mubr.bf16.gmra.mrb[0].mxu0 %v403
        %v1329 = vpop.f32.mrb[0].mxu0
        %v1330 = vadd.f32 %v1233, %v1329
        %v1331 = vpop.f32.mrb[0].mxu0
        %v1332 = vpop.f32.mrb[0].mxu0
        %v1333 = vadd.f32 %v1236, %v1332
        %v1334 = vpop.f32.mrb[0].mxu0
        %1335 = vmatprep.mubr.bf16.mxu0 0
        %1336 = vmatmul.mubr.bf16.gmra.mrb[0].mxu0 %v404
        %v1337 = vpop.f32.mrb[0].mxu0
        %v1338 = vadd.f32 %v1241, %v1337
        %v1339 = vpop.f32.mrb[0].mxu0
        %v1340 = vpop.f32.mrb[0].mxu0
        %v1341 = vadd.f32 %v1244, %v1340
        %v1342 = vpop.f32.mrb[0].mxu0
        %1343 = vmatprep.mubr.bf16.mxu0 0
        %1344 = vmatmul.mubr.bf16.gmra.mrb[0].mxu0 %v405
        %v1345 = vpop.f32.mrb[0].mxu0
        %v1346 = vadd.f32 %v1249, %v1345
        %v1347 = vpop.f32.mrb[0].mxu0
        %v1348 = vpop.f32.mrb[0].mxu0
        %v1349 = vadd.f32 %v1252, %v1348
        %v1350 = vpop.f32.mrb[0].mxu0
        %1351 = vmatprep.mubr.bf16.mxu0 0
        %1352 = vmatmul.mubr.bf16.gmra.mrb[0].mxu0 %v406
        %v1353 = vpop.f32.mrb[0].mxu0
        %v1354 = vadd.f32 %v1257, %v1353
        %v1355 = vpop.f32.mrb[0].mxu0
        %v1356 = vpop.f32.mrb[0].mxu0
        %v1357 = vadd.f32 %v1260, %v1356
        %v1358 = vpop.f32.mrb[0].mxu0
        %1359 = vdwg.mxu0
        %s1360 = sadd.s32 %s237, 2
        %s1361 = smul.u32 %s1360, 2
        %s1362 = smul.addr %s1361, 4
        %s1363 = scalar_lea.vmem %s219, %s1362
        %v1364 = vld [vmem:[%s1363] sm:$0xf]
        %v1365 = vld [vmem:[%s1363 + $0x4] sm:$0xf]
        %v1366 = vld [vmem:[%s1363 + $0x8] sm:$0xf]
        %v1367 = vld [vmem:[%s1363 + $0xc] sm:$0xf]
        %v1368 = vld [vmem:[%s1363 + $0x10] sm:$0xf]
        %v1369 = vld [vmem:[%s1363 + $0x14] sm:$0xf]
        %v1370 = vld [vmem:[%s1363 + $0x18] sm:$0xf]
        %v1371 = vld [vmem:[%s1363 + $0x1c] sm:$0xf]
        %v1372 = vld [vmem:[%s1363 + $0x20] sm:$0xf]
        %v1373 = vld [vmem:[%s1363 + $0x24] sm:$0xf]
        %v1374 = vld [vmem:[%s1363 + $0x28] sm:$0xf]
        %v1375 = vld [vmem:[%s1363 + $0x2c] sm:$0xf]
        %v1376 = vld [vmem:[%s1363 + $0x30] sm:$0xf]
        %v1377 = vld [vmem:[%s1363 + $0x34] sm:$0xf]
        %v1378 = vld [vmem:[%s1363 + $0x38] sm:$0xf]
        %v1379 = vld [vmem:[%s1363 + $0x3c] sm:$0xf]
        %v1396 = vunpack.c.l.b16 %v1364
        %v1397 = vunpack.c.l.b16 %v1365
        %v1398 = vunpack.c.l.b16 %v1366
        %v1399 = vunpack.c.l.b16 %v1367
        %v1400 = vunpack.c.l.b16 %v1368
        %v1401 = vunpack.c.l.b16 %v1369
        %v1402 = vunpack.c.l.b16 %v1370
        %v1403 = vunpack.c.l.b16 %v1371
        %v1404 = vunpack.c.l.b16 %v1372
        %v1405 = vunpack.c.l.b16 %v1373
        %v1406 = vunpack.c.l.b16 %v1374
        %v1407 = vunpack.c.l.b16 %v1375
        %v1408 = vunpack.c.l.b16 %v1376
        %v1409 = vunpack.c.l.b16 %v1377
        %v1410 = vunpack.c.l.b16 %v1378
        %v1411 = vunpack.c.l.b16 %v1379
        %v1412 = vpack.c.b16 %v1397, %v1396
        %v1413 = vpack.c.b16 %v1399, %v1398
        %v1414 = vpack.c.b16 %v1401, %v1400
        %v1415 = vpack.c.b16 %v1403, %v1402
        %v1416 = vpack.c.b16 %v1405, %v1404
        %v1417 = vpack.c.b16 %v1407, %v1406
        %v1418 = vpack.c.b16 %v1409, %v1408
        %v1419 = vpack.c.b16 %v1411, %v1410
        %v1421 = vshrl.u32 %v1412, 16
        %v1423 = vrot.slane %v1421, 7
        %v1424 = vshll.u32 %v1412, 16
        %v1426 = vor.u32 %v1423, %v1424
        %v1428 = vshrl.u32 %v1413, 16
        %v1430 = vrot.slane %v1428, 7
        %v1431 = vshll.u32 %v1413, 16
        %v1433 = vor.u32 %v1430, %v1431
        %v1435 = vshrl.u32 %v1414, 16
        %v1437 = vrot.slane %v1435, 7
        %v1438 = vshll.u32 %v1414, 16
        %v1440 = vor.u32 %v1437, %v1438
        %v1442 = vshrl.u32 %v1415, 16
        %v1444 = vrot.slane %v1442, 7
        %v1445 = vshll.u32 %v1415, 16
        %v1447 = vor.u32 %v1444, %v1445
        %v1449 = vshrl.u32 %v1416, 16
        %v1451 = vrot.slane %v1449, 7
        %v1452 = vshll.u32 %v1416, 16
        %v1454 = vor.u32 %v1451, %v1452
        %v1456 = vshrl.u32 %v1417, 16
        %v1458 = vrot.slane %v1456, 7
        %v1459 = vshll.u32 %v1417, 16
        %v1461 = vor.u32 %v1458, %v1459
        %v1463 = vshrl.u32 %v1418, 16
        %v1465 = vrot.slane %v1463, 7
        %v1466 = vshll.u32 %v1418, 16
        %v1468 = vor.u32 %v1465, %v1466
        %v1470 = vshrl.u32 %v1419, 16
        %v1472 = vrot.slane %v1470, 7
        %v1473 = vshll.u32 %v1419, 16
        %v1475 = vor.u32 %v1472, %v1473
        %v1484 = vsel %vm363, 0, %v1426
        %v1485 = vsel %vm363, 0, %v1433
        %v1486 = vsel %vm363, 0, %v1440
        %v1487 = vsel %vm363, 0, %v1447
        %v1488 = vsel %vm363, 0, %v1454
        %v1489 = vsel %vm363, 0, %v1461
        %v1490 = vsel %vm363, 0, %v1468
        %v1491 = vsel %vm363, 0, %v1475
        %v1492 = vrot.slane %v1424, 1
        %v1493 = vor.u32 %v1421, %v1492
        %v1494 = vrot.slane %v1431, 1
        %v1495 = vor.u32 %v1428, %v1494
        %v1496 = vrot.slane %v1438, 1
        %v1497 = vor.u32 %v1435, %v1496
        %v1498 = vrot.slane %v1445, 1
        %v1499 = vor.u32 %v1442, %v1498
        %v1500 = vrot.slane %v1452, 1
        %v1501 = vor.u32 %v1449, %v1500
        %v1502 = vrot.slane %v1459, 1
        %v1503 = vor.u32 %v1456, %v1502
        %v1504 = vrot.slane %v1466, 1
        %v1505 = vor.u32 %v1463, %v1504
        %v1506 = vrot.slane %v1473, 1
        %v1507 = vor.u32 %v1470, %v1506
        %v1516 = vsel %vm398, %v1493, 0
        %v1517 = vsel %vm398, %v1495, 0
        %v1518 = vsel %vm398, %v1497, 0
        %v1519 = vsel %vm398, %v1499, 0
        %v1520 = vsel %vm398, %v1501, 0
        %v1521 = vsel %vm398, %v1503, 0
        %v1522 = vsel %vm398, %v1505, 0
        %v1523 = vsel %vm398, %v1507, 0
        %s1532 = scalar_lea.vmem %s1, 384
        %v1533 = vld [vmem:[%s1532] sm:$0xf]
        %v1534 = vld [vmem:[%s1532 + $0x4] sm:$0xf]
        %v1535 = vld [vmem:[%s1532 + $0x8] sm:$0xf]
        %v1536 = vld [vmem:[%s1532 + $0xc] sm:$0xf]
        %v1537 = vld [vmem:[%s1532 + $0x10] sm:$0xf]
        %v1538 = vld [vmem:[%s1532 + $0x14] sm:$0xf]
        %v1539 = vld [vmem:[%s1532 + $0x18] sm:$0xf]
        %v1540 = vld [vmem:[%s1532 + $0x1c] sm:$0xf]
        %v1541 = vld [vmem:[%s1532 + $0x20] sm:$0xf]
        %v1542 = vld [vmem:[%s1532 + $0x24] sm:$0xf]
        %v1543 = vld [vmem:[%s1532 + $0x28] sm:$0xf]
        %v1544 = vld [vmem:[%s1532 + $0x2c] sm:$0xf]
        %v1545 = vld [vmem:[%s1532 + $0x30] sm:$0xf]
        %v1546 = vld [vmem:[%s1532 + $0x34] sm:$0xf]
        %v1547 = vld [vmem:[%s1532 + $0x38] sm:$0xf]
        %v1548 = vld [vmem:[%s1532 + $0x3c] sm:$0xf]
        %v1549 = vld [vmem:[%s1532 + $0x40] sm:$0xf]
        %v1550 = vld [vmem:[%s1532 + $0x44] sm:$0xf]
        %v1551 = vld [vmem:[%s1532 + $0x48] sm:$0xf]
        %v1552 = vld [vmem:[%s1532 + $0x4c] sm:$0xf]
        %v1553 = vld [vmem:[%s1532 + $0x50] sm:$0xf]
        %v1554 = vld [vmem:[%s1532 + $0x54] sm:$0xf]
        %v1555 = vld [vmem:[%s1532 + $0x58] sm:$0xf]
        %v1556 = vld [vmem:[%s1532 + $0x5c] sm:$0xf]
        %v1557 = vld [vmem:[%s1532 + $0x60] sm:$0xf]
        %v1558 = vld [vmem:[%s1532 + $0x64] sm:$0xf]
        %v1559 = vld [vmem:[%s1532 + $0x68] sm:$0xf]
        %v1560 = vld [vmem:[%s1532 + $0x6c] sm:$0xf]
        %v1561 = vld [vmem:[%s1532 + $0x70] sm:$0xf]
        %v1562 = vld [vmem:[%s1532 + $0x74] sm:$0xf]
        %v1563 = vld [vmem:[%s1532 + $0x78] sm:$0xf]
        %v1564 = vld [vmem:[%s1532 + $0x7c] sm:$0xf]
        %v1565 = vld [vmem:[%s1532 + $0x80] sm:$0xf]
        %v1566 = vld [vmem:[%s1532 + $0x84] sm:$0xf]
        %v1567 = vld [vmem:[%s1532 + $0x88] sm:$0xf]
        %v1568 = vld [vmem:[%s1532 + $0x8c] sm:$0xf]
        %v1569 = vld [vmem:[%s1532 + $0x90] sm:$0xf]
        %v1570 = vld [vmem:[%s1532 + $0x94] sm:$0xf]
        %v1571 = vld [vmem:[%s1532 + $0x98] sm:$0xf]
        %v1572 = vld [vmem:[%s1532 + $0x9c] sm:$0xf]
        %v1573 = vld [vmem:[%s1532 + $0xa0] sm:$0xf]
        %v1574 = vld [vmem:[%s1532 + $0xa4] sm:$0xf]
        %v1575 = vld [vmem:[%s1532 + $0xa8] sm:$0xf]
        %v1576 = vld [vmem:[%s1532 + $0xac] sm:$0xf]
        %v1577 = vld [vmem:[%s1532 + $0xb0] sm:$0xf]
        %v1578 = vld [vmem:[%s1532 + $0xb4] sm:$0xf]
        %v1579 = vld [vmem:[%s1532 + $0xb8] sm:$0xf]
        %v1580 = vld [vmem:[%s1532 + $0xbc] sm:$0xf]
        %v1629 = vunpack.c.l.b16 %v1533
        %v1630 = vunpack.c.l.b16 %v1534
        %v1631 = vunpack.c.l.b16 %v1535
        %v1632 = vunpack.c.l.b16 %v1536
        %v1633 = vunpack.c.l.b16 %v1537
        %v1634 = vunpack.c.l.b16 %v1538
        %v1635 = vunpack.c.l.b16 %v1539
        %v1636 = vunpack.c.l.b16 %v1540
        %v1637 = vunpack.c.l.b16 %v1541
        %v1638 = vunpack.c.l.b16 %v1542
        %v1639 = vunpack.c.l.b16 %v1543
        %v1640 = vunpack.c.l.b16 %v1544
        %v1641 = vunpack.c.l.b16 %v1545
        %v1642 = vunpack.c.l.b16 %v1546
        %v1643 = vunpack.c.l.b16 %v1547
        %v1644 = vunpack.c.l.b16 %v1548
        %v1645 = vunpack.c.l.b16 %v1549
        %v1646 = vunpack.c.l.b16 %v1550
        %v1647 = vunpack.c.l.b16 %v1551
        %v1648 = vunpack.c.l.b16 %v1552
        %v1649 = vunpack.c.l.b16 %v1553
        %v1650 = vunpack.c.l.b16 %v1554
        %v1651 = vunpack.c.l.b16 %v1555
        %v1652 = vunpack.c.l.b16 %v1556
        %v1653 = vunpack.c.l.b16 %v1557
        %v1654 = vunpack.c.l.b16 %v1558
        %v1655 = vunpack.c.l.b16 %v1559
        %v1656 = vunpack.c.l.b16 %v1560
        %v1657 = vunpack.c.l.b16 %v1561
        %v1658 = vunpack.c.l.b16 %v1562
        %v1659 = vunpack.c.l.b16 %v1563
        %v1660 = vunpack.c.l.b16 %v1564
        %v1661 = vunpack.c.l.b16 %v1565
        %v1662 = vunpack.c.l.b16 %v1566
        %v1663 = vunpack.c.l.b16 %v1567
        %v1664 = vunpack.c.l.b16 %v1568
        %v1665 = vunpack.c.l.b16 %v1569
        %v1666 = vunpack.c.l.b16 %v1570
        %v1667 = vunpack.c.l.b16 %v1571
        %v1668 = vunpack.c.l.b16 %v1572
        %v1669 = vunpack.c.l.b16 %v1573
        %v1670 = vunpack.c.l.b16 %v1574
        %v1671 = vunpack.c.l.b16 %v1575
        %v1672 = vunpack.c.l.b16 %v1576
        %v1673 = vunpack.c.l.b16 %v1577
        %v1674 = vunpack.c.l.b16 %v1578
        %v1675 = vunpack.c.l.b16 %v1579
        %v1676 = vunpack.c.l.b16 %v1580
        %v1677 = vpack.c.b16 %v1630, %v1629
        %v1678 = vpack.c.b16 %v1632, %v1631
        %v1679 = vpack.c.b16 %v1634, %v1633
        %v1680 = vpack.c.b16 %v1636, %v1635
        %v1681 = vpack.c.b16 %v1638, %v1637
        %v1682 = vpack.c.b16 %v1640, %v1639
        %v1683 = vpack.c.b16 %v1642, %v1641
        %v1684 = vpack.c.b16 %v1644, %v1643
        %v1685 = vpack.c.b16 %v1646, %v1645
        %v1686 = vpack.c.b16 %v1648, %v1647
        %v1687 = vpack.c.b16 %v1650, %v1649
        %v1688 = vpack.c.b16 %v1652, %v1651
        %v1689 = vpack.c.b16 %v1654, %v1653
        %v1690 = vpack.c.b16 %v1656, %v1655
        %v1691 = vpack.c.b16 %v1658, %v1657
        %v1692 = vpack.c.b16 %v1660, %v1659
        %v1693 = vpack.c.b16 %v1662, %v1661
        %v1694 = vpack.c.b16 %v1664, %v1663
        %v1695 = vpack.c.b16 %v1666, %v1665
        %v1696 = vpack.c.b16 %v1668, %v1667
        %v1697 = vpack.c.b16 %v1670, %v1669
        %v1698 = vpack.c.b16 %v1672, %v1671
        %v1699 = vpack.c.b16 %v1674, %v1673
        %v1700 = vpack.c.b16 %v1676, %v1675
        %1725 = vmatprep.subr.bf16.mxu0 0
        %1726 = vmatpush1.bf16.msra.mxu0 %v1677
        %1727 = vmatprep.subr.bf16.mxu0 0
        %1728 = vmatpush1.bf16.msra.mxu0 %v1678
        %1729 = vmatprep.subr.bf16.mxu0 0
        %1730 = vmatpush1.bf16.msra.mxu0 %v1679
        %1731 = vmatprep.subr.bf16.mxu0 0
        %1732 = vmatpush1.bf16.msra.mxu0 %v1680
        %1733 = vmatprep.subr.bf16.mxu0 0
        %1734 = vmatpush1.bf16.msra.mxu0 %v1681
        %1735 = vmatprep.subr.bf16.mxu0 0
        %1736 = vmatpush1.bf16.msra.mxu0 %v1682
        %1737 = vmatprep.subr.bf16.mxu0 0
        %1738 = vmatpush1.bf16.msra.mxu0 %v1683
        %1739 = vmatprep.subr.bf16.mxu0 0
        %1740 = vmatpush1.bf16.msra.mxu0 %v1684
        %1741 = vmatprep.subr.bf16.mxu0 0
        %1742 = vmatpush1.bf16.msra.mxu0 %v1685
        %1743 = vmatprep.subr.bf16.mxu0 0
        %1744 = vmatpush1.bf16.msra.mxu0 %v1686
        %1745 = vmatprep.subr.bf16.mxu0 0
        %1746 = vmatpush1.bf16.msra.mxu0 %v1687
        %1747 = vmatprep.subr.bf16.mxu0 0
        %1748 = vmatpush1.bf16.msra.mxu0 %v1688
        %1749 = vmatprep.subr.bf16.mxu0 0
        %1750 = vmatpush1.bf16.msra.mxu0 %v1689
        %1751 = vmatprep.subr.bf16.mxu0 0
        %1752 = vmatpush1.bf16.msra.mxu0 %v1690
        %1753 = vmatprep.subr.bf16.mxu0 0
        %1754 = vmatpush1.bf16.msra.mxu0 %v1691
        %1755 = vmatprep.subr.bf16.mxu0 0
        %1756 = vmatpush1.bf16.msra.mxu0 %v1692
        %1757 = vmatprep.mubr.bf16.mxu0 %v1412
        %1758 = vmatmul.mubr.bf16.gmra.mrb[0].mxu0 %v1484
        %v1759 = vpop.f32.mrb[0].mxu0
        %v1760 = vadd.f32 0.0, %v1759
        %v1761 = vpop.f32.mrb[0].mxu0
        %v1762 = vpop.f32.mrb[0].mxu0
        %v1763 = vadd.f32 0.0, %v1762
        %v1764 = vpop.f32.mrb[0].mxu0
        %1765 = vmatprep.mubr.bf16.mxu0 %v1413
        %1766 = vmatmul.mubr.bf16.gmra.mrb[0].mxu0 %v1485
        %v1767 = vpop.f32.mrb[0].mxu0
        %v1768 = vadd.f32 0.0, %v1767
        %v1769 = vpop.f32.mrb[0].mxu0
        %v1770 = vpop.f32.mrb[0].mxu0
        %v1771 = vadd.f32 0.0, %v1770
        %v1772 = vpop.f32.mrb[0].mxu0
        %1773 = vmatprep.mubr.bf16.mxu0 %v1414
        %1774 = vmatmul.mubr.bf16.gmra.mrb[0].mxu0 %v1486
        %v1775 = vpop.f32.mrb[0].mxu0
        %v1776 = vadd.f32 0.0, %v1775
        %v1777 = vpop.f32.mrb[0].mxu0
        %v1778 = vpop.f32.mrb[0].mxu0
        %v1779 = vadd.f32 0.0, %v1778
        %v1780 = vpop.f32.mrb[0].mxu0
        %1781 = vmatprep.mubr.bf16.mxu0 %v1415
        %1782 = vmatmul.mubr.bf16.gmra.mrb[0].mxu0 %v1487
        %v1783 = vpop.f32.mrb[0].mxu0
        %v1784 = vadd.f32 0.0, %v1783
        %v1785 = vpop.f32.mrb[0].mxu0
        %v1786 = vpop.f32.mrb[0].mxu0
        %v1787 = vadd.f32 0.0, %v1786
        %v1788 = vpop.f32.mrb[0].mxu0
        %1789 = vmatprep.mubr.bf16.mxu0 %v1416
        %1790 = vmatmul.mubr.bf16.gmra.mrb[0].mxu0 %v1488
        %v1791 = vpop.f32.mrb[0].mxu0
        %v1792 = vadd.f32 0.0, %v1791
        %v1793 = vpop.f32.mrb[0].mxu0
        %v1794 = vpop.f32.mrb[0].mxu0
        %v1795 = vadd.f32 0.0, %v1794
        %v1796 = vpop.f32.mrb[0].mxu0
        %1797 = vmatprep.mubr.bf16.mxu0 %v1417
        %1798 = vmatmul.mubr.bf16.gmra.mrb[0].mxu0 %v1489
        %v1799 = vpop.f32.mrb[0].mxu0
        %v1800 = vadd.f32 0.0, %v1799
        %v1801 = vpop.f32.mrb[0].mxu0
        %v1802 = vpop.f32.mrb[0].mxu0
        %v1803 = vadd.f32 0.0, %v1802
        %v1804 = vpop.f32.mrb[0].mxu0
        %1805 = vmatprep.mubr.bf16.mxu0 %v1418
        %1806 = vmatmul.mubr.bf16.gmra.mrb[0].mxu0 %v1490
        %v1807 = vpop.f32.mrb[0].mxu0
        %v1808 = vadd.f32 0.0, %v1807
        %v1809 = vpop.f32.mrb[0].mxu0
        %v1810 = vpop.f32.mrb[0].mxu0
        %v1811 = vadd.f32 0.0, %v1810
        %v1812 = vpop.f32.mrb[0].mxu0
        %1813 = vmatprep.mubr.bf16.mxu0 %v1419
        %1814 = vmatmul.mubr.bf16.gmra.mrb[0].mxu0 %v1491
        %v1815 = vpop.f32.mrb[0].mxu0
        %v1816 = vadd.f32 0.0, %v1815
        %v1817 = vpop.f32.mrb[0].mxu0
        %v1818 = vpop.f32.mrb[0].mxu0
        %v1819 = vadd.f32 0.0, %v1818
        %v1820 = vpop.f32.mrb[0].mxu0
        %1821 = vdwg.mxu0
        %1822 = vmatprep.subr.bf16.mxu0 0
        %1823 = vmatpush1.bf16.msra.mxu0 %v1693
        %1824 = vmatprep.subr.bf16.mxu0 0
        %1825 = vmatpush1.bf16.msra.mxu0 %v1694
        %1826 = vmatprep.subr.bf16.mxu0 0
        %1827 = vmatpush1.bf16.msra.mxu0 %v1695
        %1828 = vmatprep.subr.bf16.mxu0 0
        %1829 = vmatpush1.bf16.msra.mxu0 %v1696
        %1830 = vmatprep.subr.bf16.mxu0 0
        %1831 = vmatpush1.bf16.msra.mxu0 %v1697
        %1832 = vmatprep.subr.bf16.mxu0 0
        %1833 = vmatpush1.bf16.msra.mxu0 %v1698
        %1834 = vmatprep.subr.bf16.mxu0 0
        %1835 = vmatpush1.bf16.msra.mxu0 %v1699
        %1836 = vmatprep.subr.bf16.mxu0 0
        %1837 = vmatpush1.bf16.msra.mxu0 %v1700
        %1838 = vmatprep.subr.bf16.mxu0 0
        %1839 = vmatpush1.bf16.msra.mxu0 0
        %1840 = vmatprep.subr.bf16.mxu0 0
        %1841 = vmatpush1.bf16.msra.mxu0 0
        %1842 = vmatprep.subr.bf16.mxu0 0
        %1843 = vmatpush1.bf16.msra.mxu0 0
        %1844 = vmatprep.subr.bf16.mxu0 0
        %1845 = vmatpush1.bf16.msra.mxu0 0
        %1846 = vmatprep.subr.bf16.mxu0 0
        %1847 = vmatpush1.bf16.msra.mxu0 0
        %1848 = vmatprep.subr.bf16.mxu0 0
        %1849 = vmatpush1.bf16.msra.mxu0 0
        %1850 = vmatprep.subr.bf16.mxu0 0
        %1851 = vmatpush1.bf16.msra.mxu0 0
        %1852 = vmatprep.subr.bf16.mxu0 0
        %1853 = vmatpush1.bf16.msra.mxu0 0
        %1854 = vmatprep.mubr.bf16.mxu0 0
        %1855 = vmatmul.mubr.bf16.gmra.mrb[0].mxu0 %v1516
        %v1856 = vpop.f32.mrb[0].mxu0
        %v1857 = vadd.f32 %v1760, %v1856
        %v1858 = vpop.f32.mrb[0].mxu0
        %v1859 = vpop.f32.mrb[0].mxu0
        %v1860 = vadd.f32 %v1763, %v1859
        %v1861 = vpop.f32.mrb[0].mxu0
        %1862 = vmatprep.mubr.bf16.mxu0 0
        %1863 = vmatmul.mubr.bf16.gmra.mrb[0].mxu0 %v1517
        %v1864 = vpop.f32.mrb[0].mxu0
        %v1865 = vadd.f32 %v1768, %v1864
        %v1866 = vpop.f32.mrb[0].mxu0
        %v1867 = vpop.f32.mrb[0].mxu0
        %v1868 = vadd.f32 %v1771, %v1867
        %v1869 = vpop.f32.mrb[0].mxu0
        %1870 = vmatprep.mubr.bf16.mxu0 0
        %1871 = vmatmul.mubr.bf16.gmra.mrb[0].mxu0 %v1518
        %v1872 = vpop.f32.mrb[0].mxu0
        %v1873 = vadd.f32 %v1776, %v1872
        %v1874 = vpop.f32.mrb[0].mxu0
        %v1875 = vpop.f32.mrb[0].mxu0
        %v1876 = vadd.f32 %v1779, %v1875
        %v1877 = vpop.f32.mrb[0].mxu0
        %1878 = vmatprep.mubr.bf16.mxu0 0
        %1879 = vmatmul.mubr.bf16.gmra.mrb[0].mxu0 %v1519
        %v1880 = vpop.f32.mrb[0].mxu0
        %v1881 = vadd.f32 %v1784, %v1880
        %v1882 = vpop.f32.mrb[0].mxu0
        %v1883 = vpop.f32.mrb[0].mxu0
        %v1884 = vadd.f32 %v1787, %v1883
        %v1885 = vpop.f32.mrb[0].mxu0
        %1886 = vmatprep.mubr.bf16.mxu0 0
        %1887 = vmatmul.mubr.bf16.gmra.mrb[0].mxu0 %v1520
        %v1888 = vpop.f32.mrb[0].mxu0
        %v1889 = vadd.f32 %v1792, %v1888
        %v1890 = vpop.f32.mrb[0].mxu0
        %v1891 = vpop.f32.mrb[0].mxu0
        %v1892 = vadd.f32 %v1795, %v1891
        %v1893 = vpop.f32.mrb[0].mxu0
        %1894 = vmatprep.mubr.bf16.mxu0 0
        %1895 = vmatmul.mubr.bf16.gmra.mrb[0].mxu0 %v1521
        %v1896 = vpop.f32.mrb[0].mxu0
        %v1897 = vadd.f32 %v1800, %v1896
        %v1898 = vpop.f32.mrb[0].mxu0
        %v1899 = vpop.f32.mrb[0].mxu0
        %v1900 = vadd.f32 %v1803, %v1899
        %v1901 = vpop.f32.mrb[0].mxu0
        %1902 = vmatprep.mubr.bf16.mxu0 0
        %1903 = vmatmul.mubr.bf16.gmra.mrb[0].mxu0 %v1522
        %v1904 = vpop.f32.mrb[0].mxu0
        %v1905 = vadd.f32 %v1808, %v1904
        %v1906 = vpop.f32.mrb[0].mxu0
        %v1907 = vpop.f32.mrb[0].mxu0
        %v1908 = vadd.f32 %v1811, %v1907
        %v1909 = vpop.f32.mrb[0].mxu0
        %1910 = vmatprep.mubr.bf16.mxu0 0
        %1911 = vmatmul.mubr.bf16.gmra.mrb[0].mxu0 %v1523
        %v1912 = vpop.f32.mrb[0].mxu0
        %v1913 = vadd.f32 %v1816, %v1912
        %v1914 = vpop.f32.mrb[0].mxu0
        %v1915 = vpop.f32.mrb[0].mxu0
        %v1916 = vadd.f32 %v1819, %v1915
        %v1917 = vpop.f32.mrb[0].mxu0
        %1918 = vdwg.mxu0
        %v1919 = vadd.f32 %v1298, %v1857
        %v1920 = vadd.f32 %v1301, %v1860
        %v1921 = vadd.f32 %v1306, %v1865
        %v1922 = vadd.f32 %v1309, %v1868
        %v1923 = vadd.f32 %v1314, %v1873
        %v1924 = vadd.f32 %v1317, %v1876
        %v1925 = vadd.f32 %v1322, %v1881
        %v1926 = vadd.f32 %v1325, %v1884
        %v1927 = vadd.f32 %v1330, %v1889
        %v1928 = vadd.f32 %v1333, %v1892
        %v1929 = vadd.f32 %v1338, %v1897
        %v1930 = vadd.f32 %v1341, %v1900
        %v1931 = vadd.f32 %v1346, %v1905
        %v1932 = vadd.f32 %v1349, %v1908
        %v1933 = vadd.f32 %v1354, %v1913
        %v1934 = vadd.f32 %v1357, %v1916
        %v1936 = vlaneseq
        %v1937 = vshrl.u32 %v1936, 7
        %v1938 = vsub.s32 0, %v1937
        %v1939 = vrot.slane %v226, %v1938
        %v1941 = vadd.f32 %v1919, %v1939
        %v1942 = vadd.f32 %v1920, %v1939
        %v1943 = vadd.f32 %v1921, %v1939
        %v1944 = vadd.f32 %v1922, %v1939
        %v1945 = vadd.f32 %v1923, %v1939
        %v1946 = vadd.f32 %v1924, %v1939
        %v1947 = vadd.f32 %v1925, %v1939
        %v1948 = vadd.f32 %v1926, %v1939
        %v1949 = vadd.f32 %v1927, %v1939
        %v1950 = vadd.f32 %v1928, %v1939
        %v1951 = vadd.f32 %v1929, %v1939
        %v1952 = vadd.f32 %v1930, %v1939
        %v1953 = vadd.f32 %v1931, %v1939
        %v1954 = vadd.f32 %v1932, %v1939
        %v1955 = vadd.f32 %v1933, %v1939
        %v1956 = vadd.f32 %v1934, %v1939
        %v1957 = vmax.f32 %v1941, 0.0
        %v1958 = vmax.f32 %v1942, 0.0
        %v1959 = vmax.f32 %v1943, 0.0
        %v1960 = vmax.f32 %v1944, 0.0
        %v1961 = vmax.f32 %v1945, 0.0
        %v1962 = vmax.f32 %v1946, 0.0
        %v1963 = vmax.f32 %v1947, 0.0
        %v1964 = vmax.f32 %v1948, 0.0
        %v1965 = vmax.f32 %v1949, 0.0
        %v1966 = vmax.f32 %v1950, 0.0
        %v1967 = vmax.f32 %v1951, 0.0
        %v1968 = vmax.f32 %v1952, 0.0
        %v1969 = vmax.f32 %v1953, 0.0
        %v1970 = vmax.f32 %v1954, 0.0
        %v1971 = vmax.f32 %v1955, 0.0
        %v1972 = vmax.f32 %v1956, 0.0
        %v1973 = vpack.c.bf16 %v1958, %v1957
        %v1974 = vpack.c.bf16 %v1960, %v1959
        %v1975 = vpack.c.bf16 %v1962, %v1961
        %v1976 = vpack.c.bf16 %v1964, %v1963
        %v1977 = vpack.c.bf16 %v1966, %v1965
        %v1978 = vpack.c.bf16 %v1968, %v1967
        %v1979 = vpack.c.bf16 %v1970, %v1969
        %v1980 = vpack.c.bf16 %v1972, %v1971
        %s1981 = smul.addr %s463, 8
        %s1982 = scalar_lea.vmem [#allocation2], %s1981
        %1983 = vst [vmem:[%s1982] sm:$0xff] %v1973
        %1984 = vst [vmem:[%s1982 + $0x8] sm:$0xff] %v1974
        %1985 = vst [vmem:[%s1982 + $0x10] sm:$0xff] %v1975
        %1986 = vst [vmem:[%s1982 + $0x18] sm:$0xff] %v1976
        %1987 = vst [vmem:[%s1982 + $0x20] sm:$0xff] %v1977
        %1988 = vst [vmem:[%s1982 + $0x28] sm:$0xff] %v1978
        %1989 = vst [vmem:[%s1982 + $0x30] sm:$0xff] %v1979
        %1990 = vst [vmem:[%s1982 + $0x38] sm:$0xff] %v1980
      $region45: #{basic_block_forward.1} parent=39 // loop_footer
        %s236 = sadd.s32 1, %s232
      $region46: #{basic_block_forward.1} parent=39 // loop_footer_branch
        %231 = sbr.rel target = $region42
      $region47: #{basic_block_forward.1} parent=39 // loop_exit
        _
      loop: start=0, step=1, limit=2
      $region48: #{basic_block_forward.1} parent=39 // loop_pre_header
        _
      $region49: #{basic_block_forward.1} parent=39 // loop_header
        %s1992 = sphi 0, %s1996
        %p1993 = scmp.ge.s32.totalorder %s1992, 2
      $region50: #{basic_block_forward.1} parent=39 // loop_header_branch
        %1995 = sbr.rel (%p1993) target = $region54
      $region51: #{basic_block_forward.1} parent=39 // loop_body
        %s1997 = smul.u32 %s1992, 8
        %s1998 = smul.addr %s1997, 8
        %s1999 = scalar_lea.vmem [#allocation2], %s1998
        %v2000 = vld [vmem:[%s1999] sm:$0xff]
        %v2001 = vld [vmem:[%s1999 + $0x8] sm:$0xff]
        %v2002 = vld [vmem:[%s1999 + $0x10] sm:$0xff]
        %v2003 = vld [vmem:[%s1999 + $0x18] sm:$0xff]
        %v2004 = vld [vmem:[%s1999 + $0x20] sm:$0xff]
        %v2005 = vld [vmem:[%s1999 + $0x28] sm:$0xff]
        %v2006 = vld [vmem:[%s1999 + $0x30] sm:$0xff]
        %v2007 = vld [vmem:[%s1999 + $0x38] sm:$0xff]
        %v2009 = vshrl.u32 %v2000, 16
        %v2011 = vrot.slane %v2009, 7
        %v2012 = vshll.u32 %v2000, 16
        %v2014 = vor.u32 %v2011, %v2012
        %v2016 = vshrl.u32 %v2001, 16
        %v2018 = vrot.slane %v2016, 7
        %v2019 = vshll.u32 %v2001, 16
        %v2021 = vor.u32 %v2018, %v2019
        %v2023 = vshrl.u32 %v2002, 16
        %v2025 = vrot.slane %v2023, 7
        %v2026 = vshll.u32 %v2002, 16
        %v2028 = vor.u32 %v2025, %v2026
        %v2030 = vshrl.u32 %v2003, 16
        %v2032 = vrot.slane %v2030, 7
        %v2033 = vshll.u32 %v2003, 16
        %v2035 = vor.u32 %v2032, %v2033
        %v2037 = vshrl.u32 %v2004, 16
        %v2039 = vrot.slane %v2037, 7
        %v2040 = vshll.u32 %v2004, 16
        %v2042 = vor.u32 %v2039, %v2040
        %v2044 = vshrl.u32 %v2005, 16
        %v2046 = vrot.slane %v2044, 7
        %v2047 = vshll.u32 %v2005, 16
        %v2049 = vor.u32 %v2046, %v2047
        %v2051 = vshrl.u32 %v2006, 16
        %v2053 = vrot.slane %v2051, 7
        %v2054 = vshll.u32 %v2006, 16
        %v2056 = vor.u32 %v2053, %v2054
        %v2058 = vshrl.u32 %v2007, 16
        %v2060 = vrot.slane %v2058, 7
        %v2061 = vshll.u32 %v2007, 16
        %v2063 = vor.u32 %v2060, %v2061
        %vm2072 = vcmask 1040384
        %vm2073 = vsmask.f32 256
        %vm2074 = vmand %vm2072, %vm2073
        %v2075 = vsel %vm2074, 0, %v2014
        %v2076 = vsel %vm2074, 0, %v2021
        %v2077 = vsel %vm2074, 0, %v2028
        %v2078 = vsel %vm2074, 0, %v2035
        %v2079 = vsel %vm2074, 0, %v2042
        %v2080 = vsel %vm2074, 0, %v2049
        %v2081 = vsel %vm2074, 0, %v2056
        %v2082 = vsel %vm2074, 0, %v2063
        %v2083 = vrot.slane %v2012, 1
        %v2084 = vor.u32 %v2009, %v2083
        %v2085 = vrot.slane %v2019, 1
        %v2086 = vor.u32 %v2016, %v2085
        %v2087 = vrot.slane %v2026, 1
        %v2088 = vor.u32 %v2023, %v2087
        %v2089 = vrot.slane %v2033, 1
        %v2090 = vor.u32 %v2030, %v2089
        %v2091 = vrot.slane %v2040, 1
        %v2092 = vor.u32 %v2037, %v2091
        %v2093 = vrot.slane %v2047, 1
        %v2094 = vor.u32 %v2044, %v2093
        %v2095 = vrot.slane %v2054, 1
        %v2096 = vor.u32 %v2051, %v2095
        %v2097 = vrot.slane %v2061, 1
        %v2098 = vor.u32 %v2058, %v2097
        %vm2107 = vcmask 1047552
        %vm2108 = vsmask.f32 7424
        %vm2109 = vmand %vm2107, %vm2108
        %v2110 = vsel %vm2109, %v2084, 0
        %v2111 = vsel %vm2109, %v2086, 0
        %v2112 = vsel %vm2109, %v2088, 0
        %v2113 = vsel %vm2109, %v2090, 0
        %v2114 = vsel %vm2109, %v2092, 0
        %v2115 = vsel %vm2109, %v2094, 0
        %v2116 = vsel %vm2109, %v2096, 0
        %v2117 = vsel %vm2109, %v2098, 0
        %v2118 = vld [vmem:[%s3] sm:$0xf]
        %v2119 = vld [vmem:[%s3 + $0x4] sm:$0xf]
        %v2120 = vld [vmem:[%s3 + $0x8] sm:$0xf]
        %v2121 = vld [vmem:[%s3 + $0xc] sm:$0xf]
        %v2122 = vld [vmem:[%s3 + $0x10] sm:$0xf]
        %v2123 = vld [vmem:[%s3 + $0x14] sm:$0xf]
        %v2124 = vld [vmem:[%s3 + $0x18] sm:$0xf]
        %v2125 = vld [vmem:[%s3 + $0x1c] sm:$0xf]
        %v2126 = vld [vmem:[%s3 + $0x20] sm:$0xf]
        %v2127 = vld [vmem:[%s3 + $0x24] sm:$0xf]
        %v2128 = vld [vmem:[%s3 + $0x28] sm:$0xf]
        %v2129 = vld [vmem:[%s3 + $0x2c] sm:$0xf]
        %v2130 = vld [vmem:[%s3 + $0x30] sm:$0xf]
        %v2131 = vld [vmem:[%s3 + $0x34] sm:$0xf]
        %v2132 = vld [vmem:[%s3 + $0x38] sm:$0xf]
        %v2133 = vld [vmem:[%s3 + $0x3c] sm:$0xf]
        %v2134 = vld [vmem:[%s3 + $0x40] sm:$0xf]
        %v2135 = vld [vmem:[%s3 + $0x44] sm:$0xf]
        %v2136 = vld [vmem:[%s3 + $0x48] sm:$0xf]
        %v2137 = vld [vmem:[%s3 + $0x4c] sm:$0xf]
        %v2138 = vld [vmem:[%s3 + $0x50] sm:$0xf]
        %v2139 = vld [vmem:[%s3 + $0x54] sm:$0xf]
        %v2140 = vld [vmem:[%s3 + $0x58] sm:$0xf]
        %v2141 = vld [vmem:[%s3 + $0x5c] sm:$0xf]
        %v2142 = vld [vmem:[%s3 + $0x60] sm:$0xf]
        %v2143 = vld [vmem:[%s3 + $0x64] sm:$0xf]
        %v2144 = vld [vmem:[%s3 + $0x68] sm:$0xf]
        %v2145 = vld [vmem:[%s3 + $0x6c] sm:$0xf]
        %v2146 = vld [vmem:[%s3 + $0x70] sm:$0xf]
        %v2147 = vld [vmem:[%s3 + $0x74] sm:$0xf]
        %v2148 = vld [vmem:[%s3 + $0x78] sm:$0xf]
        %v2149 = vld [vmem:[%s3 + $0x7c] sm:$0xf]
        %v2150 = vld [vmem:[%s3 + $0x80] sm:$0xf]
        %v2151 = vld [vmem:[%s3 + $0x84] sm:$0xf]
        %v2152 = vld [vmem:[%s3 + $0x88] sm:$0xf]
        %v2153 = vld [vmem:[%s3 + $0x8c] sm:$0xf]
        %v2154 = vld [vmem:[%s3 + $0x90] sm:$0xf]
        %v2155 = vld [vmem:[%s3 + $0x94] sm:$0xf]
        %v2156 = vld [vmem:[%s3 + $0x98] sm:$0xf]
        %v2157 = vld [vmem:[%s3 + $0x9c] sm:$0xf]
        %v2158 = vld [vmem:[%s3 + $0xa0] sm:$0xf]
        %v2159 = vld [vmem:[%s3 + $0xa4] sm:$0xf]
        %v2160 = vld [vmem:[%s3 + $0xa8] sm:$0xf]
        %v2161 = vld [vmem:[%s3 + $0xac] sm:$0xf]
        %v2162 = vld [vmem:[%s3 + $0xb0] sm:$0xf]
        %v2163 = vld [vmem:[%s3 + $0xb4] sm:$0xf]
        %v2164 = vld [vmem:[%s3 + $0xb8] sm:$0xf]
        %v2165 = vld [vmem:[%s3 + $0xbc] sm:$0xf]
        %s2166 = sadd.s32 %s1997, 1
        %s2167 = smul.addr %s2166, 8
        %s2168 = scalar_lea.vmem [#allocation2], %s2167
        %v2169 = vld [vmem:[%s2168] sm:$0xff]
        %v2170 = vld [vmem:[%s2168 + $0x8] sm:$0xff]
        %v2171 = vld [vmem:[%s2168 + $0x10] sm:$0xff]
        %v2172 = vld [vmem:[%s2168 + $0x18] sm:$0xff]
        %v2173 = vld [vmem:[%s2168 + $0x20] sm:$0xff]
        %v2174 = vld [vmem:[%s2168 + $0x28] sm:$0xff]
        %v2175 = vld [vmem:[%s2168 + $0x30] sm:$0xff]
        %v2176 = vld [vmem:[%s2168 + $0x38] sm:$0xff]
        %v2178 = vshrl.u32 %v2169, 16
        %v2180 = vrot.slane %v2178, 7
        %v2181 = vshll.u32 %v2169, 16
        %v2183 = vor.u32 %v2180, %v2181
        %v2185 = vshrl.u32 %v2170, 16
        %v2187 = vrot.slane %v2185, 7
        %v2188 = vshll.u32 %v2170, 16
        %v2190 = vor.u32 %v2187, %v2188
        %v2192 = vshrl.u32 %v2171, 16
        %v2194 = vrot.slane %v2192, 7
        %v2195 = vshll.u32 %v2171, 16
        %v2197 = vor.u32 %v2194, %v2195
        %v2199 = vshrl.u32 %v2172, 16
        %v2201 = vrot.slane %v2199, 7
        %v2202 = vshll.u32 %v2172, 16
        %v2204 = vor.u32 %v2201, %v2202
        %v2206 = vshrl.u32 %v2173, 16
        %v2208 = vrot.slane %v2206, 7
        %v2209 = vshll.u32 %v2173, 16
        %v2211 = vor.u32 %v2208, %v2209
        %v2213 = vshrl.u32 %v2174, 16
        %v2215 = vrot.slane %v2213, 7
        %v2216 = vshll.u32 %v2174, 16
        %v2218 = vor.u32 %v2215, %v2216
        %v2220 = vshrl.u32 %v2175, 16
        %v2222 = vrot.slane %v2220, 7
        %v2223 = vshll.u32 %v2175, 16
        %v2225 = vor.u32 %v2222, %v2223
        %v2227 = vshrl.u32 %v2176, 16
        %v2229 = vrot.slane %v2227, 7
        %v2230 = vshll.u32 %v2176, 16
        %v2232 = vor.u32 %v2229, %v2230
        %v2241 = vsel %vm2074, 0, %v2183
        %v2242 = vsel %vm2074, 0, %v2190
        %v2243 = vsel %vm2074, 0, %v2197
        %v2244 = vsel %vm2074, 0, %v2204
        %v2245 = vsel %vm2074, 0, %v2211
        %v2246 = vsel %vm2074, 0, %v2218
        %v2247 = vsel %vm2074, 0, %v2225
        %v2248 = vsel %vm2074, 0, %v2232
        %v2249 = vrot.slane %v2181, 1
        %v2250 = vor.u32 %v2178, %v2249
        %v2251 = vrot.slane %v2188, 1
        %v2252 = vor.u32 %v2185, %v2251
        %v2253 = vrot.slane %v2195, 1
        %v2254 = vor.u32 %v2192, %v2253
        %v2255 = vrot.slane %v2202, 1
        %v2256 = vor.u32 %v2199, %v2255
        %v2257 = vrot.slane %v2209, 1
        %v2258 = vor.u32 %v2206, %v2257
        %v2259 = vrot.slane %v2216, 1
        %v2260 = vor.u32 %v2213, %v2259
        %v2261 = vrot.slane %v2223, 1
        %v2262 = vor.u32 %v2220, %v2261
        %v2263 = vrot.slane %v2230, 1
        %v2264 = vor.u32 %v2227, %v2263
        %v2273 = vsel %vm2109, %v2250, 0
        %v2274 = vsel %vm2109, %v2252, 0
        %v2275 = vsel %vm2109, %v2254, 0
        %v2276 = vsel %vm2109, %v2256, 0
        %v2277 = vsel %vm2109, %v2258, 0
        %v2278 = vsel %vm2109, %v2260, 0
        %v2279 = vsel %vm2109, %v2262, 0
        %v2280 = vsel %vm2109, %v2264, 0
        %s2281 = scalar_lea.vmem %s3, 192
        %v2282 = vld [vmem:[%s2281] sm:$0xf]
        %v2283 = vld [vmem:[%s2281 + $0x4] sm:$0xf]
        %v2284 = vld [vmem:[%s2281 + $0x8] sm:$0xf]
        %v2285 = vld [vmem:[%s2281 + $0xc] sm:$0xf]
        %v2286 = vld [vmem:[%s2281 + $0x10] sm:$0xf]
        %v2287 = vld [vmem:[%s2281 + $0x14] sm:$0xf]
        %v2288 = vld [vmem:[%s2281 + $0x18] sm:$0xf]
        %v2289 = vld [vmem:[%s2281 + $0x1c] sm:$0xf]
        %v2290 = vld [vmem:[%s2281 + $0x20] sm:$0xf]
        %v2291 = vld [vmem:[%s2281 + $0x24] sm:$0xf]
        %v2292 = vld [vmem:[%s2281 + $0x28] sm:$0xf]
        %v2293 = vld [vmem:[%s2281 + $0x2c] sm:$0xf]
        %v2294 = vld [vmem:[%s2281 + $0x30] sm:$0xf]
        %v2295 = vld [vmem:[%s2281 + $0x34] sm:$0xf]
        %v2296 = vld [vmem:[%s2281 + $0x38] sm:$0xf]
        %v2297 = vld [vmem:[%s2281 + $0x3c] sm:$0xf]
        %v2298 = vld [vmem:[%s2281 + $0x40] sm:$0xf]
        %v2299 = vld [vmem:[%s2281 + $0x44] sm:$0xf]
        %v2300 = vld [vmem:[%s2281 + $0x48] sm:$0xf]
        %v2301 = vld [vmem:[%s2281 + $0x4c] sm:$0xf]
        %v2302 = vld [vmem:[%s2281 + $0x50] sm:$0xf]
        %v2303 = vld [vmem:[%s2281 + $0x54] sm:$0xf]
        %v2304 = vld [vmem:[%s2281 + $0x58] sm:$0xf]
        %v2305 = vld [vmem:[%s2281 + $0x5c] sm:$0xf]
        %v2306 = vld [vmem:[%s2281 + $0x60] sm:$0xf]
        %v2307 = vld [vmem:[%s2281 + $0x64] sm:$0xf]
        %v2308 = vld [vmem:[%s2281 + $0x68] sm:$0xf]
        %v2309 = vld [vmem:[%s2281 + $0x6c] sm:$0xf]
        %v2310 = vld [vmem:[%s2281 + $0x70] sm:$0xf]
        %v2311 = vld [vmem:[%s2281 + $0x74] sm:$0xf]
        %v2312 = vld [vmem:[%s2281 + $0x78] sm:$0xf]
        %v2313 = vld [vmem:[%s2281 + $0x7c] sm:$0xf]
        %v2314 = vld [vmem:[%s2281 + $0x80] sm:$0xf]
        %v2315 = vld [vmem:[%s2281 + $0x84] sm:$0xf]
        %v2316 = vld [vmem:[%s2281 + $0x88] sm:$0xf]
        %v2317 = vld [vmem:[%s2281 + $0x8c] sm:$0xf]
        %v2318 = vld [vmem:[%s2281 + $0x90] sm:$0xf]
        %v2319 = vld [vmem:[%s2281 + $0x94] sm:$0xf]
        %v2320 = vld [vmem:[%s2281 + $0x98] sm:$0xf]
        %v2321 = vld [vmem:[%s2281 + $0x9c] sm:$0xf]
        %v2322 = vld [vmem:[%s2281 + $0xa0] sm:$0xf]
        %v2323 = vld [vmem:[%s2281 + $0xa4] sm:$0xf]
        %v2324 = vld [vmem:[%s2281 + $0xa8] sm:$0xf]
        %v2325 = vld [vmem:[%s2281 + $0xac] sm:$0xf]
        %v2326 = vld [vmem:[%s2281 + $0xb0] sm:$0xf]
        %v2327 = vld [vmem:[%s2281 + $0xb4] sm:$0xf]
        %v2328 = vld [vmem:[%s2281 + $0xb8] sm:$0xf]
        %v2329 = vld [vmem:[%s2281 + $0xbc] sm:$0xf]
        %v2378 = vunpack.c.l.b16 %v2282
        %v2379 = vunpack.c.l.b16 %v2283
        %v2380 = vunpack.c.l.b16 %v2284
        %v2381 = vunpack.c.l.b16 %v2285
        %v2382 = vunpack.c.l.b16 %v2286
        %v2383 = vunpack.c.l.b16 %v2287
        %v2384 = vunpack.c.l.b16 %v2288
        %v2385 = vunpack.c.l.b16 %v2289
        %v2386 = vunpack.c.l.b16 %v2290
        %v2387 = vunpack.c.l.b16 %v2291
        %v2388 = vunpack.c.l.b16 %v2292
        %v2389 = vunpack.c.l.b16 %v2293
        %v2390 = vunpack.c.l.b16 %v2294
        %v2391 = vunpack.c.l.b16 %v2295
        %v2392 = vunpack.c.l.b16 %v2296
        %v2393 = vunpack.c.l.b16 %v2297
        %v2394 = vunpack.c.l.b16 %v2298
        %v2395 = vunpack.c.l.b16 %v2299
        %v2396 = vunpack.c.l.b16 %v2300
        %v2397 = vunpack.c.l.b16 %v2301
        %v2398 = vunpack.c.l.b16 %v2302
        %v2399 = vunpack.c.l.b16 %v2303
        %v2400 = vunpack.c.l.b16 %v2304
        %v2401 = vunpack.c.l.b16 %v2305
        %v2402 = vunpack.c.l.b16 %v2306
        %v2403 = vunpack.c.l.b16 %v2307
        %v2404 = vunpack.c.l.b16 %v2308
        %v2405 = vunpack.c.l.b16 %v2309
        %v2406 = vunpack.c.l.b16 %v2310
        %v2407 = vunpack.c.l.b16 %v2311
        %v2408 = vunpack.c.l.b16 %v2312
        %v2409 = vunpack.c.l.b16 %v2313
        %v2410 = vunpack.c.l.b16 %v2314
        %v2411 = vunpack.c.l.b16 %v2315
        %v2412 = vunpack.c.l.b16 %v2316
        %v2413 = vunpack.c.l.b16 %v2317
        %v2414 = vunpack.c.l.b16 %v2318
        %v2415 = vunpack.c.l.b16 %v2319
        %v2416 = vunpack.c.l.b16 %v2320
        %v2417 = vunpack.c.l.b16 %v2321
        %v2418 = vunpack.c.l.b16 %v2322
        %v2419 = vunpack.c.l.b16 %v2323
        %v2420 = vunpack.c.l.b16 %v2324
        %v2421 = vunpack.c.l.b16 %v2325
        %v2422 = vunpack.c.l.b16 %v2326
        %v2423 = vunpack.c.l.b16 %v2327
        %v2424 = vunpack.c.l.b16 %v2328
        %v2425 = vunpack.c.l.b16 %v2329
        %v2426 = vpack.c.b16 %v2379, %v2378
        %v2427 = vpack.c.b16 %v2381, %v2380
        %v2428 = vpack.c.b16 %v2383, %v2382
        %v2429 = vpack.c.b16 %v2385, %v2384
        %v2430 = vpack.c.b16 %v2387, %v2386
        %v2431 = vpack.c.b16 %v2389, %v2388
        %v2432 = vpack.c.b16 %v2391, %v2390
        %v2433 = vpack.c.b16 %v2393, %v2392
        %v2434 = vpack.c.b16 %v2395, %v2394
        %v2435 = vpack.c.b16 %v2397, %v2396
        %v2436 = vpack.c.b16 %v2399, %v2398
        %v2437 = vpack.c.b16 %v2401, %v2400
        %v2438 = vpack.c.b16 %v2403, %v2402
        %v2439 = vpack.c.b16 %v2405, %v2404
        %v2440 = vpack.c.b16 %v2407, %v2406
        %v2441 = vpack.c.b16 %v2409, %v2408
        %v2442 = vpack.c.b16 %v2411, %v2410
        %v2443 = vpack.c.b16 %v2413, %v2412
        %v2444 = vpack.c.b16 %v2415, %v2414
        %v2445 = vpack.c.b16 %v2417, %v2416
        %v2446 = vpack.c.b16 %v2419, %v2418
        %v2447 = vpack.c.b16 %v2421, %v2420
        %v2448 = vpack.c.b16 %v2423, %v2422
        %v2449 = vpack.c.b16 %v2425, %v2424
        %2474 = vmatprep.subr.bf16.mxu0 0
        %2475 = vmatpush1.bf16.msra.mxu0 %v2426
        %2476 = vmatprep.subr.bf16.mxu0 0
        %2477 = vmatpush1.bf16.msra.mxu0 %v2427
        %2478 = vmatprep.subr.bf16.mxu0 0
        %2479 = vmatpush1.bf16.msra.mxu0 %v2428
        %2480 = vmatprep.subr.bf16.mxu0 0
        %2481 = vmatpush1.bf16.msra.mxu0 %v2429
        %2482 = vmatprep.subr.bf16.mxu0 0
        %2483 = vmatpush1.bf16.msra.mxu0 %v2430
        %2484 = vmatprep.subr.bf16.mxu0 0
        %2485 = vmatpush1.bf16.msra.mxu0 %v2431
        %2486 = vmatprep.subr.bf16.mxu0 0
        %2487 = vmatpush1.bf16.msra.mxu0 %v2432
        %2488 = vmatprep.subr.bf16.mxu0 0
        %2489 = vmatpush1.bf16.msra.mxu0 %v2433
        %2490 = vmatprep.subr.bf16.mxu0 0
        %2491 = vmatpush1.bf16.msra.mxu0 %v2434
        %2492 = vmatprep.subr.bf16.mxu0 0
        %2493 = vmatpush1.bf16.msra.mxu0 %v2435
        %2494 = vmatprep.subr.bf16.mxu0 0
        %2495 = vmatpush1.bf16.msra.mxu0 %v2436
        %2496 = vmatprep.subr.bf16.mxu0 0
        %2497 = vmatpush1.bf16.msra.mxu0 %v2437
        %2498 = vmatprep.subr.bf16.mxu0 0
        %2499 = vmatpush1.bf16.msra.mxu0 %v2438
        %2500 = vmatprep.subr.bf16.mxu0 0
        %2501 = vmatpush1.bf16.msra.mxu0 %v2439
        %2502 = vmatprep.subr.bf16.mxu0 0
        %2503 = vmatpush1.bf16.msra.mxu0 %v2440
        %2504 = vmatprep.subr.bf16.mxu0 0
        %2505 = vmatpush1.bf16.msra.mxu0 %v2441
        %2506 = vmatprep.mubr.bf16.mxu0 %v2169
        %2507 = vmatmul.mubr.bf16.gmra.mrb[0].mxu0 %v2241
        %v2508 = vpop.f32.mrb[0].mxu0
        %v2509 = vadd.f32 0.0, %v2508
        %v2510 = vpop.f32.mrb[0].mxu0
        %v2511 = vpop.f32.mrb[0].mxu0
        %v2512 = vadd.f32 0.0, %v2511
        %v2513 = vpop.f32.mrb[0].mxu0
        %2514 = vmatprep.mubr.bf16.mxu0 %v2170
        %2515 = vmatmul.mubr.bf16.gmra.mrb[0].mxu0 %v2242
        %v2516 = vpop.f32.mrb[0].mxu0
        %v2517 = vadd.f32 0.0, %v2516
        %v2518 = vpop.f32.mrb[0].mxu0
        %v2519 = vpop.f32.mrb[0].mxu0
        %v2520 = vadd.f32 0.0, %v2519
        %v2521 = vpop.f32.mrb[0].mxu0
        %2522 = vmatprep.mubr.bf16.mxu0 %v2171
        %2523 = vmatmul.mubr.bf16.gmra.mrb[0].mxu0 %v2243
        %v2524 = vpop.f32.mrb[0].mxu0
        %v2525 = vadd.f32 0.0, %v2524
        %v2526 = vpop.f32.mrb[0].mxu0
        %v2527 = vpop.f32.mrb[0].mxu0
        %v2528 = vadd.f32 0.0, %v2527
        %v2529 = vpop.f32.mrb[0].mxu0
        %2530 = vmatprep.mubr.bf16.mxu0 %v2172
        %2531 = vmatmul.mubr.bf16.gmra.mrb[0].mxu0 %v2244
        %v2532 = vpop.f32.mrb[0].mxu0
        %v2533 = vadd.f32 0.0, %v2532
        %v2534 = vpop.f32.mrb[0].mxu0
        %v2535 = vpop.f32.mrb[0].mxu0
        %v2536 = vadd.f32 0.0, %v2535
        %v2537 = vpop.f32.mrb[0].mxu0
        %2538 = vmatprep.mubr.bf16.mxu0 %v2173
        %2539 = vmatmul.mubr.bf16.gmra.mrb[0].mxu0 %v2245
        %v2540 = vpop.f32.mrb[0].mxu0
        %v2541 = vadd.f32 0.0, %v2540
        %v2542 = vpop.f32.mrb[0].mxu0
        %v2543 = vpop.f32.mrb[0].mxu0
        %v2544 = vadd.f32 0.0, %v2543
        %v2545 = vpop.f32.mrb[0].mxu0
        %2546 = vmatprep.mubr.bf16.mxu0 %v2174
        %2547 = vmatmul.mubr.bf16.gmra.mrb[0].mxu0 %v2246
        %v2548 = vpop.f32.mrb[0].mxu0
        %v2549 = vadd.f32 0.0, %v2548
        %v2550 = vpop.f32.mrb[0].mxu0
        %v2551 = vpop.f32.mrb[0].mxu0
        %v2552 = vadd.f32 0.0, %v2551
        %v2553 = vpop.f32.mrb[0].mxu0
        %2554 = vmatprep.mubr.bf16.mxu0 %v2175
        %2555 = vmatmul.mubr.bf16.gmra.mrb[0].mxu0 %v2247
        %v2556 = vpop.f32.mrb[0].mxu0
        %v2557 = vadd.f32 0.0, %v2556
        %v2558 = vpop.f32.mrb[0].mxu0
        %v2559 = vpop.f32.mrb[0].mxu0
        %v2560 = vadd.f32 0.0, %v2559
        %v2561 = vpop.f32.mrb[0].mxu0
        %2562 = vmatprep.mubr.bf16.mxu0 %v2176
        %2563 = vmatmul.mubr.bf16.gmra.mrb[0].mxu0 %v2248
        %v2564 = vpop.f32.mrb[0].mxu0
        %v2565 = vadd.f32 0.0, %v2564
        %v2566 = vpop.f32.mrb[0].mxu0
        %v2567 = vpop.f32.mrb[0].mxu0
        %v2568 = vadd.f32 0.0, %v2567
        %v2569 = vpop.f32.mrb[0].mxu0
        %2570 = vdwg.mxu0
        %2571 = vmatprep.subr.bf16.mxu0 0
        %2572 = vmatpush1.bf16.msra.mxu0 %v2442
        %2573 = vmatprep.subr.bf16.mxu0 0
        %2574 = vmatpush1.bf16.msra.mxu0 %v2443
        %2575 = vmatprep.subr.bf16.mxu0 0
        %2576 = vmatpush1.bf16.msra.mxu0 %v2444
        %2577 = vmatprep.subr.bf16.mxu0 0
        %2578 = vmatpush1.bf16.msra.mxu0 %v2445
        %2579 = vmatprep.subr.bf16.mxu0 0
        %2580 = vmatpush1.bf16.msra.mxu0 %v2446
        %2581 = vmatprep.subr.bf16.mxu0 0
        %2582 = vmatpush1.bf16.msra.mxu0 %v2447
        %2583 = vmatprep.subr.bf16.mxu0 0
        %2584 = vmatpush1.bf16.msra.mxu0 %v2448
        %2585 = vmatprep.subr.bf16.mxu0 0
        %2586 = vmatpush1.bf16.msra.mxu0 %v2449
        %2587 = vmatprep.subr.bf16.mxu0 0
        %2588 = vmatpush1.bf16.msra.mxu0 0
        %2589 = vmatprep.subr.bf16.mxu0 0
        %2590 = vmatpush1.bf16.msra.mxu0 0
        %2591 = vmatprep.subr.bf16.mxu0 0
        %2592 = vmatpush1.bf16.msra.mxu0 0
        %2593 = vmatprep.subr.bf16.mxu0 0
        %2594 = vmatpush1.bf16.msra.mxu0 0
        %2595 = vmatprep.subr.bf16.mxu0 0
        %2596 = vmatpush1.bf16.msra.mxu0 0
        %2597 = vmatprep.subr.bf16.mxu0 0
        %2598 = vmatpush1.bf16.msra.mxu0 0
        %2599 = vmatprep.subr.bf16.mxu0 0
        %2600 = vmatpush1.bf16.msra.mxu0 0
        %2601 = vmatprep.subr.bf16.mxu0 0
        %2602 = vmatpush1.bf16.msra.mxu0 0
        %2603 = vmatprep.mubr.bf16.mxu0 0
        %2604 = vmatmul.mubr.bf16.gmra.mrb[0].mxu0 %v2273
        %v2605 = vpop.f32.mrb[0].mxu0
        %v2606 = vadd.f32 %v2509, %v2605
        %v2607 = vpop.f32.mrb[0].mxu0
        %v2608 = vpop.f32.mrb[0].mxu0
        %v2609 = vadd.f32 %v2512, %v2608
        %v2610 = vpop.f32.mrb[0].mxu0
        %2611 = vmatprep.mubr.bf16.mxu0 0
        %2612 = vmatmul.mubr.bf16.gmra.mrb[0].mxu0 %v2274
        %v2613 = vpop.f32.mrb[0].mxu0
        %v2614 = vadd.f32 %v2517, %v2613
        %v2615 = vpop.f32.mrb[0].mxu0
        %v2616 = vpop.f32.mrb[0].mxu0
        %v2617 = vadd.f32 %v2520, %v2616
        %v2618 = vpop.f32.mrb[0].mxu0
        %2619 = vmatprep.mubr.bf16.mxu0 0
        %2620 = vmatmul.mubr.bf16.gmra.mrb[0].mxu0 %v2275
        %v2621 = vpop.f32.mrb[0].mxu0
        %v2622 = vadd.f32 %v2525, %v2621
        %v2623 = vpop.f32.mrb[0].mxu0
        %v2624 = vpop.f32.mrb[0].mxu0
        %v2625 = vadd.f32 %v2528, %v2624
        %v2626 = vpop.f32.mrb[0].mxu0
        %2627 = vmatprep.mubr.bf16.mxu0 0
        %2628 = vmatmul.mubr.bf16.gmra.mrb[0].mxu0 %v2276
        %v2629 = vpop.f32.mrb[0].mxu0
        %v2630 = vadd.f32 %v2533, %v2629
        %v2631 = vpop.f32.mrb[0].mxu0
        %v2632 = vpop.f32.mrb[0].mxu0
        %v2633 = vadd.f32 %v2536, %v2632
        %v2634 = vpop.f32.mrb[0].mxu0
        %2635 = vmatprep.mubr.bf16.mxu0 0
        %2636 = vmatmul.mubr.bf16.gmra.mrb[0].mxu0 %v2277
        %v2637 = vpop.f32.mrb[0].mxu0
        %v2638 = vadd.f32 %v2541, %v2637
        %v2639 = vpop.f32.mrb[0].mxu0
        %v2640 = vpop.f32.mrb[0].mxu0
        %v2641 = vadd.f32 %v2544, %v2640
        %v2642 = vpop.f32.mrb[0].mxu0
        %2643 = vmatprep.mubr.bf16.mxu0 0
        %2644 = vmatmul.mubr.bf16.gmra.mrb[0].mxu0 %v2278
        %v2645 = vpop.f32.mrb[0].mxu0
        %v2646 = vadd.f32 %v2549, %v2645
        %v2647 = vpop.f32.mrb[0].mxu0
        %v2648 = vpop.f32.mrb[0].mxu0
        %v2649 = vadd.f32 %v2552, %v2648
        %v2650 = vpop.f32.mrb[0].mxu0
        %2651 = vmatprep.mubr.bf16.mxu0 0
        %2652 = vmatmul.mubr.bf16.gmra.mrb[0].mxu0 %v2279
        %v2653 = vpop.f32.mrb[0].mxu0
        %v2654 = vadd.f32 %v2557, %v2653
        %v2655 = vpop.f32.mrb[0].mxu0
        %v2656 = vpop.f32.mrb[0].mxu0
        %v2657 = vadd.f32 %v2560, %v2656
        %v2658 = vpop.f32.mrb[0].mxu0
        %2659 = vmatprep.mubr.bf16.mxu0 0
        %2660 = vmatmul.mubr.bf16.gmra.mrb[0].mxu0 %v2280
        %v2661 = vpop.f32.mrb[0].mxu0
        %v2662 = vadd.f32 %v2565, %v2661
        %v2663 = vpop.f32.mrb[0].mxu0
        %v2664 = vpop.f32.mrb[0].mxu0
        %v2665 = vadd.f32 %v2568, %v2664
        %v2666 = vpop.f32.mrb[0].mxu0
        %2667 = vdwg.mxu0
        %v2716 = vunpack.c.l.b16 %v2118
        %v2717 = vunpack.c.l.b16 %v2119
        %v2718 = vunpack.c.l.b16 %v2120
        %v2719 = vunpack.c.l.b16 %v2121
        %v2720 = vunpack.c.l.b16 %v2122
        %v2721 = vunpack.c.l.b16 %v2123
        %v2722 = vunpack.c.l.b16 %v2124
        %v2723 = vunpack.c.l.b16 %v2125
        %v2724 = vunpack.c.l.b16 %v2126
        %v2725 = vunpack.c.l.b16 %v2127
        %v2726 = vunpack.c.l.b16 %v2128
        %v2727 = vunpack.c.l.b16 %v2129
        %v2728 = vunpack.c.l.b16 %v2130
        %v2729 = vunpack.c.l.b16 %v2131
        %v2730 = vunpack.c.l.b16 %v2132
        %v2731 = vunpack.c.l.b16 %v2133
        %v2732 = vunpack.c.l.b16 %v2134
        %v2733 = vunpack.c.l.b16 %v2135
        %v2734 = vunpack.c.l.b16 %v2136
        %v2735 = vunpack.c.l.b16 %v2137
        %v2736 = vunpack.c.l.b16 %v2138
        %v2737 = vunpack.c.l.b16 %v2139
        %v2738 = vunpack.c.l.b16 %v2140
        %v2739 = vunpack.c.l.b16 %v2141
        %v2740 = vunpack.c.l.b16 %v2142
        %v2741 = vunpack.c.l.b16 %v2143
        %v2742 = vunpack.c.l.b16 %v2144
        %v2743 = vunpack.c.l.b16 %v2145
        %v2744 = vunpack.c.l.b16 %v2146
        %v2745 = vunpack.c.l.b16 %v2147
        %v2746 = vunpack.c.l.b16 %v2148
        %v2747 = vunpack.c.l.b16 %v2149
        %v2748 = vunpack.c.l.b16 %v2150
        %v2749 = vunpack.c.l.b16 %v2151
        %v2750 = vunpack.c.l.b16 %v2152
        %v2751 = vunpack.c.l.b16 %v2153
        %v2752 = vunpack.c.l.b16 %v2154
        %v2753 = vunpack.c.l.b16 %v2155
        %v2754 = vunpack.c.l.b16 %v2156
        %v2755 = vunpack.c.l.b16 %v2157
        %v2756 = vunpack.c.l.b16 %v2158
        %v2757 = vunpack.c.l.b16 %v2159
        %v2758 = vunpack.c.l.b16 %v2160
        %v2759 = vunpack.c.l.b16 %v2161
        %v2760 = vunpack.c.l.b16 %v2162
        %v2761 = vunpack.c.l.b16 %v2163
        %v2762 = vunpack.c.l.b16 %v2164
        %v2763 = vunpack.c.l.b16 %v2165
        %v2764 = vpack.c.b16 %v2717, %v2716
        %v2765 = vpack.c.b16 %v2719, %v2718
        %v2766 = vpack.c.b16 %v2721, %v2720
        %v2767 = vpack.c.b16 %v2723, %v2722
        %v2768 = vpack.c.b16 %v2725, %v2724
        %v2769 = vpack.c.b16 %v2727, %v2726
        %v2770 = vpack.c.b16 %v2729, %v2728
        %v2771 = vpack.c.b16 %v2731, %v2730
        %v2772 = vpack.c.b16 %v2733, %v2732
        %v2773 = vpack.c.b16 %v2735, %v2734
        %v2774 = vpack.c.b16 %v2737, %v2736
        %v2775 = vpack.c.b16 %v2739, %v2738
        %v2776 = vpack.c.b16 %v2741, %v2740
        %v2777 = vpack.c.b16 %v2743, %v2742
        %v2778 = vpack.c.b16 %v2745, %v2744
        %v2779 = vpack.c.b16 %v2747, %v2746
        %v2780 = vpack.c.b16 %v2749, %v2748
        %v2781 = vpack.c.b16 %v2751, %v2750
        %v2782 = vpack.c.b16 %v2753, %v2752
        %v2783 = vpack.c.b16 %v2755, %v2754
        %v2784 = vpack.c.b16 %v2757, %v2756
        %v2785 = vpack.c.b16 %v2759, %v2758
        %v2786 = vpack.c.b16 %v2761, %v2760
        %v2787 = vpack.c.b16 %v2763, %v2762
        %2812 = vmatprep.subr.bf16.mxu0 0
        %2813 = vmatpush1.bf16.msra.mxu0 %v2764
        %2814 = vmatprep.subr.bf16.mxu0 0
        %2815 = vmatpush1.bf16.msra.mxu0 %v2765
        %2816 = vmatprep.subr.bf16.mxu0 0
        %2817 = vmatpush1.bf16.msra.mxu0 %v2766
        %2818 = vmatprep.subr.bf16.mxu0 0
        %2819 = vmatpush1.bf16.msra.mxu0 %v2767
        %2820 = vmatprep.subr.bf16.mxu0 0
        %2821 = vmatpush1.bf16.msra.mxu0 %v2768
        %2822 = vmatprep.subr.bf16.mxu0 0
        %2823 = vmatpush1.bf16.msra.mxu0 %v2769
        %2824 = vmatprep.subr.bf16.mxu0 0
        %2825 = vmatpush1.bf16.msra.mxu0 %v2770
        %2826 = vmatprep.subr.bf16.mxu0 0
        %2827 = vmatpush1.bf16.msra.mxu0 %v2771
        %2828 = vmatprep.subr.bf16.mxu0 0
        %2829 = vmatpush1.bf16.msra.mxu0 %v2772
        %2830 = vmatprep.subr.bf16.mxu0 0
        %2831 = vmatpush1.bf16.msra.mxu0 %v2773
        %2832 = vmatprep.subr.bf16.mxu0 0
        %2833 = vmatpush1.bf16.msra.mxu0 %v2774
        %2834 = vmatprep.subr.bf16.mxu0 0
        %2835 = vmatpush1.bf16.msra.mxu0 %v2775
        %2836 = vmatprep.subr.bf16.mxu0 0
        %2837 = vmatpush1.bf16.msra.mxu0 %v2776
        %2838 = vmatprep.subr.bf16.mxu0 0
        %2839 = vmatpush1.bf16.msra.mxu0 %v2777
        %2840 = vmatprep.subr.bf16.mxu0 0
        %2841 = vmatpush1.bf16.msra.mxu0 %v2778
        %2842 = vmatprep.subr.bf16.mxu0 0
        %2843 = vmatpush1.bf16.msra.mxu0 %v2779
        %2844 = vmatprep.mubr.bf16.mxu0 %v2000
        %2845 = vmatmul.mubr.bf16.gmra.mrb[0].mxu0 %v2075
        %v2846 = vpop.f32.mrb[0].mxu0
        %v2847 = vadd.f32 %v2606, %v2846
        %v2848 = vpop.f32.mrb[0].mxu0
        %v2849 = vpop.f32.mrb[0].mxu0
        %v2850 = vadd.f32 %v2609, %v2849
        %v2851 = vpop.f32.mrb[0].mxu0
        %2852 = vmatprep.mubr.bf16.mxu0 %v2001
        %2853 = vmatmul.mubr.bf16.gmra.mrb[0].mxu0 %v2076
        %v2854 = vpop.f32.mrb[0].mxu0
        %v2855 = vadd.f32 %v2614, %v2854
        %v2856 = vpop.f32.mrb[0].mxu0
        %v2857 = vpop.f32.mrb[0].mxu0
        %v2858 = vadd.f32 %v2617, %v2857
        %v2859 = vpop.f32.mrb[0].mxu0
        %2860 = vmatprep.mubr.bf16.mxu0 %v2002
        %2861 = vmatmul.mubr.bf16.gmra.mrb[0].mxu0 %v2077
        %v2862 = vpop.f32.mrb[0].mxu0
        %v2863 = vadd.f32 %v2622, %v2862
        %v2864 = vpop.f32.mrb[0].mxu0
        %v2865 = vpop.f32.mrb[0].mxu0
        %v2866 = vadd.f32 %v2625, %v2865
        %v2867 = vpop.f32.mrb[0].mxu0
        %2868 = vmatprep.mubr.bf16.mxu0 %v2003
        %2869 = vmatmul.mubr.bf16.gmra.mrb[0].mxu0 %v2078
        %v2870 = vpop.f32.mrb[0].mxu0
        %v2871 = vadd.f32 %v2630, %v2870
        %v2872 = vpop.f32.mrb[0].mxu0
        %v2873 = vpop.f32.mrb[0].mxu0
        %v2874 = vadd.f32 %v2633, %v2873
        %v2875 = vpop.f32.mrb[0].mxu0
        %2876 = vmatprep.mubr.bf16.mxu0 %v2004
        %2877 = vmatmul.mubr.bf16.gmra.mrb[0].mxu0 %v2079
        %v2878 = vpop.f32.mrb[0].mxu0
        %v2879 = vadd.f32 %v2638, %v2878
        %v2880 = vpop.f32.mrb[0].mxu0
        %v2881 = vpop.f32.mrb[0].mxu0
        %v2882 = vadd.f32 %v2641, %v2881
        %v2883 = vpop.f32.mrb[0].mxu0
        %2884 = vmatprep.mubr.bf16.mxu0 %v2005
        %2885 = vmatmul.mubr.bf16.gmra.mrb[0].mxu0 %v2080
        %v2886 = vpop.f32.mrb[0].mxu0
        %v2887 = vadd.f32 %v2646, %v2886
        %v2888 = vpop.f32.mrb[0].mxu0
        %v2889 = vpop.f32.mrb[0].mxu0
        %v2890 = vadd.f32 %v2649, %v2889
        %v2891 = vpop.f32.mrb[0].mxu0
        %2892 = vmatprep.mubr.bf16.mxu0 %v2006
        %2893 = vmatmul.mubr.bf16.gmra.mrb[0].mxu0 %v2081
        %v2894 = vpop.f32.mrb[0].mxu0
        %v2895 = vadd.f32 %v2654, %v2894
        %v2896 = vpop.f32.mrb[0].mxu0
        %v2897 = vpop.f32.mrb[0].mxu0
        %v2898 = vadd.f32 %v2657, %v2897
        %v2899 = vpop.f32.mrb[0].mxu0
        %2900 = vmatprep.mubr.bf16.mxu0 %v2007
        %2901 = vmatmul.mubr.bf16.gmra.mrb[0].mxu0 %v2082
        %v2902 = vpop.f32.mrb[0].mxu0
        %v2903 = vadd.f32 %v2662, %v2902
        %v2904 = vpop.f32.mrb[0].mxu0
        %v2905 = vpop.f32.mrb[0].mxu0
        %v2906 = vadd.f32 %v2665, %v2905
        %v2907 = vpop.f32.mrb[0].mxu0
        %2908 = vdwg.mxu0
        %2909 = vmatprep.subr.bf16.mxu0 0
        %2910 = vmatpush1.bf16.msra.mxu0 %v2780
        %2911 = vmatprep.subr.bf16.mxu0 0
        %2912 = vmatpush1.bf16.msra.mxu0 %v2781
        %2913 = vmatprep.subr.bf16.mxu0 0
        %2914 = vmatpush1.bf16.msra.mxu0 %v2782
        %2915 = vmatprep.subr.bf16.mxu0 0
        %2916 = vmatpush1.bf16.msra.mxu0 %v2783
        %2917 = vmatprep.subr.bf16.mxu0 0
        %2918 = vmatpush1.bf16.msra.mxu0 %v2784
        %2919 = vmatprep.subr.bf16.mxu0 0
        %2920 = vmatpush1.bf16.msra.mxu0 %v2785
        %2921 = vmatprep.subr.bf16.mxu0 0
        %2922 = vmatpush1.bf16.msra.mxu0 %v2786
        %2923 = vmatprep.subr.bf16.mxu0 0
        %2924 = vmatpush1.bf16.msra.mxu0 %v2787
        %2925 = vmatprep.subr.bf16.mxu0 0
        %2926 = vmatpush1.bf16.msra.mxu0 0
        %2927 = vmatprep.subr.bf16.mxu0 0
        %2928 = vmatpush1.bf16.msra.mxu0 0
        %2929 = vmatprep.subr.bf16.mxu0 0
        %2930 = vmatpush1.bf16.msra.mxu0 0
        %2931 = vmatprep.subr.bf16.mxu0 0
        %2932 = vmatpush1.bf16.msra.mxu0 0
        %2933 = vmatprep.subr.bf16.mxu0 0
        %2934 = vmatpush1.bf16.msra.mxu0 0
        %2935 = vmatprep.subr.bf16.mxu0 0
        %2936 = vmatpush1.bf16.msra.mxu0 0
        %2937 = vmatprep.subr.bf16.mxu0 0
        %2938 = vmatpush1.bf16.msra.mxu0 0
        %2939 = vmatprep.subr.bf16.mxu0 0
        %2940 = vmatpush1.bf16.msra.mxu0 0
        %2941 = vmatprep.mubr.bf16.mxu0 0
        %2942 = vmatmul.mubr.bf16.gmra.mrb[0].mxu0 %v2110
        %v2943 = vpop.f32.mrb[0].mxu0
        %v2944 = vadd.f32 %v2847, %v2943
        %v2945 = vpop.f32.mrb[0].mxu0
        %v2946 = vpop.f32.mrb[0].mxu0
        %v2947 = vadd.f32 %v2850, %v2946
        %v2948 = vpop.f32.mrb[0].mxu0
        %2949 = vmatprep.mubr.bf16.mxu0 0
        %2950 = vmatmul.mubr.bf16.gmra.mrb[0].mxu0 %v2111
        %v2951 = vpop.f32.mrb[0].mxu0
        %v2952 = vadd.f32 %v2855, %v2951
        %v2953 = vpop.f32.mrb[0].mxu0
        %v2954 = vpop.f32.mrb[0].mxu0
        %v2955 = vadd.f32 %v2858, %v2954
        %v2956 = vpop.f32.mrb[0].mxu0
        %2957 = vmatprep.mubr.bf16.mxu0 0
        %2958 = vmatmul.mubr.bf16.gmra.mrb[0].mxu0 %v2112
        %v2959 = vpop.f32.mrb[0].mxu0
        %v2960 = vadd.f32 %v2863, %v2959
        %v2961 = vpop.f32.mrb[0].mxu0
        %v2962 = vpop.f32.mrb[0].mxu0
        %v2963 = vadd.f32 %v2866, %v2962
        %v2964 = vpop.f32.mrb[0].mxu0
        %2965 = vmatprep.mubr.bf16.mxu0 0
        %2966 = vmatmul.mubr.bf16.gmra.mrb[0].mxu0 %v2113
        %v2967 = vpop.f32.mrb[0].mxu0
        %v2968 = vadd.f32 %v2871, %v2967
        %v2969 = vpop.f32.mrb[0].mxu0
        %v2970 = vpop.f32.mrb[0].mxu0
        %v2971 = vadd.f32 %v2874, %v2970
        %v2972 = vpop.f32.mrb[0].mxu0
        %2973 = vmatprep.mubr.bf16.mxu0 0
        %2974 = vmatmul.mubr.bf16.gmra.mrb[0].mxu0 %v2114
        %v2975 = vpop.f32.mrb[0].mxu0
        %v2976 = vadd.f32 %v2879, %v2975
        %v2977 = vpop.f32.mrb[0].mxu0
        %v2978 = vpop.f32.mrb[0].mxu0
        %v2979 = vadd.f32 %v2882, %v2978
        %v2980 = vpop.f32.mrb[0].mxu0
        %2981 = vmatprep.mubr.bf16.mxu0 0
        %2982 = vmatmul.mubr.bf16.gmra.mrb[0].mxu0 %v2115
        %v2983 = vpop.f32.mrb[0].mxu0
        %v2984 = vadd.f32 %v2887, %v2983
        %v2985 = vpop.f32.mrb[0].mxu0
        %v2986 = vpop.f32.mrb[0].mxu0
        %v2987 = vadd.f32 %v2890, %v2986
        %v2988 = vpop.f32.mrb[0].mxu0
        %2989 = vmatprep.mubr.bf16.mxu0 0
        %2990 = vmatmul.mubr.bf16.gmra.mrb[0].mxu0 %v2116
        %v2991 = vpop.f32.mrb[0].mxu0
        %v2992 = vadd.f32 %v2895, %v2991
        %v2993 = vpop.f32.mrb[0].mxu0
        %v2994 = vpop.f32.mrb[0].mxu0
        %v2995 = vadd.f32 %v2898, %v2994
        %v2996 = vpop.f32.mrb[0].mxu0
        %2997 = vmatprep.mubr.bf16.mxu0 0
        %2998 = vmatmul.mubr.bf16.gmra.mrb[0].mxu0 %v2117
        %v2999 = vpop.f32.mrb[0].mxu0
        %v3000 = vadd.f32 %v2903, %v2999
        %v3001 = vpop.f32.mrb[0].mxu0
        %v3002 = vpop.f32.mrb[0].mxu0
        %v3003 = vadd.f32 %v2906, %v3002
        %v3004 = vpop.f32.mrb[0].mxu0
        %3005 = vdwg.mxu0
        %s3006 = sadd.s32 %s1997, 2
        %s3007 = smul.addr %s3006, 8
        %s3008 = scalar_lea.vmem [#allocation2], %s3007
        %v3009 = vld [vmem:[%s3008] sm:$0xff]
        %v3010 = vld [vmem:[%s3008 + $0x8] sm:$0xff]
        %v3011 = vld [vmem:[%s3008 + $0x10] sm:$0xff]
        %v3012 = vld [vmem:[%s3008 + $0x18] sm:$0xff]
        %v3013 = vld [vmem:[%s3008 + $0x20] sm:$0xff]
        %v3014 = vld [vmem:[%s3008 + $0x28] sm:$0xff]
        %v3015 = vld [vmem:[%s3008 + $0x30] sm:$0xff]
        %v3016 = vld [vmem:[%s3008 + $0x38] sm:$0xff]
        %v3018 = vshrl.u32 %v3009, 16
        %v3020 = vrot.slane %v3018, 7
        %v3021 = vshll.u32 %v3009, 16
        %v3023 = vor.u32 %v3020, %v3021
        %v3025 = vshrl.u32 %v3010, 16
        %v3027 = vrot.slane %v3025, 7
        %v3028 = vshll.u32 %v3010, 16
        %v3030 = vor.u32 %v3027, %v3028
        %v3032 = vshrl.u32 %v3011, 16
        %v3034 = vrot.slane %v3032, 7
        %v3035 = vshll.u32 %v3011, 16
        %v3037 = vor.u32 %v3034, %v3035
        %v3039 = vshrl.u32 %v3012, 16
        %v3041 = vrot.slane %v3039, 7
        %v3042 = vshll.u32 %v3012, 16
        %v3044 = vor.u32 %v3041, %v3042
        %v3046 = vshrl.u32 %v3013, 16
        %v3048 = vrot.slane %v3046, 7
        %v3049 = vshll.u32 %v3013, 16
        %v3051 = vor.u32 %v3048, %v3049
        %v3053 = vshrl.u32 %v3014, 16
        %v3055 = vrot.slane %v3053, 7
        %v3056 = vshll.u32 %v3014, 16
        %v3058 = vor.u32 %v3055, %v3056
        %v3060 = vshrl.u32 %v3015, 16
        %v3062 = vrot.slane %v3060, 7
        %v3063 = vshll.u32 %v3015, 16
        %v3065 = vor.u32 %v3062, %v3063
        %v3067 = vshrl.u32 %v3016, 16
        %v3069 = vrot.slane %v3067, 7
        %v3070 = vshll.u32 %v3016, 16
        %v3072 = vor.u32 %v3069, %v3070
        %v3081 = vsel %vm2074, 0, %v3023
        %v3082 = vsel %vm2074, 0, %v3030
        %v3083 = vsel %vm2074, 0, %v3037
        %v3084 = vsel %vm2074, 0, %v3044
        %v3085 = vsel %vm2074, 0, %v3051
        %v3086 = vsel %vm2074, 0, %v3058
        %v3087 = vsel %vm2074, 0, %v3065
        %v3088 = vsel %vm2074, 0, %v3072
        %v3089 = vrot.slane %v3021, 1
        %v3090 = vor.u32 %v3018, %v3089
        %v3091 = vrot.slane %v3028, 1
        %v3092 = vor.u32 %v3025, %v3091
        %v3093 = vrot.slane %v3035, 1
        %v3094 = vor.u32 %v3032, %v3093
        %v3095 = vrot.slane %v3042, 1
        %v3096 = vor.u32 %v3039, %v3095
        %v3097 = vrot.slane %v3049, 1
        %v3098 = vor.u32 %v3046, %v3097
        %v3099 = vrot.slane %v3056, 1
        %v3100 = vor.u32 %v3053, %v3099
        %v3101 = vrot.slane %v3063, 1
        %v3102 = vor.u32 %v3060, %v3101
        %v3103 = vrot.slane %v3070, 1
        %v3104 = vor.u32 %v3067, %v3103
        %v3113 = vsel %vm2109, %v3090, 0
        %v3114 = vsel %vm2109, %v3092, 0
        %v3115 = vsel %vm2109, %v3094, 0
        %v3116 = vsel %vm2109, %v3096, 0
        %v3117 = vsel %vm2109, %v3098, 0
        %v3118 = vsel %vm2109, %v3100, 0
        %v3119 = vsel %vm2109, %v3102, 0
        %v3120 = vsel %vm2109, %v3104, 0
        %s3121 = scalar_lea.vmem %s3, 384
        %v3122 = vld [vmem:[%s3121] sm:$0xf]
        %v3123 = vld [vmem:[%s3121 + $0x4] sm:$0xf]
        %v3124 = vld [vmem:[%s3121 + $0x8] sm:$0xf]
        %v3125 = vld [vmem:[%s3121 + $0xc] sm:$0xf]
        %v3126 = vld [vmem:[%s3121 + $0x10] sm:$0xf]
        %v3127 = vld [vmem:[%s3121 + $0x14] sm:$0xf]
        %v3128 = vld [vmem:[%s3121 + $0x18] sm:$0xf]
        %v3129 = vld [vmem:[%s3121 + $0x1c] sm:$0xf]
        %v3130 = vld [vmem:[%s3121 + $0x20] sm:$0xf]
        %v3131 = vld [vmem:[%s3121 + $0x24] sm:$0xf]
        %v3132 = vld [vmem:[%s3121 + $0x28] sm:$0xf]
        %v3133 = vld [vmem:[%s3121 + $0x2c] sm:$0xf]
        %v3134 = vld [vmem:[%s3121 + $0x30] sm:$0xf]
        %v3135 = vld [vmem:[%s3121 + $0x34] sm:$0xf]
        %v3136 = vld [vmem:[%s3121 + $0x38] sm:$0xf]
        %v3137 = vld [vmem:[%s3121 + $0x3c] sm:$0xf]
        %v3138 = vld [vmem:[%s3121 + $0x40] sm:$0xf]
        %v3139 = vld [vmem:[%s3121 + $0x44] sm:$0xf]
        %v3140 = vld [vmem:[%s3121 + $0x48] sm:$0xf]
        %v3141 = vld [vmem:[%s3121 + $0x4c] sm:$0xf]
        %v3142 = vld [vmem:[%s3121 + $0x50] sm:$0xf]
        %v3143 = vld [vmem:[%s3121 + $0x54] sm:$0xf]
        %v3144 = vld [vmem:[%s3121 + $0x58] sm:$0xf]
        %v3145 = vld [vmem:[%s3121 + $0x5c] sm:$0xf]
        %v3146 = vld [vmem:[%s3121 + $0x60] sm:$0xf]
        %v3147 = vld [vmem:[%s3121 + $0x64] sm:$0xf]
        %v3148 = vld [vmem:[%s3121 + $0x68] sm:$0xf]
        %v3149 = vld [vmem:[%s3121 + $0x6c] sm:$0xf]
        %v3150 = vld [vmem:[%s3121 + $0x70] sm:$0xf]
        %v3151 = vld [vmem:[%s3121 + $0x74] sm:$0xf]
        %v3152 = vld [vmem:[%s3121 + $0x78] sm:$0xf]
        %v3153 = vld [vmem:[%s3121 + $0x7c] sm:$0xf]
        %v3154 = vld [vmem:[%s3121 + $0x80] sm:$0xf]
        %v3155 = vld [vmem:[%s3121 + $0x84] sm:$0xf]
        %v3156 = vld [vmem:[%s3121 + $0x88] sm:$0xf]
        %v3157 = vld [vmem:[%s3121 + $0x8c] sm:$0xf]
        %v3158 = vld [vmem:[%s3121 + $0x90] sm:$0xf]
        %v3159 = vld [vmem:[%s3121 + $0x94] sm:$0xf]
        %v3160 = vld [vmem:[%s3121 + $0x98] sm:$0xf]
        %v3161 = vld [vmem:[%s3121 + $0x9c] sm:$0xf]
        %v3162 = vld [vmem:[%s3121 + $0xa0] sm:$0xf]
        %v3163 = vld [vmem:[%s3121 + $0xa4] sm:$0xf]
        %v3164 = vld [vmem:[%s3121 + $0xa8] sm:$0xf]
        %v3165 = vld [vmem:[%s3121 + $0xac] sm:$0xf]
        %v3166 = vld [vmem:[%s3121 + $0xb0] sm:$0xf]
        %v3167 = vld [vmem:[%s3121 + $0xb4] sm:$0xf]
        %v3168 = vld [vmem:[%s3121 + $0xb8] sm:$0xf]
        %v3169 = vld [vmem:[%s3121 + $0xbc] sm:$0xf]
        %v3218 = vunpack.c.l.b16 %v3122
        %v3219 = vunpack.c.l.b16 %v3123
        %v3220 = vunpack.c.l.b16 %v3124
        %v3221 = vunpack.c.l.b16 %v3125
        %v3222 = vunpack.c.l.b16 %v3126
        %v3223 = vunpack.c.l.b16 %v3127
        %v3224 = vunpack.c.l.b16 %v3128
        %v3225 = vunpack.c.l.b16 %v3129
        %v3226 = vunpack.c.l.b16 %v3130
        %v3227 = vunpack.c.l.b16 %v3131
        %v3228 = vunpack.c.l.b16 %v3132
        %v3229 = vunpack.c.l.b16 %v3133
        %v3230 = vunpack.c.l.b16 %v3134
        %v3231 = vunpack.c.l.b16 %v3135
        %v3232 = vunpack.c.l.b16 %v3136
        %v3233 = vunpack.c.l.b16 %v3137
        %v3234 = vunpack.c.l.b16 %v3138
        %v3235 = vunpack.c.l.b16 %v3139
        %v3236 = vunpack.c.l.b16 %v3140
        %v3237 = vunpack.c.l.b16 %v3141
        %v3238 = vunpack.c.l.b16 %v3142
        %v3239 = vunpack.c.l.b16 %v3143
        %v3240 = vunpack.c.l.b16 %v3144
        %v3241 = vunpack.c.l.b16 %v3145
        %v3242 = vunpack.c.l.b16 %v3146
        %v3243 = vunpack.c.l.b16 %v3147
        %v3244 = vunpack.c.l.b16 %v3148
        %v3245 = vunpack.c.l.b16 %v3149
        %v3246 = vunpack.c.l.b16 %v3150
        %v3247 = vunpack.c.l.b16 %v3151
        %v3248 = vunpack.c.l.b16 %v3152
        %v3249 = vunpack.c.l.b16 %v3153
        %v3250 = vunpack.c.l.b16 %v3154
        %v3251 = vunpack.c.l.b16 %v3155
        %v3252 = vunpack.c.l.b16 %v3156
        %v3253 = vunpack.c.l.b16 %v3157
        %v3254 = vunpack.c.l.b16 %v3158
        %v3255 = vunpack.c.l.b16 %v3159
        %v3256 = vunpack.c.l.b16 %v3160
        %v3257 = vunpack.c.l.b16 %v3161
        %v3258 = vunpack.c.l.b16 %v3162
        %v3259 = vunpack.c.l.b16 %v3163
        %v3260 = vunpack.c.l.b16 %v3164
        %v3261 = vunpack.c.l.b16 %v3165
        %v3262 = vunpack.c.l.b16 %v3166
        %v3263 = vunpack.c.l.b16 %v3167
        %v3264 = vunpack.c.l.b16 %v3168
        %v3265 = vunpack.c.l.b16 %v3169
        %v3266 = vpack.c.b16 %v3219, %v3218
        %v3267 = vpack.c.b16 %v3221, %v3220
        %v3268 = vpack.c.b16 %v3223, %v3222
        %v3269 = vpack.c.b16 %v3225, %v3224
        %v3270 = vpack.c.b16 %v3227, %v3226
        %v3271 = vpack.c.b16 %v3229, %v3228
        %v3272 = vpack.c.b16 %v3231, %v3230
        %v3273 = vpack.c.b16 %v3233, %v3232
        %v3274 = vpack.c.b16 %v3235, %v3234
        %v3275 = vpack.c.b16 %v3237, %v3236
        %v3276 = vpack.c.b16 %v3239, %v3238
        %v3277 = vpack.c.b16 %v3241, %v3240
        %v3278 = vpack.c.b16 %v3243, %v3242
        %v3279 = vpack.c.b16 %v3245, %v3244
        %v3280 = vpack.c.b16 %v3247, %v3246
        %v3281 = vpack.c.b16 %v3249, %v3248
        %v3282 = vpack.c.b16 %v3251, %v3250
        %v3283 = vpack.c.b16 %v3253, %v3252
        %v3284 = vpack.c.b16 %v3255, %v3254
        %v3285 = vpack.c.b16 %v3257, %v3256
        %v3286 = vpack.c.b16 %v3259, %v3258
        %v3287 = vpack.c.b16 %v3261, %v3260
        %v3288 = vpack.c.b16 %v3263, %v3262
        %v3289 = vpack.c.b16 %v3265, %v3264
        %3314 = vmatprep.subr.bf16.mxu0 0
        %3315 = vmatpush1.bf16.msra.mxu0 %v3266
        %3316 = vmatprep.subr.bf16.mxu0 0
        %3317 = vmatpush1.bf16.msra.mxu0 %v3267
        %3318 = vmatprep.subr.bf16.mxu0 0
        %3319 = vmatpush1.bf16.msra.mxu0 %v3268
        %3320 = vmatprep.subr.bf16.mxu0 0
        %3321 = vmatpush1.bf16.msra.mxu0 %v3269
        %3322 = vmatprep.subr.bf16.mxu0 0
        %3323 = vmatpush1.bf16.msra.mxu0 %v3270
        %3324 = vmatprep.subr.bf16.mxu0 0
        %3325 = vmatpush1.bf16.msra.mxu0 %v3271
        %3326 = vmatprep.subr.bf16.mxu0 0
        %3327 = vmatpush1.bf16.msra.mxu0 %v3272
        %3328 = vmatprep.subr.bf16.mxu0 0
        %3329 = vmatpush1.bf16.msra.mxu0 %v3273
        %3330 = vmatprep.subr.bf16.mxu0 0
        %3331 = vmatpush1.bf16.msra.mxu0 %v3274
        %3332 = vmatprep.subr.bf16.mxu0 0
        %3333 = vmatpush1.bf16.msra.mxu0 %v3275
        %3334 = vmatprep.subr.bf16.mxu0 0
        %3335 = vmatpush1.bf16.msra.mxu0 %v3276
        %3336 = vmatprep.subr.bf16.mxu0 0
        %3337 = vmatpush1.bf16.msra.mxu0 %v3277
        %3338 = vmatprep.subr.bf16.mxu0 0
        %3339 = vmatpush1.bf16.msra.mxu0 %v3278
        %3340 = vmatprep.subr.bf16.mxu0 0
        %3341 = vmatpush1.bf16.msra.mxu0 %v3279
        %3342 = vmatprep.subr.bf16.mxu0 0
        %3343 = vmatpush1.bf16.msra.mxu0 %v3280
        %3344 = vmatprep.subr.bf16.mxu0 0
        %3345 = vmatpush1.bf16.msra.mxu0 %v3281
        %3346 = vmatprep.mubr.bf16.mxu0 %v3009
        %3347 = vmatmul.mubr.bf16.gmra.mrb[0].mxu0 %v3081
        %v3348 = vpop.f32.mrb[0].mxu0
        %v3349 = vadd.f32 0.0, %v3348
        %v3350 = vpop.f32.mrb[0].mxu0
        %v3351 = vpop.f32.mrb[0].mxu0
        %v3352 = vadd.f32 0.0, %v3351
        %v3353 = vpop.f32.mrb[0].mxu0
        %3354 = vmatprep.mubr.bf16.mxu0 %v3010
        %3355 = vmatmul.mubr.bf16.gmra.mrb[0].mxu0 %v3082
        %v3356 = vpop.f32.mrb[0].mxu0
        %v3357 = vadd.f32 0.0, %v3356
        %v3358 = vpop.f32.mrb[0].mxu0
        %v3359 = vpop.f32.mrb[0].mxu0
        %v3360 = vadd.f32 0.0, %v3359
        %v3361 = vpop.f32.mrb[0].mxu0
        %3362 = vmatprep.mubr.bf16.mxu0 %v3011
        %3363 = vmatmul.mubr.bf16.gmra.mrb[0].mxu0 %v3083
        %v3364 = vpop.f32.mrb[0].mxu0
        %v3365 = vadd.f32 0.0, %v3364
        %v3366 = vpop.f32.mrb[0].mxu0
        %v3367 = vpop.f32.mrb[0].mxu0
        %v3368 = vadd.f32 0.0, %v3367
        %v3369 = vpop.f32.mrb[0].mxu0
        %3370 = vmatprep.mubr.bf16.mxu0 %v3012
        %3371 = vmatmul.mubr.bf16.gmra.mrb[0].mxu0 %v3084
        %v3372 = vpop.f32.mrb[0].mxu0
        %v3373 = vadd.f32 0.0, %v3372
        %v3374 = vpop.f32.mrb[0].mxu0
        %v3375 = vpop.f32.mrb[0].mxu0
        %v3376 = vadd.f32 0.0, %v3375
        %v3377 = vpop.f32.mrb[0].mxu0
        %3378 = vmatprep.mubr.bf16.mxu0 %v3013
        %3379 = vmatmul.mubr.bf16.gmra.mrb[0].mxu0 %v3085
        %v3380 = vpop.f32.mrb[0].mxu0
        %v3381 = vadd.f32 0.0, %v3380
        %v3382 = vpop.f32.mrb[0].mxu0
        %v3383 = vpop.f32.mrb[0].mxu0
        %v3384 = vadd.f32 0.0, %v3383
        %v3385 = vpop.f32.mrb[0].mxu0
        %3386 = vmatprep.mubr.bf16.mxu0 %v3014
        %3387 = vmatmul.mubr.bf16.gmra.mrb[0].mxu0 %v3086
        %v3388 = vpop.f32.mrb[0].mxu0
        %v3389 = vadd.f32 0.0, %v3388
        %v3390 = vpop.f32.mrb[0].mxu0
        %v3391 = vpop.f32.mrb[0].mxu0
        %v3392 = vadd.f32 0.0, %v3391
        %v3393 = vpop.f32.mrb[0].mxu0
        %3394 = vmatprep.mubr.bf16.mxu0 %v3015
        %3395 = vmatmul.mubr.bf16.gmra.mrb[0].mxu0 %v3087
        %v3396 = vpop.f32.mrb[0].mxu0
        %v3397 = vadd.f32 0.0, %v3396
        %v3398 = vpop.f32.mrb[0].mxu0
        %v3399 = vpop.f32.mrb[0].mxu0
        %v3400 = vadd.f32 0.0, %v3399
        %v3401 = vpop.f32.mrb[0].mxu0
        %3402 = vmatprep.mubr.bf16.mxu0 %v3016
        %3403 = vmatmul.mubr.bf16.gmra.mrb[0].mxu0 %v3088
        %v3404 = vpop.f32.mrb[0].mxu0
        %v3405 = vadd.f32 0.0, %v3404
        %v3406 = vpop.f32.mrb[0].mxu0
        %v3407 = vpop.f32.mrb[0].mxu0
        %v3408 = vadd.f32 0.0, %v3407
        %v3409 = vpop.f32.mrb[0].mxu0
        %3410 = vdwg.mxu0
        %3411 = vmatprep.subr.bf16.mxu0 0
        %3412 = vmatpush1.bf16.msra.mxu0 %v3282
        %3413 = vmatprep.subr.bf16.mxu0 0
        %3414 = vmatpush1.bf16.msra.mxu0 %v3283
        %3415 = vmatprep.subr.bf16.mxu0 0
        %3416 = vmatpush1.bf16.msra.mxu0 %v3284
        %3417 = vmatprep.subr.bf16.mxu0 0
        %3418 = vmatpush1.bf16.msra.mxu0 %v3285
        %3419 = vmatprep.subr.bf16.mxu0 0
        %3420 = vmatpush1.bf16.msra.mxu0 %v3286
        %3421 = vmatprep.subr.bf16.mxu0 0
        %3422 = vmatpush1.bf16.msra.mxu0 %v3287
        %3423 = vmatprep.subr.bf16.mxu0 0
        %3424 = vmatpush1.bf16.msra.mxu0 %v3288
        %3425 = vmatprep.subr.bf16.mxu0 0
        %3426 = vmatpush1.bf16.msra.mxu0 %v3289
        %3427 = vmatprep.subr.bf16.mxu0 0
        %3428 = vmatpush1.bf16.msra.mxu0 0
        %3429 = vmatprep.subr.bf16.mxu0 0
        %3430 = vmatpush1.bf16.msra.mxu0 0
        %3431 = vmatprep.subr.bf16.mxu0 0
        %3432 = vmatpush1.bf16.msra.mxu0 0
        %3433 = vmatprep.subr.bf16.mxu0 0
        %3434 = vmatpush1.bf16.msra.mxu0 0
        %3435 = vmatprep.subr.bf16.mxu0 0
        %3436 = vmatpush1.bf16.msra.mxu0 0
        %3437 = vmatprep.subr.bf16.mxu0 0
        %3438 = vmatpush1.bf16.msra.mxu0 0
        %3439 = vmatprep.subr.bf16.mxu0 0
        %3440 = vmatpush1.bf16.msra.mxu0 0
        %3441 = vmatprep.subr.bf16.mxu0 0
        %3442 = vmatpush1.bf16.msra.mxu0 0
        %3443 = vmatprep.mubr.bf16.mxu0 0
        %3444 = vmatmul.mubr.bf16.gmra.mrb[0].mxu0 %v3113
        %v3445 = vpop.f32.mrb[0].mxu0
        %v3446 = vadd.f32 %v3349, %v3445
        %v3447 = vpop.f32.mrb[0].mxu0
        %v3448 = vpop.f32.mrb[0].mxu0
        %v3449 = vadd.f32 %v3352, %v3448
        %v3450 = vpop.f32.mrb[0].mxu0
        %3451 = vmatprep.mubr.bf16.mxu0 0
        %3452 = vmatmul.mubr.bf16.gmra.mrb[0].mxu0 %v3114
        %v3453 = vpop.f32.mrb[0].mxu0
        %v3454 = vadd.f32 %v3357, %v3453
        %v3455 = vpop.f32.mrb[0].mxu0
        %v3456 = vpop.f32.mrb[0].mxu0
        %v3457 = vadd.f32 %v3360, %v3456
        %v3458 = vpop.f32.mrb[0].mxu0
        %3459 = vmatprep.mubr.bf16.mxu0 0
        %3460 = vmatmul.mubr.bf16.gmra.mrb[0].mxu0 %v3115
        %v3461 = vpop.f32.mrb[0].mxu0
        %v3462 = vadd.f32 %v3365, %v3461
        %v3463 = vpop.f32.mrb[0].mxu0
        %v3464 = vpop.f32.mrb[0].mxu0
        %v3465 = vadd.f32 %v3368, %v3464
        %v3466 = vpop.f32.mrb[0].mxu0
        %3467 = vmatprep.mubr.bf16.mxu0 0
        %3468 = vmatmul.mubr.bf16.gmra.mrb[0].mxu0 %v3116
        %v3469 = vpop.f32.mrb[0].mxu0
        %v3470 = vadd.f32 %v3373, %v3469
        %v3471 = vpop.f32.mrb[0].mxu0
        %v3472 = vpop.f32.mrb[0].mxu0
        %v3473 = vadd.f32 %v3376, %v3472
        %v3474 = vpop.f32.mrb[0].mxu0
        %3475 = vmatprep.mubr.bf16.mxu0 0
        %3476 = vmatmul.mubr.bf16.gmra.mrb[0].mxu0 %v3117
        %v3477 = vpop.f32.mrb[0].mxu0
        %v3478 = vadd.f32 %v3381, %v3477
        %v3479 = vpop.f32.mrb[0].mxu0
        %v3480 = vpop.f32.mrb[0].mxu0
        %v3481 = vadd.f32 %v3384, %v3480
        %v3482 = vpop.f32.mrb[0].mxu0
        %3483 = vmatprep.mubr.bf16.mxu0 0
        %3484 = vmatmul.mubr.bf16.gmra.mrb[0].mxu0 %v3118
        %v3485 = vpop.f32.mrb[0].mxu0
        %v3486 = vadd.f32 %v3389, %v3485
        %v3487 = vpop.f32.mrb[0].mxu0
        %v3488 = vpop.f32.mrb[0].mxu0
        %v3489 = vadd.f32 %v3392, %v3488
        %v3490 = vpop.f32.mrb[0].mxu0
        %3491 = vmatprep.mubr.bf16.mxu0 0
        %3492 = vmatmul.mubr.bf16.gmra.mrb[0].mxu0 %v3119
        %v3493 = vpop.f32.mrb[0].mxu0
        %v3494 = vadd.f32 %v3397, %v3493
        %v3495 = vpop.f32.mrb[0].mxu0
        %v3496 = vpop.f32.mrb[0].mxu0
        %v3497 = vadd.f32 %v3400, %v3496
        %v3498 = vpop.f32.mrb[0].mxu0
        %3499 = vmatprep.mubr.bf16.mxu0 0
        %3500 = vmatmul.mubr.bf16.gmra.mrb[0].mxu0 %v3120
        %v3501 = vpop.f32.mrb[0].mxu0
        %v3502 = vadd.f32 %v3405, %v3501
        %v3503 = vpop.f32.mrb[0].mxu0
        %v3504 = vpop.f32.mrb[0].mxu0
        %v3505 = vadd.f32 %v3408, %v3504
        %v3506 = vpop.f32.mrb[0].mxu0
        %3507 = vdwg.mxu0
        %v3508 = vadd.f32 %v2944, %v3446
        %v3509 = vadd.f32 %v2947, %v3449
        %v3510 = vadd.f32 %v2952, %v3454
        %v3511 = vadd.f32 %v2955, %v3457
        %v3512 = vadd.f32 %v2960, %v3462
        %v3513 = vadd.f32 %v2963, %v3465
        %v3514 = vadd.f32 %v2968, %v3470
        %v3515 = vadd.f32 %v2971, %v3473
        %v3516 = vadd.f32 %v2976, %v3478
        %v3517 = vadd.f32 %v2979, %v3481
        %v3518 = vadd.f32 %v2984, %v3486
        %v3519 = vadd.f32 %v2987, %v3489
        %v3520 = vadd.f32 %v2992, %v3494
        %v3521 = vadd.f32 %v2995, %v3497
        %v3522 = vadd.f32 %v3000, %v3502
        %v3523 = vadd.f32 %v3003, %v3505
        %v3525 = vlaneseq
        %v3526 = vshrl.u32 %v3525, 7
        %v3527 = vsub.s32 0, %v3526
        %v3528 = vrot.slane %v227, %v3527
        %v3530 = vadd.f32 %v3508, %v3528
        %v3531 = vadd.f32 %v3509, %v3528
        %v3532 = vadd.f32 %v3510, %v3528
        %v3533 = vadd.f32 %v3511, %v3528
        %v3534 = vadd.f32 %v3512, %v3528
        %v3535 = vadd.f32 %v3513, %v3528
        %v3536 = vadd.f32 %v3514, %v3528
        %v3537 = vadd.f32 %v3515, %v3528
        %v3538 = vadd.f32 %v3516, %v3528
        %v3539 = vadd.f32 %v3517, %v3528
        %v3540 = vadd.f32 %v3518, %v3528
        %v3541 = vadd.f32 %v3519, %v3528
        %v3542 = vadd.f32 %v3520, %v3528
        %v3543 = vadd.f32 %v3521, %v3528
        %v3544 = vadd.f32 %v3522, %v3528
        %v3545 = vadd.f32 %v3523, %v3528
        %s3546 = smul.u32 %s2166, 2
        %s3547 = smul.addr %s3546, 4
        %s3548 = scalar_lea.vmem %s219, %s3547
        %v3549 = vld [vmem:[%s3548] sm:$0xf]
        %v3550 = vld [vmem:[%s3548 + $0x4] sm:$0xf]
        %v3551 = vld [vmem:[%s3548 + $0x8] sm:$0xf]
        %v3552 = vld [vmem:[%s3548 + $0xc] sm:$0xf]
        %v3553 = vld [vmem:[%s3548 + $0x10] sm:$0xf]
        %v3554 = vld [vmem:[%s3548 + $0x14] sm:$0xf]
        %v3555 = vld [vmem:[%s3548 + $0x18] sm:$0xf]
        %v3556 = vld [vmem:[%s3548 + $0x1c] sm:$0xf]
        %v3557 = vld [vmem:[%s3548 + $0x20] sm:$0xf]
        %v3558 = vld [vmem:[%s3548 + $0x24] sm:$0xf]
        %v3559 = vld [vmem:[%s3548 + $0x28] sm:$0xf]
        %v3560 = vld [vmem:[%s3548 + $0x2c] sm:$0xf]
        %v3561 = vld [vmem:[%s3548 + $0x30] sm:$0xf]
        %v3562 = vld [vmem:[%s3548 + $0x34] sm:$0xf]
        %v3563 = vld [vmem:[%s3548 + $0x38] sm:$0xf]
        %v3564 = vld [vmem:[%s3548 + $0x3c] sm:$0xf]
        %v3565 = vunpack.c.l.bf16 %v3549
        %v3566 = vunpack.c.l.bf16 %v3550
        %v3567 = vunpack.c.l.bf16 %v3551
        %v3568 = vunpack.c.l.bf16 %v3552
        %v3569 = vunpack.c.l.bf16 %v3553
        %v3570 = vunpack.c.l.bf16 %v3554
        %v3571 = vunpack.c.l.bf16 %v3555
        %v3572 = vunpack.c.l.bf16 %v3556
        %v3573 = vunpack.c.l.bf16 %v3557
        %v3574 = vunpack.c.l.bf16 %v3558
        %v3575 = vunpack.c.l.bf16 %v3559
        %v3576 = vunpack.c.l.bf16 %v3560
        %v3577 = vunpack.c.l.bf16 %v3561
        %v3578 = vunpack.c.l.bf16 %v3562
        %v3579 = vunpack.c.l.bf16 %v3563
        %v3580 = vunpack.c.l.bf16 %v3564
        %v3581 = vadd.f32 %v3530, %v3565
        %v3582 = vadd.f32 %v3531, %v3566
        %v3583 = vadd.f32 %v3532, %v3567
        %v3584 = vadd.f32 %v3533, %v3568
        %v3585 = vadd.f32 %v3534, %v3569
        %v3586 = vadd.f32 %v3535, %v3570
        %v3587 = vadd.f32 %v3536, %v3571
        %v3588 = vadd.f32 %v3537, %v3572
        %v3589 = vadd.f32 %v3538, %v3573
        %v3590 = vadd.f32 %v3539, %v3574
        %v3591 = vadd.f32 %v3540, %v3575
        %v3592 = vadd.f32 %v3541, %v3576
        %v3593 = vadd.f32 %v3542, %v3577
        %v3594 = vadd.f32 %v3543, %v3578
        %v3595 = vadd.f32 %v3544, %v3579
        %v3596 = vadd.f32 %v3545, %v3580
        %v3597 = vmax.f32 %v3581, 0.0
        %v3598 = vmax.f32 %v3582, 0.0
        %v3599 = vmax.f32 %v3583, 0.0
        %v3600 = vmax.f32 %v3584, 0.0
        %v3601 = vmax.f32 %v3585, 0.0
        %v3602 = vmax.f32 %v3586, 0.0
        %v3603 = vmax.f32 %v3587, 0.0
        %v3604 = vmax.f32 %v3588, 0.0
        %v3605 = vmax.f32 %v3589, 0.0
        %v3606 = vmax.f32 %v3590, 0.0
        %v3607 = vmax.f32 %v3591, 0.0
        %v3608 = vmax.f32 %v3592, 0.0
        %v3609 = vmax.f32 %v3593, 0.0
        %v3610 = vmax.f32 %v3594, 0.0
        %v3611 = vmax.f32 %v3595, 0.0
        %v3612 = vmax.f32 %v3596, 0.0
        %v3613 = vpack.c.bf16 %v3598, %v3597
        %v3614 = vpack.c.bf16 %v3600, %v3599
        %v3615 = vpack.c.bf16 %v3602, %v3601
        %v3616 = vpack.c.bf16 %v3604, %v3603
        %v3617 = vpack.c.bf16 %v3606, %v3605
        %v3618 = vpack.c.bf16 %v3608, %v3607
        %v3619 = vpack.c.bf16 %v3610, %v3609
        %v3620 = vpack.c.bf16 %v3612, %v3611
        %v3629 = vunpack.c.l.b16 %v3613
        %v3630 = vunpack.c.h.b16 %v3613
        %v3631 = vunpack.c.l.b16 %v3614
        %v3632 = vunpack.c.h.b16 %v3614
        %v3633 = vunpack.c.l.b16 %v3615
        %v3634 = vunpack.c.h.b16 %v3615
        %v3635 = vunpack.c.l.b16 %v3616
        %v3636 = vunpack.c.h.b16 %v3616
        %v3637 = vunpack.c.l.b16 %v3617
        %v3638 = vunpack.c.h.b16 %v3617
        %v3639 = vunpack.c.l.b16 %v3618
        %v3640 = vunpack.c.h.b16 %v3618
        %v3641 = vunpack.c.l.b16 %v3619
        %v3642 = vunpack.c.h.b16 %v3619
        %v3643 = vunpack.c.l.b16 %v3620
        %v3644 = vunpack.c.h.b16 %v3620
        %v3645 = vpack.c.b16 %v3629, %v3629
        %v3646 = vpack.c.b16 %v3630, %v3630
        %v3647 = vpack.c.b16 %v3631, %v3631
        %v3648 = vpack.c.b16 %v3632, %v3632
        %v3649 = vpack.c.b16 %v3633, %v3633
        %v3650 = vpack.c.b16 %v3634, %v3634
        %v3651 = vpack.c.b16 %v3635, %v3635
        %v3652 = vpack.c.b16 %v3636, %v3636
        %v3653 = vpack.c.b16 %v3637, %v3637
        %v3654 = vpack.c.b16 %v3638, %v3638
        %v3655 = vpack.c.b16 %v3639, %v3639
        %v3656 = vpack.c.b16 %v3640, %v3640
        %v3657 = vpack.c.b16 %v3641, %v3641
        %v3658 = vpack.c.b16 %v3642, %v3642
        %v3659 = vpack.c.b16 %v3643, %v3643
        %v3660 = vpack.c.b16 %v3644, %v3644
        %s3677 = smul.u32 %s1997, 2
        %s3678 = smul.addr %s3677, 4
        %s3679 = scalar_lea.vmem %s224, %s3678
        %3680 = vst [vmem:[%s3679] sm:$0xf] %v3645
        %3681 = vst [vmem:[%s3679 + $0x4] sm:$0xf] %v3646
        %3682 = vst [vmem:[%s3679 + $0x8] sm:$0xf] %v3647
        %3683 = vst [vmem:[%s3679 + $0xc] sm:$0xf] %v3648
        %3684 = vst [vmem:[%s3679 + $0x10] sm:$0xf] %v3649
        %3685 = vst [vmem:[%s3679 + $0x14] sm:$0xf] %v3650
        %3686 = vst [vmem:[%s3679 + $0x18] sm:$0xf] %v3651
        %3687 = vst [vmem:[%s3679 + $0x1c] sm:$0xf] %v3652
        %3688 = vst [vmem:[%s3679 + $0x20] sm:$0xf] %v3653
        %3689 = vst [vmem:[%s3679 + $0x24] sm:$0xf] %v3654
        %3690 = vst [vmem:[%s3679 + $0x28] sm:$0xf] %v3655
        %3691 = vst [vmem:[%s3679 + $0x2c] sm:$0xf] %v3656
        %3692 = vst [vmem:[%s3679 + $0x30] sm:$0xf] %v3657
        %3693 = vst [vmem:[%s3679 + $0x34] sm:$0xf] %v3658
        %3694 = vst [vmem:[%s3679 + $0x38] sm:$0xf] %v3659
        %3695 = vst [vmem:[%s3679 + $0x3c] sm:$0xf] %v3660
      $region52: #{basic_block_forward.1} parent=39 // loop_footer
        %s1996 = sadd.s32 1, %s1992
      $region53: #{basic_block_forward.1} parent=39 // loop_footer_branch
        %1991 = sbr.rel target = $region49
      $region54: #{basic_block_forward.1} parent=39 // loop_exit
        _
      %p3696 = scmp.lt.s32.totalorder %s16, 1
      %s3697 = scalar_select %p3696, %s16, 1
      %s3698 = smul.addr %s3697, 32
      %s3699 = smul.addr %s3698, 4
      %s3700 = scalar_lea.vmem %s5, %s3699
      // Predicated region
      $region55: #{basic_block_forward.1} parent=39 // pred_check
        %p3701 = pneg %p144
      $region56: #{basic_block_forward.1} parent=39 // pred_check_branch
        %3703 = sbr.rel (%p3701) target = $region58
      $region57: #{basic_block_forward.1} parent=39 // pred_region
        _
      $region58: #{basic_block_forward.1} parent=39 // pred_fallthru
        _
    $region40: #{basic_block_forward.1} parent=5 // pred_fallthru
      _
    %p3704 = scmp.le.s32.totalorder 2, %s11
    // Predicated region
    $region59: #{basic_block_forward.1} parent=5 // pred_check
      %p3705 = pneg %p3704
    $region60: #{basic_block_forward.1} parent=5 // pred_check_branch
      %3707 = sbr.rel (%p3705) target = $region62
    $region61: #{basic_block_forward.1} parent=5 // pred_region
      %s3708 = ssub.s32 %s11, 2
      // Predicated region
      $region63: #{basic_block_forward.1} parent=61 // pred_check
        %p3709 = pneg %p150
      $region64: #{basic_block_forward.1} parent=61 // pred_check_branch
        %3711 = sbr.rel (%p3709) target = $region66
      $region65: #{basic_block_forward.1} parent=61 // pred_region
        %p3712 = scmp.lt.s32.totalorder %s17, 1
        %s3713 = scalar_select %p3712, %s17, 1
        %s3714 = smul.addr %s3713, 32
        %s3715 = smul.addr %s3714, 4
        %s3716 = scalar_lea.vmem %s5, %s3715
      $region66: #{basic_block_forward.1} parent=61 // pred_fallthru
        _
    $region62: #{basic_block_forward.1} parent=5 // pred_fallthru
      _
  $region6: #{basic_block_forward.1} parent=0 // loop_footer
    %s15 = sadd.s32 1, %s11
  $region7: #{basic_block_forward.1} parent=0 // loop_footer_branch
    %10 = sbr.rel target = $region3
  $region8: #{basic_block_forward.1} parent=0 // loop_exit
    _

</llo_original>
